<compile_context>
chip_gen: v5e
topology: v5e:2x2
jax: 0.10.0
libtpu: 0.0.40
codegen_flags: <defaults>
</compile_context>

<pallas_src>
import functools
import numpy as np
import jax
import jax.numpy as jnp
from jax import lax
from jax.experimental import pallas as pl
from jax.experimental.pallas import tpu as pltpu

# ---- hyperparameters (mirror SocialPooling.__init__) ----
H_DIM = 32
EMBED_DIM = 16
GRID_SIZE = 4
NEIGHBORHOOD_SIZE = 4.0
G2 = GRID_SIZE * GRID_SIZE


def social_pool_kernel(pos_q_ref, seq_q_ref, pos_k_ref, seq_k_ref,
                       hw_ref, b_ref, out_ref, acc_ref,
                       *, grid_size, inv_gnorm):
    k = pl.program_id(1)

    @pl.when(k == 0)
    def _():
        acc_ref[...] = jnp.zeros_like(acc_ref)

    TM = out_ref.shape[1]        # query tile (lanes)
    TK = pos_k_ref.shape[0]      # key chunk (sublanes)
    half = grid_size // 2

    # rel[j, i] = pos_k[j] - pos_q[i]  (keys on sublanes, queries on lanes)
    px_i = pos_q_ref[0:1, :]     # (1, TM)
    py_i = pos_q_ref[1:2, :]
    px_j = pos_k_ref[:, 0:1]     # (TK, 1)
    py_j = pos_k_ref[:, 1:2]

    # clamp-then-bin, exactly like the torch module; multiply by the
    # precomputed reciprocal instead of dividing (single VALU op).
    relc_x = jnp.clip((px_j - px_i) * inv_gnorm, -half, half)
    relc_y = jnp.clip((py_j - py_i) * inv_gnorm, -half, half)
    gx = (relc_x + half).astype(jnp.int32)   # values >= 0 -> trunc == floor == .long()
    gy = (relc_y + half).astype(jnp.int32)
    cell = gy * grid_size + gx               # (TK, TM) int32

    seq_i = seq_q_ref[...]                   # (1, TM)
    seq_j = seq_k_ref[...]                   # (TK, 1)
    i_idx = pl.program_id(0) * TM + lax.broadcasted_iota(jnp.int32, (TK, TM), 1)
    j_idx = k * TK + lax.broadcasted_iota(jnp.int32, (TK, TM), 0)

    valid = (gx >= 0) & (gx < grid_size) & (gy >= 0) & (gy < grid_size)
    valid &= seq_i == seq_j                  # same sequence only
    valid &= i_idx != j_idx                  # exclude self
    masked_cell = jnp.where(valid, cell, -1)  # hoisted mask prep (int32)

    # fused scatter-add + Linear: unrolled per-cell dot accumulation.
    # hw_ref[c] is a free static leading-axis slice (E, TK) in bf16; the
    # 0/1 mask is exact in bf16; accumulation is f32 on the MXU.
    acc = acc_ref[...]
    for c in range(grid_size * grid_size):
        mask_c = (masked_cell == c).astype(jnp.bfloat16)          # (TK, TM)
        acc += jnp.dot(hw_ref[c], mask_c,
                       preferred_element_type=jnp.float32)        # (E, TM)
    acc_ref[...] = acc

    @pl.when(k == pl.num_programs(1) - 1)
    def _():
        res = acc_ref[...] + b_ref[...]                            # bias (E, 1)
        out_ref[...] = jnp.maximum(res, 0.0).astype(out_ref.dtype)  # ReLU


def social_pooling_forward(hidden, pos, seq_id, w, b, *, tile_m=256, tile_k=128):
    """hidden:(N,h) pos:(N,2) seq_id:(N,) int  w:(G2*h,E) b:(E,) -> (N,E)."""
    N, h = hidden.shape
    E = w.shape[1]
    seq_id = seq_id.astype(jnp.int32)
    base = jnp.min(seq_id)   # sentinel base: pads never match any real sequence

    # ---- pad query axis up to a multiple of tile_m (padded queries pool nothing)
    n_pad = pl.cdiv(N, tile_m) * tile_m
    pad_q = n_pad - N
    pos_q, seq_q = pos, seq_id
    if pad_q:
        pos_q = jnp.concatenate([pos, jnp.zeros((pad_q, 2), pos.dtype)], axis=0)
        seq_q = jnp.concatenate(
            [seq_id, jnp.full((pad_q,), base - 1, jnp.int32)], axis=0)

    # ---- pad key axis up to a multiple of tile_k (keeps masks / matmul K aligned)
    nk_pad = pl.cdiv(N, tile_k) * tile_k
    pad_k = nk_pad - N
    pos_k, seq_k, hidden_k = pos, seq_id, hidden
    if pad_k:
        pos_k = jnp.concatenate([pos, jnp.zeros((pad_k, 2), pos.dtype)], axis=0)
        seq_k = jnp.concatenate(
            [seq_id, jnp.full((pad_k,), base - 2, jnp.int32)], axis=0)
        hidden_k = jnp.concatenate(
            [hidden, jnp.zeros((pad_k, h), hidden.dtype)], axis=0)

    # Precompute HW[c, e, j] = (H @ W_c)[j, e] ONCE (linearity of scatter-add +
    # Linear); layout (G2, E, Nk) so hw_ref[c] is a static leading-axis slice.
    w3 = w.reshape(G2, h, E)
    hw = jnp.einsum('nh,che->cen', hidden_k, w3).astype(jnp.bfloat16)  # (G2,E,Nk)

    pos_q_t = pos_q.T                           # (2, n_pad)   queries on lanes
    seq_q_row = seq_q.reshape(1, n_pad)         # (1, n_pad)
    seq_k_col = seq_k.reshape(nk_pad, 1)        # (Nk, 1)      keys on sublanes
    b2 = b.reshape(E, 1).astype(jnp.float32)

    kernel = functools.partial(
        social_pool_kernel, grid_size=GRID_SIZE,
        inv_gnorm=float((GRID_SIZE - 1) / NEIGHBORHOOD_SIZE))

    grid = (n_pad // tile_m, nk_pad // tile_k)   # (queries, keys); reduction last
    out_t = pl.pallas_call(
        kernel,
        out_shape=jax.ShapeDtypeStruct((E, n_pad), hidden.dtype),
        grid_spec=pltpu.PrefetchScalarGridSpec(
            num_scalar_prefetch=0,
            grid=grid,
            in_specs=[
                pl.BlockSpec((2, tile_m), lambda i, k: (0, i)),         # query pos
                pl.BlockSpec((1, tile_m), lambda i, k: (0, i)),         # query seq id
                pl.BlockSpec((tile_k, 2), lambda i, k: (k, 0)),         # key pos chunk
                pl.BlockSpec((tile_k, 1), lambda i, k: (k, 0)),         # key seq chunk
                pl.BlockSpec((G2, E, tile_k), lambda i, k: (0, 0, k)),  # HW chunk (bf16)
                pl.BlockSpec((E, 1), lambda i, k: (0, 0)),              # bias
            ],
            out_specs=pl.BlockSpec((E, tile_m), lambda i, k: (0, i)),
            scratch_shapes=[pltpu.VMEM((E, tile_m), jnp.float32)],      # f32 accumulator
        ),
        compiler_params=pltpu.CompilerParams(
            dimension_semantics=("parallel", "arbitrary"),
            vmem_limit_bytes=32 * 1024 * 1024),
    )(pos_q_t, seq_q_row, pos_k, seq_k_col, hw, b2)

    # back to (N, E) row-major; drop padded query rows
    return out_t.T[:N]


def social_pooling_reference(hidden, pos, seq_id, w, b):
    """Pure-JAX (f32) vectorized mirror of the PyTorch loop semantics."""
    N, h = hidden.shape
    half = GRID_SIZE // 2
    gnorm = NEIGHBORHOOD_SIZE / (GRID_SIZE - 1)
    rel = pos[None, :, :] - pos[:, None, :]            # rel[i, j] = pos[j] - pos[i]
    relc = jnp.clip(rel / gnorm, -half, half)
    gidx = (relc + half).astype(jnp.int32)
    gx, gy = gidx[..., 0], gidx[..., 1]
    cell = gy * GRID_SIZE + gx
    valid = (gx >= 0) & (gx < GRID_SIZE) & (gy >= 0) & (gy < GRID_SIZE)
    valid &= seq_id[:, None] == seq_id[None, :]
    valid &= ~jnp.eye(N, dtype=bool)
    onehot = (cell[..., None] == jnp.arange(G2)[None, None, :]) & valid[..., None]
    pooled = jnp.einsum('ijc,jh->ich', onehot.astype(hidden.dtype), hidden)
    out = pooled.reshape(N, G2 * h) @ w + b
    return jnp.maximum(out, 0.0)


if __name__ == "__main__":
    key = jax.random.PRNGKey(0)
    N = 16
    k1, k2, k3, k4 = jax.random.split(key, 4)

    hidden = jax.random.normal(k1, (N, H_DIM), jnp.float32)
    pos = jax.random.uniform(k2, (N, 2), jnp.float32, minval=-3.0, maxval=3.0)

    # seq_start_end: batch of 4 sequences covering the 16 peds.
    # glue: the data-dependent python loop over seq_start_end becomes a per-ped
    # sequence-id vector; peds outside any sequence get a unique negative id.
    seq_start_end = np.array([[0, 5], [5, 6], [6, 11], [11, 16]], np.int32)
    seq_id_np = -(np.arange(N, dtype=np.int32) + 1)
    for bi, (s, e) in enumerate(seq_start_end):
        seq_id_np[s:e] = bi
    seq_id = jnp.asarray(seq_id_np)

    # deterministic parameter init (nn.Linear(h_dim*gs*gs, embedding_dim))
    w = jax.random.normal(k3, (H_DIM * G2, EMBED_DIM), jnp.float32) * 0.05
    b = jax.random.normal(k4, (EMBED_DIM,), jnp.float32) * 0.05

    out = social_pooling_forward(hidden, pos, seq_id, w, b)
    out = jax.block_until_ready(out)

    ref = social_pooling_reference(hidden, pos, seq_id, w, b)
    # bf16 matmul inputs (masks are exact 0/1; only H@W loses mantissa bits),
    # f32 accumulation -> tolerance relaxed vs a pure-f32 comparison.
    np.testing.assert_allclose(np.asarray(out), np.asarray(ref),
                               rtol=2e-2, atol=2e-2)
    print("KERNEL_OK")
</pallas_src>

<mosaic_0001>
module attributes {stable_mosaic.version = 11 : i64} {
  func.func @social_pool_kernel(%arg0: i32, %arg1: i32, %arg2: memref<2x256xf32, #tpu.memory_space<vmem>>, %arg3: memref<1x256xi32, #tpu.memory_space<vmem>>, %arg4: memref<128x2xf32, #tpu.memory_space<vmem>>, %arg5: memref<128x1xi32, #tpu.memory_space<vmem>>, %arg6: memref<16x16x128xbf16, #tpu.memory_space<vmem>>, %arg7: memref<16x1xf32, #tpu.memory_space<vmem>>, %arg8: memref<16x256xf32, #tpu.memory_space<vmem>>, %arg9: memref<16x256xf32, #tpu.memory_space<vmem>>) attributes {dimension_semantics = [#tpu.dimension_semantics<parallel>, #tpu.dimension_semantics<arbitrary>], iteration_bounds = array<i64: 1, 1>, scalar_prefetch = 0 : i64, scratch_operands = 1 : i64, tpu.core_type = #tpu.core_type<tc>, window_params = [{transform_indices = @transform_0, window_bounds = array<i64: 2, 256>}, {transform_indices = @transform_1, window_bounds = array<i64: 1, 256>}, {transform_indices = @transform_2, window_bounds = array<i64: 128, 2>}, {transform_indices = @transform_3, window_bounds = array<i64: 128, 1>}, {transform_indices = @transform_4, window_bounds = array<i64: 16, 16, 128>}, {pipeline_mode = #tpu.pipeline_mode<synchronous>, transform_indices = @transform_5, window_bounds = array<i64: 16, 1>}, {transform_indices = @transform_6, window_bounds = array<i64: 16, 256>}]} {
    %c0_i32 = arith.constant 0 : i32
    %0 = arith.cmpi eq, %arg1, %c0_i32 : i32
    %1 = arith.extui %0 : i1 to i32
    %c0_i32_0 = arith.constant 0 : i32
    %2 = arith.cmpi ne, %1, %c0_i32_0 : i32
    scf.if %2 {
      %cst_79 = arith.constant 0.000000e+00 : f32
      %216 = vector.broadcast %cst_79 : f32 to vector<16x256xf32>
      %c0_80 = arith.constant 0 : index
      %c0_81 = arith.constant 0 : index
      %217 = vector.load %arg9[%c0_80, %c0_81] : memref<16x256xf32, #tpu.memory_space<vmem>>, vector<16x256xf32>
      tpu.vector_store %arg9[%c0_80, %c0_81], %216 {strides = array<i32>} : memref<16x256xf32, #tpu.memory_space<vmem>>, vector<16x256xf32>,
    } else {
    }
    %c0 = arith.constant 0 : index
    %c0_1 = arith.constant 0 : index
    %3 = vector.load %arg2[%c0, %c0_1] : memref<2x256xf32, #tpu.memory_space<vmem>>, vector<1x256xf32>
    %c1 = arith.constant 1 : index
    %c0_2 = arith.constant 0 : index
    %4 = vector.load %arg2[%c1, %c0_2] : memref<2x256xf32, #tpu.memory_space<vmem>>, vector<1x256xf32>
    %c0_3 = arith.constant 0 : index
    %c0_4 = arith.constant 0 : index
    %5 = vector.load %arg4[%c0_3, %c0_4] : memref<128x2xf32, #tpu.memory_space<vmem>>, vector<128x1xf32>
    %c0_5 = arith.constant 0 : index
    %c1_6 = arith.constant 1 : index
    %6 = vector.load %arg4[%c0_5, %c1_6] : memref<128x2xf32, #tpu.memory_space<vmem>>, vector<128x1xf32>
    %7 = vector.broadcast %5 : vector<128x1xf32> to vector<128x256xf32>
    %8 = vector.broadcast %3 : vector<1x256xf32> to vector<128x256xf32>
    %9 = arith.subf %7, %8 : vector<128x256xf32>
    %cst = arith.constant 7.500000e-01 : f32
    %10 = vector.broadcast %cst : f32 to vector<128x256xf32>
    %11 = arith.mulf %9, %10 : vector<128x256xf32>
    %c-2_i32 = arith.constant -2 : i32
    %c2_i32 = arith.constant 2 : i32
    %12 = arith.sitofp %c-2_i32 : i32 to f32
    %13 = vector.broadcast %12 : f32 to vector<128x256xf32>
    %14 = arith.maximumf %13, %11 : vector<128x256xf32>
    %15 = arith.sitofp %c2_i32 : i32 to f32
    %16 = vector.broadcast %15 : f32 to vector<128x256xf32>
    %17 = arith.minimumf %16, %14 : vector<128x256xf32>
    %18 = vector.broadcast %6 : vector<128x1xf32> to vector<128x256xf32>
    %19 = vector.broadcast %4 : vector<1x256xf32> to vector<128x256xf32>
    %20 = arith.subf %18, %19 : vector<128x256xf32>
    %cst_7 = arith.constant 7.500000e-01 : f32
    %21 = vector.broadcast %cst_7 : f32 to vector<128x256xf32>
    %22 = arith.mulf %20, %21 : vector<128x256xf32>
    %c-2_i32_8 = arith.constant -2 : i32
    %c2_i32_9 = arith.constant 2 : i32
    %23 = arith.sitofp %c-2_i32_8 : i32 to f32
    %24 = vector.broadcast %23 : f32 to vector<128x256xf32>
    %25 = arith.maximumf %24, %22 : vector<128x256xf32>
    %26 = arith.sitofp %c2_i32_9 : i32 to f32
    %27 = vector.broadcast %26 : f32 to vector<128x256xf32>
    %28 = arith.minimumf %27, %25 : vector<128x256xf32>
    %cst_10 = arith.constant 2.000000e+00 : f32
    %29 = vector.broadcast %cst_10 : f32 to vector<128x256xf32>
    %30 = arith.addf %17, %29 : vector<128x256xf32>
    %31 = arith.fptosi %30 : vector<128x256xf32> to vector<128x256xi32>
    %cst_11 = arith.constant 2.000000e+00 : f32
    %32 = vector.broadcast %cst_11 : f32 to vector<128x256xf32>
    %33 = arith.addf %28, %32 : vector<128x256xf32>
    %34 = arith.fptosi %33 : vector<128x256xf32> to vector<128x256xi32>
    %c4_i32 = arith.constant 4 : i32
    %35 = vector.broadcast %c4_i32 : i32 to vector<128x256xi32>
    %36 = arith.muli %34, %35 : vector<128x256xi32>
    %37 = arith.addi %36, %31 : vector<128x256xi32>
    %c0_12 = arith.constant 0 : index
    %c0_13 = arith.constant 0 : index
    %38 = vector.load %arg3[%c0_12, %c0_13] : memref<1x256xi32, #tpu.memory_space<vmem>>, vector<1x256xi32>
    %c0_14 = arith.constant 0 : index
    %c0_15 = arith.constant 0 : index
    %39 = vector.load %arg5[%c0_14, %c0_15] : memref<128x1xi32, #tpu.memory_space<vmem>>, vector<128x1xi32>
    %c256_i32 = arith.constant 256 : i32
    %40 = arith.muli %arg0, %c256_i32 : i32
    %41 = tpu.iota {dimensions = array<i32: 1>} : vector<128x256xi32>
    %42 = vector.broadcast %40 : i32 to vector<128x256xi32>
    %43 = arith.addi %42, %41 : vector<128x256xi32>
    %c128_i32 = arith.constant 128 : i32
    %44 = arith.muli %arg1, %c128_i32 : i32
    %45 = tpu.iota {dimensions = array<i32: 0>} : vector<128x256xi32>
    %46 = vector.broadcast %44 : i32 to vector<128x256xi32>
    %47 = arith.addi %46, %45 : vector<128x256xi32>
    %c0_i32_16 = arith.constant 0 : i32
    %48 = vector.broadcast %c0_i32_16 : i32 to vector<128x256xi32>
    %49 = arith.cmpi sge, %31, %48 : vector<128x256xi32>
    %c4_i32_17 = arith.constant 4 : i32
    %50 = vector.broadcast %c4_i32_17 : i32 to vector<128x256xi32>
    %51 = arith.cmpi slt, %31, %50 : vector<128x256xi32>
    %52 = arith.andi %49, %51 : vector<128x256xi1>
    %c0_i32_18 = arith.constant 0 : i32
    %53 = vector.broadcast %c0_i32_18 : i32 to vector<128x256xi32>
    %54 = arith.cmpi sge, %34, %53 : vector<128x256xi32>
    %55 = arith.andi %52, %54 : vector<128x256xi1>
    %c4_i32_19 = arith.constant 4 : i32
    %56 = vector.broadcast %c4_i32_19 : i32 to vector<128x256xi32>
    %57 = arith.cmpi slt, %34, %56 : vector<128x256xi32>
    %58 = arith.andi %55, %57 : vector<128x256xi1>
    %59 = vector.broadcast %38 : vector<1x256xi32> to vector<128x256xi32>
    %60 = vector.broadcast %39 : vector<128x1xi32> to vector<128x256xi32>
    %61 = arith.cmpi eq, %59, %60 : vector<128x256xi32>
    %62 = arith.andi %58, %61 : vector<128x256xi1>
    %63 = arith.cmpi ne, %43, %47 : vector<128x256xi32>
    %64 = arith.andi %62, %63 : vector<128x256xi1>
    %c-1_i32 = arith.constant -1 : i32
    %65 = vector.broadcast %c-1_i32 : i32 to vector<128x256xi32>
    %66 = arith.select %64, %37, %65 : vector<128x256xi1>, vector<128x256xi32>
    %c0_20 = arith.constant 0 : index
    %c0_21 = arith.constant 0 : index
    %67 = vector.load %arg9[%c0_20, %c0_21] : memref<16x256xf32, #tpu.memory_space<vmem>>, vector<16x256xf32>
    %c0_i32_22 = arith.constant 0 : i32
    %68 = vector.broadcast %c0_i32_22 : i32 to vector<128x256xi32>
    %69 = arith.cmpi eq, %66, %68 : vector<128x256xi32>
    %70 = arith.extui %69 : vector<128x256xi1> to vector<128x256xi32>
    %71 = arith.sitofp %70 : vector<128x256xi32> to vector<128x256xf32>
    %72 = arith.truncf %71 : vector<128x256xf32> to vector<128x256xbf16>
    %c0_23 = arith.constant 0 : index
    %c0_24 = arith.constant 0 : index
    %c0_25 = arith.constant 0 : index
    %73 = vector.load %arg6[%c0_23, %c0_24, %c0_25] : memref<16x16x128xbf16, #tpu.memory_space<vmem>>, vector<1x16x128xbf16>
    %74 = vector.shape_cast %73 : vector<1x16x128xbf16> to vector<16x128xbf16>
    %cst_26 = arith.constant dense<0.000000e+00> : vector<16x256xf32>
    %75 = tpu.matmul %74, %72, %cst_26 {dimension_numbers = #tpu.dot_dimension_numbers<[1], [0], [0], [1], [0, 0, 1, 1], [], []>} : vector<16x128xbf16>, vector<128x256xbf16>, vector<16x256xf32> -> vector<16x256xf32>
    %76 = arith.addf %67, %75 : vector<16x256xf32>
    %c1_i32 = arith.constant 1 : i32
    %77 = vector.broadcast %c1_i32 : i32 to vector<128x256xi32>
    %78 = arith.cmpi eq, %66, %77 : vector<128x256xi32>
    %79 = arith.extui %78 : vector<128x256xi1> to vector<128x256xi32>
    %80 = arith.sitofp %79 : vector<128x256xi32> to vector<128x256xf32>
    %81 = arith.truncf %80 : vector<128x256xf32> to vector<128x256xbf16>
    %c1_27 = arith.constant 1 : index
    %c0_28 = arith.constant 0 : index
    %c0_29 = arith.constant 0 : index
    %82 = vector.load %arg6[%c1_27, %c0_28, %c0_29] : memref<16x16x128xbf16, #tpu.memory_space<vmem>>, vector<1x16x128xbf16>
    %83 = vector.shape_cast %82 : vector<1x16x128xbf16> to vector<16x128xbf16>
    %cst_30 = arith.constant dense<0.000000e+00> : vector<16x256xf32>
    %84 = tpu.matmul %83, %81, %cst_30 {dimension_numbers = #tpu.dot_dimension_numbers<[1], [0], [0], [1], [0, 0, 1, 1], [], []>} : vector<16x128xbf16>, vector<128x256xbf16>, vector<16x256xf32> -> vector<16x256xf32>
    %85 = arith.addf %76, %84 : vector<16x256xf32>
    %c2_i32_31 = arith.constant 2 : i32
    %86 = vector.broadcast %c2_i32_31 : i32 to vector<128x256xi32>
    %87 = arith.cmpi eq, %66, %86 : vector<128x256xi32>
    %88 = arith.extui %87 : vector<128x256xi1> to vector<128x256xi32>
    %89 = arith.sitofp %88 : vector<128x256xi32> to vector<128x256xf32>
    %90 = arith.truncf %89 : vector<128x256xf32> to vector<128x256xbf16>
    %c2 = arith.constant 2 : index
    %c0_32 = arith.constant 0 : index
    %c0_33 = arith.constant 0 : index
    %91 = vector.load %arg6[%c2, %c0_32, %c0_33] : memref<16x16x128xbf16, #tpu.memory_space<vmem>>, vector<1x16x128xbf16>
    %92 = vector.shape_cast %91 : vector<1x16x128xbf16> to vector<16x128xbf16>
    %cst_34 = arith.constant dense<0.000000e+00> : vector<16x256xf32>
    %93 = tpu.matmul %92, %90, %cst_34 {dimension_numbers = #tpu.dot_dimension_numbers<[1], [0], [0], [1], [0, 0, 1, 1], [], []>} : vector<16x128xbf16>, vector<128x256xbf16>, vector<16x256xf32> -> vector<16x256xf32>
    %94 = arith.addf %85, %93 : vector<16x256xf32>
    %c3_i32 = arith.constant 3 : i32
    %95 = vector.broadcast %c3_i32 : i32 to vector<128x256xi32>
    %96 = arith.cmpi eq, %66, %95 : vector<128x256xi32>
    %97 = arith.extui %96 : vector<128x256xi1> to vector<128x256xi32>
    %98 = arith.sitofp %97 : vector<128x256xi32> to vector<128x256xf32>
    %99 = arith.truncf %98 : vector<128x256xf32> to vector<128x256xbf16>
    %c3 = arith.constant 3 : index
    %c0_35 = arith.constant 0 : index
    %c0_36 = arith.constant 0 : index
    %100 = vector.load %arg6[%c3, %c0_35, %c0_36] : memref<16x16x128xbf16, #tpu.memory_space<vmem>>, vector<1x16x128xbf16>
    %101 = vector.shape_cast %100 : vector<1x16x128xbf16> to vector<16x128xbf16>
    %cst_37 = arith.constant dense<0.000000e+00> : vector<16x256xf32>
    %102 = tpu.matmul %101, %99, %cst_37 {dimension_numbers = #tpu.dot_dimension_numbers<[1], [0], [0], [1], [0, 0, 1, 1], [], []>} : vector<16x128xbf16>, vector<128x256xbf16>, vector<16x256xf32> -> vector<16x256xf32>
    %103 = arith.addf %94, %102 : vector<16x256xf32>
    %c4_i32_38 = arith.constant 4 : i32
    %104 = vector.broadcast %c4_i32_38 : i32 to vector<128x256xi32>
    %105 = arith.cmpi eq, %66, %104 : vector<128x256xi32>
    %106 = arith.extui %105 : vector<128x256xi1> to vector<128x256xi32>
    %107 = arith.sitofp %106 : vector<128x256xi32> to vector<128x256xf32>
    %108 = arith.truncf %107 : vector<128x256xf32> to vector<128x256xbf16>
    %c4 = arith.constant 4 : index
    %c0_39 = arith.constant 0 : index
    %c0_40 = arith.constant 0 : index
    %109 = vector.load %arg6[%c4, %c0_39, %c0_40] : memref<16x16x128xbf16, #tpu.memory_space<vmem>>, vector<1x16x128xbf16>
    %110 = vector.shape_cast %109 : vector<1x16x128xbf16> to vector<16x128xbf16>
    %cst_41 = arith.constant dense<0.000000e+00> : vector<16x256xf32>
    %111 = tpu.matmul %110, %108, %cst_41 {dimension_numbers = #tpu.dot_dimension_numbers<[1], [0], [0], [1], [0, 0, 1, 1], [], []>} : vector<16x128xbf16>, vector<128x256xbf16>, vector<16x256xf32> -> vector<16x256xf32>
    %112 = arith.addf %103, %111 : vector<16x256xf32>
    %c5_i32 = arith.constant 5 : i32
    %113 = vector.broadcast %c5_i32 : i32 to vector<128x256xi32>
    %114 = arith.cmpi eq, %66, %113 : vector<128x256xi32>
    %115 = arith.extui %114 : vector<128x256xi1> to vector<128x256xi32>
    %116 = arith.sitofp %115 : vector<128x256xi32> to vector<128x256xf32>
    %117 = arith.truncf %116 : vector<128x256xf32> to vector<128x256xbf16>
    %c5 = arith.constant 5 : index
    %c0_42 = arith.constant 0 : index
    %c0_43 = arith.constant 0 : index
    %118 = vector.load %arg6[%c5, %c0_42, %c0_43] : memref<16x16x128xbf16, #tpu.memory_space<vmem>>, vector<1x16x128xbf16>
    %119 = vector.shape_cast %118 : vector<1x16x128xbf16> to vector<16x128xbf16>
    %cst_44 = arith.constant dense<0.000000e+00> : vector<16x256xf32>
    %120 = tpu.matmul %119, %117, %cst_44 {dimension_numbers = #tpu.dot_dimension_numbers<[1], [0], [0], [1], [0, 0, 1, 1], [], []>} : vector<16x128xbf16>, vector<128x256xbf16>, vector<16x256xf32> -> vector<16x256xf32>
    %121 = arith.addf %112, %120 : vector<16x256xf32>
    %c6_i32 = arith.constant 6 : i32
    %122 = vector.broadcast %c6_i32 : i32 to vector<128x256xi32>
    %123 = arith.cmpi eq, %66, %122 : vector<128x256xi32>
    %124 = arith.extui %123 : vector<128x256xi1> to vector<128x256xi32>
    %125 = arith.sitofp %124 : vector<128x256xi32> to vector<128x256xf32>
    %126 = arith.truncf %125 : vector<128x256xf32> to vector<128x256xbf16>
    %c6 = arith.constant 6 : index
    %c0_45 = arith.constant 0 : index
    %c0_46 = arith.constant 0 : index
    %127 = vector.load %arg6[%c6, %c0_45, %c0_46] : memref<16x16x128xbf16, #tpu.memory_space<vmem>>, vector<1x16x128xbf16>
    %128 = vector.shape_cast %127 : vector<1x16x128xbf16> to vector<16x128xbf16>
    %cst_47 = arith.constant dense<0.000000e+00> : vector<16x256xf32>
    %129 = tpu.matmul %128, %126, %cst_47 {dimension_numbers = #tpu.dot_dimension_numbers<[1], [0], [0], [1], [0, 0, 1, 1], [], []>} : vector<16x128xbf16>, vector<128x256xbf16>, vector<16x256xf32> -> vector<16x256xf32>
    %130 = arith.addf %121, %129 : vector<16x256xf32>
    %c7_i32 = arith.constant 7 : i32
    %131 = vector.broadcast %c7_i32 : i32 to vector<128x256xi32>
    %132 = arith.cmpi eq, %66, %131 : vector<128x256xi32>
    %133 = arith.extui %132 : vector<128x256xi1> to vector<128x256xi32>
    %134 = arith.sitofp %133 : vector<128x256xi32> to vector<128x256xf32>
    %135 = arith.truncf %134 : vector<128x256xf32> to vector<128x256xbf16>
    %c7 = arith.constant 7 : index
    %c0_48 = arith.constant 0 : index
    %c0_49 = arith.constant 0 : index
    %136 = vector.load %arg6[%c7, %c0_48, %c0_49] : memref<16x16x128xbf16, #tpu.memory_space<vmem>>, vector<1x16x128xbf16>
    %137 = vector.shape_cast %136 : vector<1x16x128xbf16> to vector<16x128xbf16>
    %cst_50 = arith.constant dense<0.000000e+00> : vector<16x256xf32>
    %138 = tpu.matmul %137, %135, %cst_50 {dimension_numbers = #tpu.dot_dimension_numbers<[1], [0], [0], [1], [0, 0, 1, 1], [], []>} : vector<16x128xbf16>, vector<128x256xbf16>, vector<16x256xf32> -> vector<16x256xf32>
    %139 = arith.addf %130, %138 : vector<16x256xf32>
    %c8_i32 = arith.constant 8 : i32
    %140 = vector.broadcast %c8_i32 : i32 to vector<128x256xi32>
    %141 = arith.cmpi eq, %66, %140 : vector<128x256xi32>
    %142 = arith.extui %141 : vector<128x256xi1> to vector<128x256xi32>
    %143 = arith.sitofp %142 : vector<128x256xi32> to vector<128x256xf32>
    %144 = arith.truncf %143 : vector<128x256xf32> to vector<128x256xbf16>
    %c8 = arith.constant 8 : index
    %c0_51 = arith.constant 0 : index
    %c0_52 = arith.constant 0 : index
    %145 = vector.load %arg6[%c8, %c0_51, %c0_52] : memref<16x16x128xbf16, #tpu.memory_space<vmem>>, vector<1x16x128xbf16>
    %146 = vector.shape_cast %145 : vector<1x16x128xbf16> to vector<16x128xbf16>
    %cst_53 = arith.constant dense<0.000000e+00> : vector<16x256xf32>
    %147 = tpu.matmul %146, %144, %cst_53 {dimension_numbers = #tpu.dot_dimension_numbers<[1], [0], [0], [1], [0, 0, 1, 1], [], []>} : vector<16x128xbf16>, vector<128x256xbf16>, vector<16x256xf32> -> vector<16x256xf32>
    %148 = arith.addf %139, %147 : vector<16x256xf32>
    %c9_i32 = arith.constant 9 : i32
    %149 = vector.broadcast %c9_i32 : i32 to vector<128x256xi32>
    %150 = arith.cmpi eq, %66, %149 : vector<128x256xi32>
    %151 = arith.extui %150 : vector<128x256xi1> to vector<128x256xi32>
    %152 = arith.sitofp %151 : vector<128x256xi32> to vector<128x256xf32>
    %153 = arith.truncf %152 : vector<128x256xf32> to vector<128x256xbf16>
    %c9 = arith.constant 9 : index
    %c0_54 = arith.constant 0 : index
    %c0_55 = arith.constant 0 : index
    %154 = vector.load %arg6[%c9, %c0_54, %c0_55] : memref<16x16x128xbf16, #tpu.memory_space<vmem>>, vector<1x16x128xbf16>
    %155 = vector.shape_cast %154 : vector<1x16x128xbf16> to vector<16x128xbf16>
    %cst_56 = arith.constant dense<0.000000e+00> : vector<16x256xf32>
    %156 = tpu.matmul %155, %153, %cst_56 {dimension_numbers = #tpu.dot_dimension_numbers<[1], [0], [0], [1], [0, 0, 1, 1], [], []>} : vector<16x128xbf16>, vector<128x256xbf16>, vector<16x256xf32> -> vector<16x256xf32>
    %157 = arith.addf %148, %156 : vector<16x256xf32>
    %c10_i32 = arith.constant 10 : i32
    %158 = vector.broadcast %c10_i32 : i32 to vector<128x256xi32>
    %159 = arith.cmpi eq, %66, %158 : vector<128x256xi32>
    %160 = arith.extui %159 : vector<128x256xi1> to vector<128x256xi32>
    %161 = arith.sitofp %160 : vector<128x256xi32> to vector<128x256xf32>
    %162 = arith.truncf %161 : vector<128x256xf32> to vector<128x256xbf16>
    %c10 = arith.constant 10 : index
    %c0_57 = arith.constant 0 : index
    %c0_58 = arith.constant 0 : index
    %163 = vector.load %arg6[%c10, %c0_57, %c0_58] : memref<16x16x128xbf16, #tpu.memory_space<vmem>>, vector<1x16x128xbf16>
    %164 = vector.shape_cast %163 : vector<1x16x128xbf16> to vector<16x128xbf16>
    %cst_59 = arith.constant dense<0.000000e+00> : vector<16x256xf32>
    %165 = tpu.matmul %164, %162, %cst_59 {dimension_numbers = #tpu.dot_dimension_numbers<[1], [0], [0], [1], [0, 0, 1, 1], [], []>} : vector<16x128xbf16>, vector<128x256xbf16>, vector<16x256xf32> -> vector<16x256xf32>
    %166 = arith.addf %157, %165 : vector<16x256xf32>
    %c11_i32 = arith.constant 11 : i32
    %167 = vector.broadcast %c11_i32 : i32 to vector<128x256xi32>
    %168 = arith.cmpi eq, %66, %167 : vector<128x256xi32>
    %169 = arith.extui %168 : vector<128x256xi1> to vector<128x256xi32>
    %170 = arith.sitofp %169 : vector<128x256xi32> to vector<128x256xf32>
    %171 = arith.truncf %170 : vector<128x256xf32> to vector<128x256xbf16>
    %c11 = arith.constant 11 : index
    %c0_60 = arith.constant 0 : index
    %c0_61 = arith.constant 0 : index
    %172 = vector.load %arg6[%c11, %c0_60, %c0_61] : memref<16x16x128xbf16, #tpu.memory_space<vmem>>, vector<1x16x128xbf16>
    %173 = vector.shape_cast %172 : vector<1x16x128xbf16> to vector<16x128xbf16>
    %cst_62 = arith.constant dense<0.000000e+00> : vector<16x256xf32>
    %174 = tpu.matmul %173, %171, %cst_62 {dimension_numbers = #tpu.dot_dimension_numbers<[1], [0], [0], [1], [0, 0, 1, 1], [], []>} : vector<16x128xbf16>, vector<128x256xbf16>, vector<16x256xf32> -> vector<16x256xf32>
    %175 = arith.addf %166, %174 : vector<16x256xf32>
    %c12_i32 = arith.constant 12 : i32
    %176 = vector.broadcast %c12_i32 : i32 to vector<128x256xi32>
    %177 = arith.cmpi eq, %66, %176 : vector<128x256xi32>
    %178 = arith.extui %177 : vector<128x256xi1> to vector<128x256xi32>
    %179 = arith.sitofp %178 : vector<128x256xi32> to vector<128x256xf32>
    %180 = arith.truncf %179 : vector<128x256xf32> to vector<128x256xbf16>
    %c12 = arith.constant 12 : index
    %c0_63 = arith.constant 0 : index
    %c0_64 = arith.constant 0 : index
    %181 = vector.load %arg6[%c12, %c0_63, %c0_64] : memref<16x16x128xbf16, #tpu.memory_space<vmem>>, vector<1x16x128xbf16>
    %182 = vector.shape_cast %181 : vector<1x16x128xbf16> to vector<16x128xbf16>
    %cst_65 = arith.constant dense<0.000000e+00> : vector<16x256xf32>
    %183 = tpu.matmul %182, %180, %cst_65 {dimension_numbers = #tpu.dot_dimension_numbers<[1], [0], [0], [1], [0, 0, 1, 1], [], []>} : vector<16x128xbf16>, vector<128x256xbf16>, vector<16x256xf32> -> vector<16x256xf32>
    %184 = arith.addf %175, %183 : vector<16x256xf32>
    %c13_i32 = arith.constant 13 : i32
    %185 = vector.broadcast %c13_i32 : i32 to vector<128x256xi32>
    %186 = arith.cmpi eq, %66, %185 : vector<128x256xi32>
    %187 = arith.extui %186 : vector<128x256xi1> to vector<128x256xi32>
    %188 = arith.sitofp %187 : vector<128x256xi32> to vector<128x256xf32>
    %189 = arith.truncf %188 : vector<128x256xf32> to vector<128x256xbf16>
    %c13 = arith.constant 13 : index
    %c0_66 = arith.constant 0 : index
    %c0_67 = arith.constant 0 : index
    %190 = vector.load %arg6[%c13, %c0_66, %c0_67] : memref<16x16x128xbf16, #tpu.memory_space<vmem>>, vector<1x16x128xbf16>
    %191 = vector.shape_cast %190 : vector<1x16x128xbf16> to vector<16x128xbf16>
    %cst_68 = arith.constant dense<0.000000e+00> : vector<16x256xf32>
    %192 = tpu.matmul %191, %189, %cst_68 {dimension_numbers = #tpu.dot_dimension_numbers<[1], [0], [0], [1], [0, 0, 1, 1], [], []>} : vector<16x128xbf16>, vector<128x256xbf16>, vector<16x256xf32> -> vector<16x256xf32>
    %193 = arith.addf %184, %192 : vector<16x256xf32>
    %c14_i32 = arith.constant 14 : i32
    %194 = vector.broadcast %c14_i32 : i32 to vector<128x256xi32>
    %195 = arith.cmpi eq, %66, %194 : vector<128x256xi32>
    %196 = arith.extui %195 : vector<128x256xi1> to vector<128x256xi32>
    %197 = arith.sitofp %196 : vector<128x256xi32> to vector<128x256xf32>
    %198 = arith.truncf %197 : vector<128x256xf32> to vector<128x256xbf16>
    %c14 = arith.constant 14 : index
    %c0_69 = arith.constant 0 : index
    %c0_70 = arith.constant 0 : index
    %199 = vector.load %arg6[%c14, %c0_69, %c0_70] : memref<16x16x128xbf16, #tpu.memory_space<vmem>>, vector<1x16x128xbf16>
    %200 = vector.shape_cast %199 : vector<1x16x128xbf16> to vector<16x128xbf16>
    %cst_71 = arith.constant dense<0.000000e+00> : vector<16x256xf32>
    %201 = tpu.matmul %200, %198, %cst_71 {dimension_numbers = #tpu.dot_dimension_numbers<[1], [0], [0], [1], [0, 0, 1, 1], [], []>} : vector<16x128xbf16>, vector<128x256xbf16>, vector<16x256xf32> -> vector<16x256xf32>
    %202 = arith.addf %193, %201 : vector<16x256xf32>
    %c15_i32 = arith.constant 15 : i32
    %203 = vector.broadcast %c15_i32 : i32 to vector<128x256xi32>
    %204 = arith.cmpi eq, %66, %203 : vector<128x256xi32>
    %205 = arith.extui %204 : vector<128x256xi1> to vector<128x256xi32>
    %206 = arith.sitofp %205 : vector<128x256xi32> to vector<128x256xf32>
    %207 = arith.truncf %206 : vector<128x256xf32> to vector<128x256xbf16>
    %c15 = arith.constant 15 : index
    %c0_72 = arith.constant 0 : index
    %c0_73 = arith.constant 0 : index
    %208 = vector.load %arg6[%c15, %c0_72, %c0_73] : memref<16x16x128xbf16, #tpu.memory_space<vmem>>, vector<1x16x128xbf16>
    %209 = vector.shape_cast %208 : vector<1x16x128xbf16> to vector<16x128xbf16>
    %cst_74 = arith.constant dense<0.000000e+00> : vector<16x256xf32>
    %210 = tpu.matmul %209, %207, %cst_74 {dimension_numbers = #tpu.dot_dimension_numbers<[1], [0], [0], [1], [0, 0, 1, 1], [], []>} : vector<16x128xbf16>, vector<128x256xbf16>, vector<16x256xf32> -> vector<16x256xf32>
    %211 = arith.addf %202, %210 : vector<16x256xf32>
    %c0_75 = arith.constant 0 : index
    %c0_76 = arith.constant 0 : index
    %212 = vector.load %arg9[%c0_75, %c0_76] : memref<16x256xf32, #tpu.memory_space<vmem>>, vector<16x256xf32>
    tpu.vector_store %arg9[%c0_75, %c0_76], %211 {strides = array<i32>} : memref<16x256xf32, #tpu.memory_space<vmem>>, vector<16x256xf32>,
    %c0_i32_77 = arith.constant 0 : i32
    %213 = arith.cmpi eq, %arg1, %c0_i32_77 : i32
    %214 = arith.extui %213 : i1 to i32
    %c0_i32_78 = arith.constant 0 : i32
    %215 = arith.cmpi ne, %214, %c0_i32_78 : i32
    scf.if %215 {
      %c0_79 = arith.constant 0 : index
      %c0_80 = arith.constant 0 : index
      %216 = vector.load %arg9[%c0_79, %c0_80] : memref<16x256xf32, #tpu.memory_space<vmem>>, vector<16x256xf32>
      %c0_81 = arith.constant 0 : index
      %c0_82 = arith.constant 0 : index
      %217 = vector.load %arg7[%c0_81, %c0_82] : memref<16x1xf32, #tpu.memory_space<vmem>>, vector<16x1xf32>
      %218 = vector.broadcast %217 : vector<16x1xf32> to vector<16x256xf32>
      %219 = arith.addf %216, %218 : vector<16x256xf32>
      %cst_83 = arith.constant 0.000000e+00 : f32
      %220 = vector.broadcast %cst_83 : f32 to vector<16x256xf32>
      %221 = arith.maximumf %219, %220 : vector<16x256xf32>
      %c0_84 = arith.constant 0 : index
      %c0_85 = arith.constant 0 : index
      %222 = vector.load %arg8[%c0_84, %c0_85] : memref<16x256xf32, #tpu.memory_space<vmem>>, vector<16x256xf32>
      tpu.vector_store %arg8[%c0_84, %c0_85], %221 {strides = array<i32>} : memref<16x256xf32, #tpu.memory_space<vmem>>, vector<16x256xf32>,
    } else {
    }
    return
  }
  func.func @transform_0(%arg0: i32, %arg1: i32) -> (i32, i32) {
    %c0_i32 = arith.constant 0 : i32
    %c0_i32_0 = arith.constant 0 : i32
    return %c0_i32, %arg0 : i32, i32
  }
  func.func @transform_1(%arg0: i32, %arg1: i32) -> (i32, i32) {
    %c0_i32 = arith.constant 0 : i32
    %c0_i32_0 = arith.constant 0 : i32
    return %c0_i32, %arg0 : i32, i32
  }
  func.func @transform_2(%arg0: i32, %arg1: i32) -> (i32, i32) {
    %c0_i32 = arith.constant 0 : i32
    %c0_i32_0 = arith.constant 0 : i32
    return %arg1, %c0_i32 : i32, i32
  }
  func.func @transform_3(%arg0: i32, %arg1: i32) -> (i32, i32) {
    %c0_i32 = arith.constant 0 : i32
    %c0_i32_0 = arith.constant 0 : i32
    return %arg1, %c0_i32 : i32, i32
  }
  func.func @transform_4(%arg0: i32, %arg1: i32) -> (i32, i32, i32) {
    %c0_i32 = arith.constant 0 : i32
    %c0_i32_0 = arith.constant 0 : i32
    %c0_i32_1 = arith.constant 0 : i32
    return %c0_i32, %c0_i32_0, %arg1 : i32, i32, i32
  }
  func.func @transform_5(%arg0: i32, %arg1: i32) -> (i32, i32) {
    %c0_i32 = arith.constant 0 : i32
    %c0_i32_0 = arith.constant 0 : i32
    %c0_i32_1 = arith.constant 0 : i32
    return %c0_i32, %c0_i32_0 : i32, i32
  }
  func.func @transform_6(%arg0: i32, %arg1: i32) -> (i32, i32) {
    %c0_i32 = arith.constant 0 : i32
    %c0_i32_0 = arith.constant 0 : i32
    return %c0_i32, %arg0 : i32, i32
  }
}

</mosaic_0001>

<llo_original>
// kernel: tpu_custom_call.1
$region0: #{tpu_custom_call.1}
  #allocation0 [shape = 'u32[]', space=smem, size = 0x4, offset = 0x4, fixed_abs, tag = 'smem constant byte address 0x4 - core index']
  #allocation1 [shape = 'u32[72,128]{1,0:T(1,128)}', space=vmem, size = 0x9000, scoped, tag = 'internal scratch']
  #allocation2 [shape = 'f32[16,256]{1,0:T(8,128)}', space=vmem, size = 0x4000, scoped, tag = 'scratch operand']
  %s0 = inlined_call_operand.vmem [shape: f32[2,256], index: 0, kind: input, shape index: {}]
  %s1 = inlined_call_operand.vmem [shape: s32[1,256], index: 1, kind: input, shape index: {}]
  %s2 = inlined_call_operand.vmem [shape: f32[128,2], index: 2, kind: input, shape index: {}]
  %s3 = inlined_call_operand.vmem [shape: s32[128,1], index: 3, kind: input, shape index: {}]
  %s4 = inlined_call_operand.vmem [shape: bf16[16,16,128], index: 4, kind: input, shape index: {}]
  %s5 = inlined_call_operand.vmem [shape: f32[16,1], index: 5, kind: input, shape index: {}]
  %s6 = inlined_call_operand.hbm [shape: f32[16,256], index: 6, kind: output, shape index: {}]
  %s7 = sld [smem:[#allocation0]]
  $region42: #{tpu_custom_call.1} parent=0
    _
  %s9 = ssub.s32 1, %s7
  %s10 = scalar_select 0, %s9, %s7
  $region1: #{tpu_custom_call.1} parent=0
    #allocation3 [shape = 'u8[16384]{0}', space=vmem, size = 0x4000, scoped, tag = 'output window, operand 0, single buffered']
    #allocation4 [shape = 's32[1]{0}', space=sflag, size = 0x4, scoped, tag = 'scoped memory for tpu_custom_call.1']
    %11 = vsyncpa [#allocation4], 0
    // Predicated region
    $region2: #{tpu_custom_call.1} parent=1 // pred_check
      _
    $region3: #{tpu_custom_call.1} parent=1 // pred_check_branch
      %13 = sbr.rel (0) target = $region5
    $region4: #{tpu_custom_call.1} parent=1 // pred_region
      _
    $region5: #{tpu_custom_call.1} parent=1 // pred_fallthru
      _
    // Predicated region
    $region6: #{tpu_custom_call.1} parent=1 // pred_check
      _
    $region7: #{tpu_custom_call.1} parent=1 // pred_check_branch
      %15 = sbr.rel (0) target = $region9
    $region8: #{tpu_custom_call.1} parent=1 // pred_region
      _
    $region9: #{tpu_custom_call.1} parent=1 // pred_fallthru
      _
    // Predicated region
    $region10: #{tpu_custom_call.1} parent=1 // pred_check
      _
    $region11: #{tpu_custom_call.1} parent=1 // pred_check_branch
      %17 = sbr.rel (0) target = $region13
    $region12: #{tpu_custom_call.1} parent=1 // pred_region
      _
    $region13: #{tpu_custom_call.1} parent=1 // pred_fallthru
      _
    // Predicated region
    $region14: #{tpu_custom_call.1} parent=1 // pred_check
      _
    $region15: #{tpu_custom_call.1} parent=1 // pred_check_branch
      %19 = sbr.rel (0) target = $region17
    $region16: #{tpu_custom_call.1} parent=1 // pred_region
      _
    $region17: #{tpu_custom_call.1} parent=1 // pred_fallthru
      _
    // Predicated region
    $region18: #{tpu_custom_call.1} parent=1 // pred_check
      _
    $region19: #{tpu_custom_call.1} parent=1 // pred_check_branch
      %21 = sbr.rel (0) target = $region21
    $region20: #{tpu_custom_call.1} parent=1 // pred_region
      _
    $region21: #{tpu_custom_call.1} parent=1 // pred_fallthru
      _
    // Predicated region
    $region22: #{tpu_custom_call.1} parent=1 // pred_check
      _
    $region23: #{tpu_custom_call.1} parent=1 // pred_check_branch
      %23 = sbr.rel (0) target = $region25
    $region24: #{tpu_custom_call.1} parent=1 // pred_region
      _
    $region25: #{tpu_custom_call.1} parent=1 // pred_fallthru
      _
    %p24 = scmp.eq.s32.totalorder 0, 0
    // Predicated region
    $region26: #{tpu_custom_call.1} parent=1 // pred_check
      %p25 = pneg %p24
    $region27: #{tpu_custom_call.1} parent=1 // pred_check_branch
      %27 = sbr.rel (%p25) target = $region29
    $region28: #{tpu_custom_call.1} parent=1 // pred_region
      %28 = vst [vmem:[#allocation2] sm:$0xff] 0.0
      %29 = vst [vmem:[#allocation2 + $0x8] sm:$0xff] 0.0
      %30 = vst [vmem:[#allocation2 + $0x10] sm:$0xff] 0.0
      %31 = vst [vmem:[#allocation2 + $0x18] sm:$0xff] 0.0
    $region29: #{tpu_custom_call.1} parent=1 // pred_fallthru
      _
    %v32 = vld [vmem:[%s0] ss:$2 sm:$0x3]
    %s33 = scalar_lea.vmem %s0, 1
    %v34 = vld [vmem:[%s33] ss:$2 sm:$0x3]
    %v35 = vld [vmem:[%s2] sm:$0xff]
    %v36 = vld [vmem:[%s2 + $0x8] sm:$0xff]
    %v37 = vld [vmem:[%s2 + $0x10] sm:$0xff]
    %v38 = vld [vmem:[%s2 + $0x18] sm:$0xff]
    %v39 = vld [vmem:[%s2 + $0x20] sm:$0xff]
    %v40 = vld [vmem:[%s2 + $0x28] sm:$0xff]
    %v41 = vld [vmem:[%s2 + $0x30] sm:$0xff]
    %v42 = vld [vmem:[%s2 + $0x38] sm:$0xff]
    %v43 = vld [vmem:[%s2 + $0x40] sm:$0xff]
    %v44 = vld [vmem:[%s2 + $0x48] sm:$0xff]
    %v45 = vld [vmem:[%s2 + $0x50] sm:$0xff]
    %v46 = vld [vmem:[%s2 + $0x58] sm:$0xff]
    %v47 = vld [vmem:[%s2 + $0x60] sm:$0xff]
    %v48 = vld [vmem:[%s2 + $0x68] sm:$0xff]
    %v49 = vld [vmem:[%s2 + $0x70] sm:$0xff]
    %v50 = vld [vmem:[%s2 + $0x78] sm:$0xff]
    %52 = vset.pattern.permute.xlu0 0
    %53 = vperm.xlu0 %52, %v35
    %v54 = vpop.permute.xlu0 %53
    %57 = vset.pattern.permute.xlu0 0
    %58 = vperm.xlu0 %57, %v36
    %v59 = vpop.permute.xlu0 %58
    %62 = vset.pattern.permute.xlu0 0
    %63 = vperm.xlu0 %62, %v37
    %v64 = vpop.permute.xlu0 %63
    %67 = vset.pattern.permute.xlu0 0
    %68 = vperm.xlu0 %67, %v38
    %v69 = vpop.permute.xlu0 %68
    %72 = vset.pattern.permute.xlu0 0
    %73 = vperm.xlu0 %72, %v39
    %v74 = vpop.permute.xlu0 %73
    %77 = vset.pattern.permute.xlu0 0
    %78 = vperm.xlu0 %77, %v40
    %v79 = vpop.permute.xlu0 %78
    %82 = vset.pattern.permute.xlu0 0
    %83 = vperm.xlu0 %82, %v41
    %v84 = vpop.permute.xlu0 %83
    %87 = vset.pattern.permute.xlu0 0
    %88 = vperm.xlu0 %87, %v42
    %v89 = vpop.permute.xlu0 %88
    %92 = vset.pattern.permute.xlu0 0
    %93 = vperm.xlu0 %92, %v43
    %v94 = vpop.permute.xlu0 %93
    %97 = vset.pattern.permute.xlu0 0
    %98 = vperm.xlu0 %97, %v44
    %v99 = vpop.permute.xlu0 %98
    %102 = vset.pattern.permute.xlu0 0
    %103 = vperm.xlu0 %102, %v45
    %v104 = vpop.permute.xlu0 %103
    %107 = vset.pattern.permute.xlu0 0
    %108 = vperm.xlu0 %107, %v46
    %v109 = vpop.permute.xlu0 %108
    %112 = vset.pattern.permute.xlu0 0
    %113 = vperm.xlu0 %112, %v47
    %v114 = vpop.permute.xlu0 %113
    %117 = vset.pattern.permute.xlu0 0
    %118 = vperm.xlu0 %117, %v48
    %v119 = vpop.permute.xlu0 %118
    %122 = vset.pattern.permute.xlu0 0
    %123 = vperm.xlu0 %122, %v49
    %v124 = vpop.permute.xlu0 %123
    %127 = vset.pattern.permute.xlu0 0
    %128 = vperm.xlu0 %127, %v50
    %v129 = vpop.permute.xlu0 %128
    %v132 = vperm.slane %v32, 0
    %v133 = vperm.slane %v32, 1
    %v136 = vsub.f32 %v54, %v132
    %v137 = vsub.f32 %v54, %v133
    %v138 = vsub.f32 %v59, %v132
    %v139 = vsub.f32 %v59, %v133
    %v140 = vsub.f32 %v64, %v132
    %v141 = vsub.f32 %v64, %v133
    %v142 = vsub.f32 %v69, %v132
    %v143 = vsub.f32 %v69, %v133
    %v144 = vsub.f32 %v74, %v132
    %v145 = vsub.f32 %v74, %v133
    %v146 = vsub.f32 %v79, %v132
    %v147 = vsub.f32 %v79, %v133
    %v148 = vsub.f32 %v84, %v132
    %v149 = vsub.f32 %v84, %v133
    %v150 = vsub.f32 %v89, %v132
    %v151 = vsub.f32 %v89, %v133
    %v152 = vsub.f32 %v94, %v132
    %v153 = vsub.f32 %v94, %v133
    %v154 = vsub.f32 %v99, %v132
    %v155 = vsub.f32 %v99, %v133
    %v156 = vsub.f32 %v104, %v132
    %v157 = vsub.f32 %v104, %v133
    %v158 = vsub.f32 %v109, %v132
    %v159 = vsub.f32 %v109, %v133
    %v160 = vsub.f32 %v114, %v132
    %v161 = vsub.f32 %v114, %v133
    %v162 = vsub.f32 %v119, %v132
    %v163 = vsub.f32 %v119, %v133
    %v164 = vsub.f32 %v124, %v132
    %v165 = vsub.f32 %v124, %v133
    %v166 = vsub.f32 %v129, %v132
    %v167 = vsub.f32 %v129, %v133
    %v168 = vmul.f32 %v136, 0.75
    %v169 = vmul.f32 %v137, 0.75
    %v170 = vmul.f32 %v138, 0.75
    %v171 = vmul.f32 %v139, 0.75
    %v172 = vmul.f32 %v140, 0.75
    %v173 = vmul.f32 %v141, 0.75
    %v174 = vmul.f32 %v142, 0.75
    %v175 = vmul.f32 %v143, 0.75
    %v176 = vmul.f32 %v144, 0.75
    %v177 = vmul.f32 %v145, 0.75
    %v178 = vmul.f32 %v146, 0.75
    %v179 = vmul.f32 %v147, 0.75
    %v180 = vmul.f32 %v148, 0.75
    %v181 = vmul.f32 %v149, 0.75
    %v182 = vmul.f32 %v150, 0.75
    %v183 = vmul.f32 %v151, 0.75
    %v184 = vmul.f32 %v152, 0.75
    %v185 = vmul.f32 %v153, 0.75
    %v186 = vmul.f32 %v154, 0.75
    %v187 = vmul.f32 %v155, 0.75
    %v188 = vmul.f32 %v156, 0.75
    %v189 = vmul.f32 %v157, 0.75
    %v190 = vmul.f32 %v158, 0.75
    %v191 = vmul.f32 %v159, 0.75
    %v192 = vmul.f32 %v160, 0.75
    %v193 = vmul.f32 %v161, 0.75
    %v194 = vmul.f32 %v162, 0.75
    %v195 = vmul.f32 %v163, 0.75
    %v196 = vmul.f32 %v164, 0.75
    %v197 = vmul.f32 %v165, 0.75
    %v198 = vmul.f32 %v166, 0.75
    %v199 = vmul.f32 %v167, 0.75
    %v200 = vmax.f32 %v168, -2.0
    %v201 = vmax.f32 %v169, -2.0
    %v202 = vmax.f32 %v170, -2.0
    %v203 = vmax.f32 %v171, -2.0
    %v204 = vmax.f32 %v172, -2.0
    %v205 = vmax.f32 %v173, -2.0
    %v206 = vmax.f32 %v174, -2.0
    %v207 = vmax.f32 %v175, -2.0
    %v208 = vmax.f32 %v176, -2.0
    %v209 = vmax.f32 %v177, -2.0
    %v210 = vmax.f32 %v178, -2.0
    %v211 = vmax.f32 %v179, -2.0
    %v212 = vmax.f32 %v180, -2.0
    %v213 = vmax.f32 %v181, -2.0
    %v214 = vmax.f32 %v182, -2.0
    %v215 = vmax.f32 %v183, -2.0
    %v216 = vmax.f32 %v184, -2.0
    %v217 = vmax.f32 %v185, -2.0
    %v218 = vmax.f32 %v186, -2.0
    %v219 = vmax.f32 %v187, -2.0
    %v220 = vmax.f32 %v188, -2.0
    %v221 = vmax.f32 %v189, -2.0
    %v222 = vmax.f32 %v190, -2.0
    %v223 = vmax.f32 %v191, -2.0
    %v224 = vmax.f32 %v192, -2.0
    %v225 = vmax.f32 %v193, -2.0
    %v226 = vmax.f32 %v194, -2.0
    %v227 = vmax.f32 %v195, -2.0
    %v228 = vmax.f32 %v196, -2.0
    %v229 = vmax.f32 %v197, -2.0
    %v230 = vmax.f32 %v198, -2.0
    %v231 = vmax.f32 %v199, -2.0
    %v232 = vmin.f32 %v200, 2.0
    %v233 = vmin.f32 %v201, 2.0
    %v234 = vmin.f32 %v202, 2.0
    %v235 = vmin.f32 %v203, 2.0
    %v236 = vmin.f32 %v204, 2.0
    %v237 = vmin.f32 %v205, 2.0
    %v238 = vmin.f32 %v206, 2.0
    %v239 = vmin.f32 %v207, 2.0
    %v240 = vmin.f32 %v208, 2.0
    %v241 = vmin.f32 %v209, 2.0
    %v242 = vmin.f32 %v210, 2.0
    %v243 = vmin.f32 %v211, 2.0
    %v244 = vmin.f32 %v212, 2.0
    %v245 = vmin.f32 %v213, 2.0
    %v246 = vmin.f32 %v214, 2.0
    %v247 = vmin.f32 %v215, 2.0
    %v248 = vmin.f32 %v216, 2.0
    %v249 = vmin.f32 %v217, 2.0
    %v250 = vmin.f32 %v218, 2.0
    %v251 = vmin.f32 %v219, 2.0
    %v252 = vmin.f32 %v220, 2.0
    %v253 = vmin.f32 %v221, 2.0
    %v254 = vmin.f32 %v222, 2.0
    %v255 = vmin.f32 %v223, 2.0
    %v256 = vmin.f32 %v224, 2.0
    %v257 = vmin.f32 %v225, 2.0
    %v258 = vmin.f32 %v226, 2.0
    %v259 = vmin.f32 %v227, 2.0
    %v260 = vmin.f32 %v228, 2.0
    %v261 = vmin.f32 %v229, 2.0
    %v262 = vmin.f32 %v230, 2.0
    %v263 = vmin.f32 %v231, 2.0
    %264 = vset.pattern.permute.xlu0 1
    %265 = vperm.xlu0 %264, %v35
    %v266 = vpop.permute.xlu0 %265
    %268 = vset.pattern.permute.xlu0 1
    %269 = vperm.xlu0 %268, %v36
    %v270 = vpop.permute.xlu0 %269
    %272 = vset.pattern.permute.xlu0 1
    %273 = vperm.xlu0 %272, %v37
    %v274 = vpop.permute.xlu0 %273
    %276 = vset.pattern.permute.xlu0 1
    %277 = vperm.xlu0 %276, %v38
    %v278 = vpop.permute.xlu0 %277
    %280 = vset.pattern.permute.xlu0 1
    %281 = vperm.xlu0 %280, %v39
    %v282 = vpop.permute.xlu0 %281
    %284 = vset.pattern.permute.xlu0 1
    %285 = vperm.xlu0 %284, %v40
    %v286 = vpop.permute.xlu0 %285
    %288 = vset.pattern.permute.xlu0 1
    %289 = vperm.xlu0 %288, %v41
    %v290 = vpop.permute.xlu0 %289
    %292 = vset.pattern.permute.xlu0 1
    %293 = vperm.xlu0 %292, %v42
    %v294 = vpop.permute.xlu0 %293
    %296 = vset.pattern.permute.xlu0 1
    %297 = vperm.xlu0 %296, %v43
    %v298 = vpop.permute.xlu0 %297
    %300 = vset.pattern.permute.xlu0 1
    %301 = vperm.xlu0 %300, %v44
    %v302 = vpop.permute.xlu0 %301
    %304 = vset.pattern.permute.xlu0 1
    %305 = vperm.xlu0 %304, %v45
    %v306 = vpop.permute.xlu0 %305
    %308 = vset.pattern.permute.xlu0 1
    %309 = vperm.xlu0 %308, %v46
    %v310 = vpop.permute.xlu0 %309
    %312 = vset.pattern.permute.xlu0 1
    %313 = vperm.xlu0 %312, %v47
    %v314 = vpop.permute.xlu0 %313
    %316 = vset.pattern.permute.xlu0 1
    %317 = vperm.xlu0 %316, %v48
    %v318 = vpop.permute.xlu0 %317
    %320 = vset.pattern.permute.xlu0 1
    %321 = vperm.xlu0 %320, %v49
    %v322 = vpop.permute.xlu0 %321
    %324 = vset.pattern.permute.xlu0 1
    %325 = vperm.xlu0 %324, %v50
    %v326 = vpop.permute.xlu0 %325
    %v329 = vperm.slane %v34, 0
    %v330 = vperm.slane %v34, 1
    %v333 = vsub.f32 %v266, %v329
    %v334 = vsub.f32 %v266, %v330
    %v335 = vsub.f32 %v270, %v329
    %v336 = vsub.f32 %v270, %v330
    %v337 = vsub.f32 %v274, %v329
    %v338 = vsub.f32 %v274, %v330
    %v339 = vsub.f32 %v278, %v329
    %v340 = vsub.f32 %v278, %v330
    %v341 = vsub.f32 %v282, %v329
    %v342 = vsub.f32 %v282, %v330
    %v343 = vsub.f32 %v286, %v329
    %v344 = vsub.f32 %v286, %v330
    %v345 = vsub.f32 %v290, %v329
    %v346 = vsub.f32 %v290, %v330
    %v347 = vsub.f32 %v294, %v329
    %v348 = vsub.f32 %v294, %v330
    %v349 = vsub.f32 %v298, %v329
    %v350 = vsub.f32 %v298, %v330
    %v351 = vsub.f32 %v302, %v329
    %v352 = vsub.f32 %v302, %v330
    %v353 = vsub.f32 %v306, %v329
    %v354 = vsub.f32 %v306, %v330
    %v355 = vsub.f32 %v310, %v329
    %v356 = vsub.f32 %v310, %v330
    %v357 = vsub.f32 %v314, %v329
    %v358 = vsub.f32 %v314, %v330
    %v359 = vsub.f32 %v318, %v329
    %v360 = vsub.f32 %v318, %v330
    %v361 = vsub.f32 %v322, %v329
    %v362 = vsub.f32 %v322, %v330
    %v363 = vsub.f32 %v326, %v329
    %v364 = vsub.f32 %v326, %v330
    %v365 = vmul.f32 %v333, 0.75
    %v366 = vmul.f32 %v334, 0.75
    %v367 = vmul.f32 %v335, 0.75
    %v368 = vmul.f32 %v336, 0.75
    %v369 = vmul.f32 %v337, 0.75
    %v370 = vmul.f32 %v338, 0.75
    %v371 = vmul.f32 %v339, 0.75
    %v372 = vmul.f32 %v340, 0.75
    %v373 = vmul.f32 %v341, 0.75
    %v374 = vmul.f32 %v342, 0.75
    %v375 = vmul.f32 %v343, 0.75
    %v376 = vmul.f32 %v344, 0.75
    %v377 = vmul.f32 %v345, 0.75
    %v378 = vmul.f32 %v346, 0.75
    %v379 = vmul.f32 %v347, 0.75
    %v380 = vmul.f32 %v348, 0.75
    %v381 = vmul.f32 %v349, 0.75
    %v382 = vmul.f32 %v350, 0.75
    %v383 = vmul.f32 %v351, 0.75
    %v384 = vmul.f32 %v352, 0.75
    %v385 = vmul.f32 %v353, 0.75
    %v386 = vmul.f32 %v354, 0.75
    %v387 = vmul.f32 %v355, 0.75
    %v388 = vmul.f32 %v356, 0.75
    %v389 = vmul.f32 %v357, 0.75
    %v390 = vmul.f32 %v358, 0.75
    %v391 = vmul.f32 %v359, 0.75
    %v392 = vmul.f32 %v360, 0.75
    %v393 = vmul.f32 %v361, 0.75
    %v394 = vmul.f32 %v362, 0.75
    %v395 = vmul.f32 %v363, 0.75
    %v396 = vmul.f32 %v364, 0.75
    %v397 = vmax.f32 %v365, -2.0
    %v398 = vmax.f32 %v366, -2.0
    %v399 = vmax.f32 %v367, -2.0
    %v400 = vmax.f32 %v368, -2.0
    %v401 = vmax.f32 %v369, -2.0
    %v402 = vmax.f32 %v370, -2.0
    %v403 = vmax.f32 %v371, -2.0
    %v404 = vmax.f32 %v372, -2.0
    %v405 = vmax.f32 %v373, -2.0
    %v406 = vmax.f32 %v374, -2.0
    %v407 = vmax.f32 %v375, -2.0
    %v408 = vmax.f32 %v376, -2.0
    %v409 = vmax.f32 %v377, -2.0
    %v410 = vmax.f32 %v378, -2.0
    %v411 = vmax.f32 %v379, -2.0
    %v412 = vmax.f32 %v380, -2.0
    %v413 = vmax.f32 %v381, -2.0
    %v414 = vmax.f32 %v382, -2.0
    %v415 = vmax.f32 %v383, -2.0
    %v416 = vmax.f32 %v384, -2.0
    %v417 = vmax.f32 %v385, -2.0
    %v418 = vmax.f32 %v386, -2.0
    %v419 = vmax.f32 %v387, -2.0
    %v420 = vmax.f32 %v388, -2.0
    %v421 = vmax.f32 %v389, -2.0
    %v422 = vmax.f32 %v390, -2.0
    %v423 = vmax.f32 %v391, -2.0
    %v424 = vmax.f32 %v392, -2.0
    %v425 = vmax.f32 %v393, -2.0
    %v426 = vmax.f32 %v394, -2.0
    %v427 = vmax.f32 %v395, -2.0
    %v428 = vmax.f32 %v396, -2.0
    %v429 = vmin.f32 %v397, 2.0
    %v430 = vmin.f32 %v398, 2.0
    %v431 = vmin.f32 %v399, 2.0
    %v432 = vmin.f32 %v400, 2.0
    %v433 = vmin.f32 %v401, 2.0
    %v434 = vmin.f32 %v402, 2.0
    %v435 = vmin.f32 %v403, 2.0
    %v436 = vmin.f32 %v404, 2.0
    %v437 = vmin.f32 %v405, 2.0
    %v438 = vmin.f32 %v406, 2.0
    %v439 = vmin.f32 %v407, 2.0
    %v440 = vmin.f32 %v408, 2.0
    %v441 = vmin.f32 %v409, 2.0
    %v442 = vmin.f32 %v410, 2.0
    %v443 = vmin.f32 %v411, 2.0
    %v444 = vmin.f32 %v412, 2.0
    %v445 = vmin.f32 %v413, 2.0
    %v446 = vmin.f32 %v414, 2.0
    %v447 = vmin.f32 %v415, 2.0
    %v448 = vmin.f32 %v416, 2.0
    %v449 = vmin.f32 %v417, 2.0
    %v450 = vmin.f32 %v418, 2.0
    %v451 = vmin.f32 %v419, 2.0
    %v452 = vmin.f32 %v420, 2.0
    %v453 = vmin.f32 %v421, 2.0
    %v454 = vmin.f32 %v422, 2.0
    %v455 = vmin.f32 %v423, 2.0
    %v456 = vmin.f32 %v424, 2.0
    %v457 = vmin.f32 %v425, 2.0
    %v458 = vmin.f32 %v426, 2.0
    %v459 = vmin.f32 %v427, 2.0
    %v460 = vmin.f32 %v428, 2.0
    %v461 = vadd.f32 %v232, 2.0
    %v462 = vadd.f32 %v233, 2.0
    %v463 = vadd.f32 %v234, 2.0
    %v464 = vadd.f32 %v235, 2.0
    %v465 = vadd.f32 %v236, 2.0
    %v466 = vadd.f32 %v237, 2.0
    %v467 = vadd.f32 %v238, 2.0
    %v468 = vadd.f32 %v239, 2.0
    %v469 = vadd.f32 %v240, 2.0
    %v470 = vadd.f32 %v241, 2.0
    %v471 = vadd.f32 %v242, 2.0
    %v472 = vadd.f32 %v243, 2.0
    %v473 = vadd.f32 %v244, 2.0
    %v474 = vadd.f32 %v245, 2.0
    %v475 = vadd.f32 %v246, 2.0
    %v476 = vadd.f32 %v247, 2.0
    %v477 = vadd.f32 %v248, 2.0
    %v478 = vadd.f32 %v249, 2.0
    %v479 = vadd.f32 %v250, 2.0
    %v480 = vadd.f32 %v251, 2.0
    %v481 = vadd.f32 %v252, 2.0
    %v482 = vadd.f32 %v253, 2.0
    %v483 = vadd.f32 %v254, 2.0
    %v484 = vadd.f32 %v255, 2.0
    %v485 = vadd.f32 %v256, 2.0
    %v486 = vadd.f32 %v257, 2.0
    %v487 = vadd.f32 %v258, 2.0
    %v488 = vadd.f32 %v259, 2.0
    %v489 = vadd.f32 %v260, 2.0
    %v490 = vadd.f32 %v261, 2.0
    %v491 = vadd.f32 %v262, 2.0
    %v492 = vadd.f32 %v263, 2.0
    %v493 = vcvt.f32.s32.to.zero.pseudo %v461
    %v494 = vcvt.f32.s32.to.zero.pseudo %v462
    %v495 = vcvt.f32.s32.to.zero.pseudo %v463
    %v496 = vcvt.f32.s32.to.zero.pseudo %v464
    %v497 = vcvt.f32.s32.to.zero.pseudo %v465
    %v498 = vcvt.f32.s32.to.zero.pseudo %v466
    %v499 = vcvt.f32.s32.to.zero.pseudo %v467
    %v500 = vcvt.f32.s32.to.zero.pseudo %v468
    %v501 = vcvt.f32.s32.to.zero.pseudo %v469
    %v502 = vcvt.f32.s32.to.zero.pseudo %v470
    %v503 = vcvt.f32.s32.to.zero.pseudo %v471
    %v504 = vcvt.f32.s32.to.zero.pseudo %v472
    %v505 = vcvt.f32.s32.to.zero.pseudo %v473
    %v506 = vcvt.f32.s32.to.zero.pseudo %v474
    %v507 = vcvt.f32.s32.to.zero.pseudo %v475
    %v508 = vcvt.f32.s32.to.zero.pseudo %v476
    %v509 = vcvt.f32.s32.to.zero.pseudo %v477
    %v510 = vcvt.f32.s32.to.zero.pseudo %v478
    %v511 = vcvt.f32.s32.to.zero.pseudo %v479
    %v512 = vcvt.f32.s32.to.zero.pseudo %v480
    %v513 = vcvt.f32.s32.to.zero.pseudo %v481
    %v514 = vcvt.f32.s32.to.zero.pseudo %v482
    %v515 = vcvt.f32.s32.to.zero.pseudo %v483
    %v516 = vcvt.f32.s32.to.zero.pseudo %v484
    %v517 = vcvt.f32.s32.to.zero.pseudo %v485
    %v518 = vcvt.f32.s32.to.zero.pseudo %v486
    %v519 = vcvt.f32.s32.to.zero.pseudo %v487
    %v520 = vcvt.f32.s32.to.zero.pseudo %v488
    %v521 = vcvt.f32.s32.to.zero.pseudo %v489
    %v522 = vcvt.f32.s32.to.zero.pseudo %v490
    %v523 = vcvt.f32.s32.to.zero.pseudo %v491
    %v524 = vcvt.f32.s32.to.zero.pseudo %v492
    %v525 = vadd.f32 %v429, 2.0
    %v526 = vadd.f32 %v430, 2.0
    %v527 = vadd.f32 %v431, 2.0
    %v528 = vadd.f32 %v432, 2.0
    %v529 = vadd.f32 %v433, 2.0
    %v530 = vadd.f32 %v434, 2.0
    %v531 = vadd.f32 %v435, 2.0
    %v532 = vadd.f32 %v436, 2.0
    %v533 = vadd.f32 %v437, 2.0
    %v534 = vadd.f32 %v438, 2.0
    %v535 = vadd.f32 %v439, 2.0
    %v536 = vadd.f32 %v440, 2.0
    %v537 = vadd.f32 %v441, 2.0
    %v538 = vadd.f32 %v442, 2.0
    %v539 = vadd.f32 %v443, 2.0
    %v540 = vadd.f32 %v444, 2.0
    %v541 = vadd.f32 %v445, 2.0
    %v542 = vadd.f32 %v446, 2.0
    %v543 = vadd.f32 %v447, 2.0
    %v544 = vadd.f32 %v448, 2.0
    %v545 = vadd.f32 %v449, 2.0
    %v546 = vadd.f32 %v450, 2.0
    %v547 = vadd.f32 %v451, 2.0
    %v548 = vadd.f32 %v452, 2.0
    %v549 = vadd.f32 %v453, 2.0
    %v550 = vadd.f32 %v454, 2.0
    %v551 = vadd.f32 %v455, 2.0
    %v552 = vadd.f32 %v456, 2.0
    %v553 = vadd.f32 %v457, 2.0
    %v554 = vadd.f32 %v458, 2.0
    %v555 = vadd.f32 %v459, 2.0
    %v556 = vadd.f32 %v460, 2.0
    %v557 = vcvt.f32.s32.to.zero.pseudo %v525
    %v558 = vcvt.f32.s32.to.zero.pseudo %v526
    %v559 = vcvt.f32.s32.to.zero.pseudo %v527
    %v560 = vcvt.f32.s32.to.zero.pseudo %v528
    %v561 = vcvt.f32.s32.to.zero.pseudo %v529
    %v562 = vcvt.f32.s32.to.zero.pseudo %v530
    %v563 = vcvt.f32.s32.to.zero.pseudo %v531
    %v564 = vcvt.f32.s32.to.zero.pseudo %v532
    %v565 = vcvt.f32.s32.to.zero.pseudo %v533
    %v566 = vcvt.f32.s32.to.zero.pseudo %v534
    %v567 = vcvt.f32.s32.to.zero.pseudo %v535
    %v568 = vcvt.f32.s32.to.zero.pseudo %v536
    %v569 = vcvt.f32.s32.to.zero.pseudo %v537
    %v570 = vcvt.f32.s32.to.zero.pseudo %v538
    %v571 = vcvt.f32.s32.to.zero.pseudo %v539
    %v572 = vcvt.f32.s32.to.zero.pseudo %v540
    %v573 = vcvt.f32.s32.to.zero.pseudo %v541
    %v574 = vcvt.f32.s32.to.zero.pseudo %v542
    %v575 = vcvt.f32.s32.to.zero.pseudo %v543
    %v576 = vcvt.f32.s32.to.zero.pseudo %v544
    %v577 = vcvt.f32.s32.to.zero.pseudo %v545
    %v578 = vcvt.f32.s32.to.zero.pseudo %v546
    %v579 = vcvt.f32.s32.to.zero.pseudo %v547
    %v580 = vcvt.f32.s32.to.zero.pseudo %v548
    %v581 = vcvt.f32.s32.to.zero.pseudo %v549
    %v582 = vcvt.f32.s32.to.zero.pseudo %v550
    %v583 = vcvt.f32.s32.to.zero.pseudo %v551
    %v584 = vcvt.f32.s32.to.zero.pseudo %v552
    %v585 = vcvt.f32.s32.to.zero.pseudo %v553
    %v586 = vcvt.f32.s32.to.zero.pseudo %v554
    %v587 = vcvt.f32.s32.to.zero.pseudo %v555
    %v588 = vcvt.f32.s32.to.zero.pseudo %v556
    %v589 = vmul.u32 %v557, 4
    %v590 = vmul.u32 %v558, 4
    %v591 = vmul.u32 %v559, 4
    %v592 = vmul.u32 %v560, 4
    %v593 = vmul.u32 %v561, 4
    %v594 = vmul.u32 %v562, 4
    %v595 = vmul.u32 %v563, 4
    %v596 = vmul.u32 %v564, 4
    %v597 = vmul.u32 %v565, 4
    %v598 = vmul.u32 %v566, 4
    %v599 = vmul.u32 %v567, 4
    %v600 = vmul.u32 %v568, 4
    %v601 = vmul.u32 %v569, 4
    %v602 = vmul.u32 %v570, 4
    %v603 = vmul.u32 %v571, 4
    %v604 = vmul.u32 %v572, 4
    %v605 = vmul.u32 %v573, 4
    %v606 = vmul.u32 %v574, 4
    %v607 = vmul.u32 %v575, 4
    %v608 = vmul.u32 %v576, 4
    %v609 = vmul.u32 %v577, 4
    %v610 = vmul.u32 %v578, 4
    %v611 = vmul.u32 %v579, 4
    %v612 = vmul.u32 %v580, 4
    %v613 = vmul.u32 %v581, 4
    %v614 = vmul.u32 %v582, 4
    %v615 = vmul.u32 %v583, 4
    %v616 = vmul.u32 %v584, 4
    %v617 = vmul.u32 %v585, 4
    %v618 = vmul.u32 %v586, 4
    %v619 = vmul.u32 %v587, 4
    %v620 = vmul.u32 %v588, 4
    %v621 = vadd.s32 %v589, %v493
    %v622 = vadd.s32 %v590, %v494
    %v623 = vadd.s32 %v591, %v495
    %v624 = vadd.s32 %v592, %v496
    %v625 = vadd.s32 %v593, %v497
    %v626 = vadd.s32 %v594, %v498
    %v627 = vadd.s32 %v595, %v499
    %v628 = vadd.s32 %v596, %v500
    %v629 = vadd.s32 %v597, %v501
    %v630 = vadd.s32 %v598, %v502
    %v631 = vadd.s32 %v599, %v503
    %v632 = vadd.s32 %v600, %v504
    %v633 = vadd.s32 %v601, %v505
    %v634 = vadd.s32 %v602, %v506
    %v635 = vadd.s32 %v603, %v507
    %v636 = vadd.s32 %v604, %v508
    %v637 = vadd.s32 %v605, %v509
    %v638 = vadd.s32 %v606, %v510
    %v639 = vadd.s32 %v607, %v511
    %v640 = vadd.s32 %v608, %v512
    %v641 = vadd.s32 %v609, %v513
    %v642 = vadd.s32 %v610, %v514
    %v643 = vadd.s32 %v611, %v515
    %v644 = vadd.s32 %v612, %v516
    %v645 = vadd.s32 %v613, %v517
    %v646 = vadd.s32 %v614, %v518
    %v647 = vadd.s32 %v615, %v519
    %v648 = vadd.s32 %v616, %v520
    %v649 = vadd.s32 %v617, %v521
    %v650 = vadd.s32 %v618, %v522
    %v651 = vadd.s32 %v619, %v523
    %v652 = vadd.s32 %v620, %v524
    %v653 = vld [vmem:[%s1] sm:$0x3]
    %v654 = vld [vmem:[%s3] sm:$0xff]
    %v655 = vld [vmem:[%s3 + $0x8] sm:$0xff]
    %v656 = vld [vmem:[%s3 + $0x10] sm:$0xff]
    %v657 = vld [vmem:[%s3 + $0x18] sm:$0xff]
    %v658 = vld [vmem:[%s3 + $0x20] sm:$0xff]
    %v659 = vld [vmem:[%s3 + $0x28] sm:$0xff]
    %v660 = vld [vmem:[%s3 + $0x30] sm:$0xff]
    %v661 = vld [vmem:[%s3 + $0x38] sm:$0xff]
    %v662 = vld [vmem:[%s3 + $0x40] sm:$0xff]
    %v663 = vld [vmem:[%s3 + $0x48] sm:$0xff]
    %v664 = vld [vmem:[%s3 + $0x50] sm:$0xff]
    %v665 = vld [vmem:[%s3 + $0x58] sm:$0xff]
    %v666 = vld [vmem:[%s3 + $0x60] sm:$0xff]
    %v667 = vld [vmem:[%s3 + $0x68] sm:$0xff]
    %v668 = vld [vmem:[%s3 + $0x70] sm:$0xff]
    %v669 = vld [vmem:[%s3 + $0x78] sm:$0xff]
    %s670 = smul.u32 0, 256
    %v671 = vlaneseq
    %v672 = vand.u32 %v671, 127
    %v673 = vadd.s32 %v672, 128
    %v674 = vstv %s670
    %v675 = vadd.s32 %v674, %v672
    %v676 = vadd.s32 %v674, %v673
    %s677 = smul.u32 0, 128
    %v678 = vlaneseq
    %v679 = vshrl.u32 %v678, 7
    %v680 = vadd.s32 %v679, 8
    %v681 = vadd.s32 %v679, 16
    %v682 = vadd.s32 %v679, 24
    %v683 = vadd.s32 %v679, 32
    %v684 = vadd.s32 %v679, 40
    %v685 = vadd.s32 %v679, 48
    %v686 = vadd.s32 %v679, 56
    %v687 = vadd.s32 %v679, 64
    %v688 = vadd.s32 %v679, 72
    %v689 = vadd.s32 %v679, 80
    %v690 = vadd.s32 %v679, 88
    %v691 = vadd.s32 %v679, 96
    %v692 = vadd.s32 %v679, 104
    %v693 = vadd.s32 %v679, 112
    %v694 = vadd.s32 %v679, 120
    %v695 = vstv %s677
    %v696 = vadd.s32 %v695, %v679
    %v697 = vadd.s32 %v695, %v680
    %v698 = vadd.s32 %v695, %v681
    %v699 = vadd.s32 %v695, %v682
    %v700 = vadd.s32 %v695, %v683
    %v701 = vadd.s32 %v695, %v684
    %v702 = vadd.s32 %v695, %v685
    %v703 = vadd.s32 %v695, %v686
    %v704 = vadd.s32 %v695, %v687
    %v705 = vadd.s32 %v695, %v688
    %v706 = vadd.s32 %v695, %v689
    %v707 = vadd.s32 %v695, %v690
    %v708 = vadd.s32 %v695, %v691
    %v709 = vadd.s32 %v695, %v692
    %v710 = vadd.s32 %v695, %v693
    %v711 = vadd.s32 %v695, %v694
    %vm712 = vcmp.ge.s32.totalorder %v493, 0
    %vm713 = vcmp.ge.s32.totalorder %v494, 0
    %vm714 = vcmp.ge.s32.totalorder %v495, 0
    %vm715 = vcmp.ge.s32.totalorder %v496, 0
    %vm716 = vcmp.ge.s32.totalorder %v497, 0
    %vm717 = vcmp.ge.s32.totalorder %v498, 0
    %vm718 = vcmp.ge.s32.totalorder %v499, 0
    %vm719 = vcmp.ge.s32.totalorder %v500, 0
    %vm720 = vcmp.ge.s32.totalorder %v501, 0
    %vm721 = vcmp.ge.s32.totalorder %v502, 0
    %vm722 = vcmp.ge.s32.totalorder %v503, 0
    %vm723 = vcmp.ge.s32.totalorder %v504, 0
    %vm724 = vcmp.ge.s32.totalorder %v505, 0
    %vm725 = vcmp.ge.s32.totalorder %v506, 0
    %vm726 = vcmp.ge.s32.totalorder %v507, 0
    %vm727 = vcmp.ge.s32.totalorder %v508, 0
    %vm728 = vcmp.ge.s32.totalorder %v509, 0
    %vm729 = vcmp.ge.s32.totalorder %v510, 0
    %vm730 = vcmp.ge.s32.totalorder %v511, 0
    %vm731 = vcmp.ge.s32.totalorder %v512, 0
    %vm732 = vcmp.ge.s32.totalorder %v513, 0
    %vm733 = vcmp.ge.s32.totalorder %v514, 0
    %vm734 = vcmp.ge.s32.totalorder %v515, 0
    %vm735 = vcmp.ge.s32.totalorder %v516, 0
    %vm736 = vcmp.ge.s32.totalorder %v517, 0
    %vm737 = vcmp.ge.s32.totalorder %v518, 0
    %vm738 = vcmp.ge.s32.totalorder %v519, 0
    %vm739 = vcmp.ge.s32.totalorder %v520, 0
    %vm740 = vcmp.ge.s32.totalorder %v521, 0
    %vm741 = vcmp.ge.s32.totalorder %v522, 0
    %vm742 = vcmp.ge.s32.totalorder %v523, 0
    %vm743 = vcmp.ge.s32.totalorder %v524, 0
    %vm744 = vcmp.lt.s32.totalorder %v493, 4
    %vm745 = vcmp.lt.s32.totalorder %v494, 4
    %vm746 = vcmp.lt.s32.totalorder %v495, 4
    %vm747 = vcmp.lt.s32.totalorder %v496, 4
    %vm748 = vcmp.lt.s32.totalorder %v497, 4
    %vm749 = vcmp.lt.s32.totalorder %v498, 4
    %vm750 = vcmp.lt.s32.totalorder %v499, 4
    %vm751 = vcmp.lt.s32.totalorder %v500, 4
    %vm752 = vcmp.lt.s32.totalorder %v501, 4
    %vm753 = vcmp.lt.s32.totalorder %v502, 4
    %vm754 = vcmp.lt.s32.totalorder %v503, 4
    %vm755 = vcmp.lt.s32.totalorder %v504, 4
    %vm756 = vcmp.lt.s32.totalorder %v505, 4
    %vm757 = vcmp.lt.s32.totalorder %v506, 4
    %vm758 = vcmp.lt.s32.totalorder %v507, 4
    %vm759 = vcmp.lt.s32.totalorder %v508, 4
    %vm760 = vcmp.lt.s32.totalorder %v509, 4
    %vm761 = vcmp.lt.s32.totalorder %v510, 4
    %vm762 = vcmp.lt.s32.totalorder %v511, 4
    %vm763 = vcmp.lt.s32.totalorder %v512, 4
    %vm764 = vcmp.lt.s32.totalorder %v513, 4
    %vm765 = vcmp.lt.s32.totalorder %v514, 4
    %vm766 = vcmp.lt.s32.totalorder %v515, 4
    %vm767 = vcmp.lt.s32.totalorder %v516, 4
    %vm768 = vcmp.lt.s32.totalorder %v517, 4
    %vm769 = vcmp.lt.s32.totalorder %v518, 4
    %vm770 = vcmp.lt.s32.totalorder %v519, 4
    %vm771 = vcmp.lt.s32.totalorder %v520, 4
    %vm772 = vcmp.lt.s32.totalorder %v521, 4
    %vm773 = vcmp.lt.s32.totalorder %v522, 4
    %vm774 = vcmp.lt.s32.totalorder %v523, 4
    %vm775 = vcmp.lt.s32.totalorder %v524, 4
    %vm776 = vmand %vm712, %vm744
    %vm777 = vmand %vm713, %vm745
    %vm778 = vmand %vm714, %vm746
    %vm779 = vmand %vm715, %vm747
    %vm780 = vmand %vm716, %vm748
    %vm781 = vmand %vm717, %vm749
    %vm782 = vmand %vm718, %vm750
    %vm783 = vmand %vm719, %vm751
    %vm784 = vmand %vm720, %vm752
    %vm785 = vmand %vm721, %vm753
    %vm786 = vmand %vm722, %vm754
    %vm787 = vmand %vm723, %vm755
    %vm788 = vmand %vm724, %vm756
    %vm789 = vmand %vm725, %vm757
    %vm790 = vmand %vm726, %vm758
    %vm791 = vmand %vm727, %vm759
    %vm792 = vmand %vm728, %vm760
    %vm793 = vmand %vm729, %vm761
    %vm794 = vmand %vm730, %vm762
    %vm795 = vmand %vm731, %vm763
    %vm796 = vmand %vm732, %vm764
    %vm797 = vmand %vm733, %vm765
    %vm798 = vmand %vm734, %vm766
    %vm799 = vmand %vm735, %vm767
    %vm800 = vmand %vm736, %vm768
    %vm801 = vmand %vm737, %vm769
    %vm802 = vmand %vm738, %vm770
    %vm803 = vmand %vm739, %vm771
    %vm804 = vmand %vm740, %vm772
    %vm805 = vmand %vm741, %vm773
    %vm806 = vmand %vm742, %vm774
    %vm807 = vmand %vm743, %vm775
    %vm808 = vcmp.ge.s32.totalorder %v557, 0
    %vm809 = vcmp.ge.s32.totalorder %v558, 0
    %vm810 = vcmp.ge.s32.totalorder %v559, 0
    %vm811 = vcmp.ge.s32.totalorder %v560, 0
    %vm812 = vcmp.ge.s32.totalorder %v561, 0
    %vm813 = vcmp.ge.s32.totalorder %v562, 0
    %vm814 = vcmp.ge.s32.totalorder %v563, 0
    %vm815 = vcmp.ge.s32.totalorder %v564, 0
    %vm816 = vcmp.ge.s32.totalorder %v565, 0
    %vm817 = vcmp.ge.s32.totalorder %v566, 0
    %vm818 = vcmp.ge.s32.totalorder %v567, 0
    %vm819 = vcmp.ge.s32.totalorder %v568, 0
    %vm820 = vcmp.ge.s32.totalorder %v569, 0
    %vm821 = vcmp.ge.s32.totalorder %v570, 0
    %vm822 = vcmp.ge.s32.totalorder %v571, 0
    %vm823 = vcmp.ge.s32.totalorder %v572, 0
    %vm824 = vcmp.ge.s32.totalorder %v573, 0
    %vm825 = vcmp.ge.s32.totalorder %v574, 0
    %vm826 = vcmp.ge.s32.totalorder %v575, 0
    %vm827 = vcmp.ge.s32.totalorder %v576, 0
    %vm828 = vcmp.ge.s32.totalorder %v577, 0
    %vm829 = vcmp.ge.s32.totalorder %v578, 0
    %vm830 = vcmp.ge.s32.totalorder %v579, 0
    %vm831 = vcmp.ge.s32.totalorder %v580, 0
    %vm832 = vcmp.ge.s32.totalorder %v581, 0
    %vm833 = vcmp.ge.s32.totalorder %v582, 0
    %vm834 = vcmp.ge.s32.totalorder %v583, 0
    %vm835 = vcmp.ge.s32.totalorder %v584, 0
    %vm836 = vcmp.ge.s32.totalorder %v585, 0
    %vm837 = vcmp.ge.s32.totalorder %v586, 0
    %vm838 = vcmp.ge.s32.totalorder %v587, 0
    %vm839 = vcmp.ge.s32.totalorder %v588, 0
    %vm840 = vmand %vm776, %vm808
    %vm841 = vmand %vm777, %vm809
    %vm842 = vmand %vm778, %vm810
    %vm843 = vmand %vm779, %vm811
    %vm844 = vmand %vm780, %vm812
    %vm845 = vmand %vm781, %vm813
    %vm846 = vmand %vm782, %vm814
    %vm847 = vmand %vm783, %vm815
    %vm848 = vmand %vm784, %vm816
    %vm849 = vmand %vm785, %vm817
    %vm850 = vmand %vm786, %vm818
    %vm851 = vmand %vm787, %vm819
    %vm852 = vmand %vm788, %vm820
    %vm853 = vmand %vm789, %vm821
    %vm854 = vmand %vm790, %vm822
    %vm855 = vmand %vm791, %vm823
    %vm856 = vmand %vm792, %vm824
    %vm857 = vmand %vm793, %vm825
    %vm858 = vmand %vm794, %vm826
    %vm859 = vmand %vm795, %vm827
    %vm860 = vmand %vm796, %vm828
    %vm861 = vmand %vm797, %vm829
    %vm862 = vmand %vm798, %vm830
    %vm863 = vmand %vm799, %vm831
    %vm864 = vmand %vm800, %vm832
    %vm865 = vmand %vm801, %vm833
    %vm866 = vmand %vm802, %vm834
    %vm867 = vmand %vm803, %vm835
    %vm868 = vmand %vm804, %vm836
    %vm869 = vmand %vm805, %vm837
    %vm870 = vmand %vm806, %vm838
    %vm871 = vmand %vm807, %vm839
    %vm872 = vcmp.lt.s32.totalorder %v557, 4
    %vm873 = vcmp.lt.s32.totalorder %v558, 4
    %vm874 = vcmp.lt.s32.totalorder %v559, 4
    %vm875 = vcmp.lt.s32.totalorder %v560, 4
    %vm876 = vcmp.lt.s32.totalorder %v561, 4
    %vm877 = vcmp.lt.s32.totalorder %v562, 4
    %vm878 = vcmp.lt.s32.totalorder %v563, 4
    %vm879 = vcmp.lt.s32.totalorder %v564, 4
    %vm880 = vcmp.lt.s32.totalorder %v565, 4
    %vm881 = vcmp.lt.s32.totalorder %v566, 4
    %vm882 = vcmp.lt.s32.totalorder %v567, 4
    %vm883 = vcmp.lt.s32.totalorder %v568, 4
    %vm884 = vcmp.lt.s32.totalorder %v569, 4
    %vm885 = vcmp.lt.s32.totalorder %v570, 4
    %vm886 = vcmp.lt.s32.totalorder %v571, 4
    %vm887 = vcmp.lt.s32.totalorder %v572, 4
    %vm888 = vcmp.lt.s32.totalorder %v573, 4
    %vm889 = vcmp.lt.s32.totalorder %v574, 4
    %vm890 = vcmp.lt.s32.totalorder %v575, 4
    %vm891 = vcmp.lt.s32.totalorder %v576, 4
    %vm892 = vcmp.lt.s32.totalorder %v577, 4
    %vm893 = vcmp.lt.s32.totalorder %v578, 4
    %vm894 = vcmp.lt.s32.totalorder %v579, 4
    %vm895 = vcmp.lt.s32.totalorder %v580, 4
    %vm896 = vcmp.lt.s32.totalorder %v581, 4
    %vm897 = vcmp.lt.s32.totalorder %v582, 4
    %vm898 = vcmp.lt.s32.totalorder %v583, 4
    %vm899 = vcmp.lt.s32.totalorder %v584, 4
    %vm900 = vcmp.lt.s32.totalorder %v585, 4
    %vm901 = vcmp.lt.s32.totalorder %v586, 4
    %vm902 = vcmp.lt.s32.totalorder %v587, 4
    %vm903 = vcmp.lt.s32.totalorder %v588, 4
    %vm904 = vmand %vm840, %vm872
    %vm905 = vmand %vm841, %vm873
    %vm906 = vmand %vm842, %vm874
    %vm907 = vmand %vm843, %vm875
    %vm908 = vmand %vm844, %vm876
    %vm909 = vmand %vm845, %vm877
    %vm910 = vmand %vm846, %vm878
    %vm911 = vmand %vm847, %vm879
    %vm912 = vmand %vm848, %vm880
    %vm913 = vmand %vm849, %vm881
    %vm914 = vmand %vm850, %vm882
    %vm915 = vmand %vm851, %vm883
    %vm916 = vmand %vm852, %vm884
    %vm917 = vmand %vm853, %vm885
    %vm918 = vmand %vm854, %vm886
    %vm919 = vmand %vm855, %vm887
    %vm920 = vmand %vm856, %vm888
    %vm921 = vmand %vm857, %vm889
    %vm922 = vmand %vm858, %vm890
    %vm923 = vmand %vm859, %vm891
    %vm924 = vmand %vm860, %vm892
    %vm925 = vmand %vm861, %vm893
    %vm926 = vmand %vm862, %vm894
    %vm927 = vmand %vm863, %vm895
    %vm928 = vmand %vm864, %vm896
    %vm929 = vmand %vm865, %vm897
    %vm930 = vmand %vm866, %vm898
    %vm931 = vmand %vm867, %vm899
    %vm932 = vmand %vm868, %vm900
    %vm933 = vmand %vm869, %vm901
    %vm934 = vmand %vm870, %vm902
    %vm935 = vmand %vm871, %vm903
    %v936 = vperm.slane %v653, 0
    %v937 = vperm.slane %v653, 1
    %938 = vset.pattern.permute.xlu0 0
    %939 = vperm.xlu0 %938, %v654
    %v940 = vpop.permute.xlu0 %939
    %941 = vset.pattern.permute.xlu0 0
    %942 = vperm.xlu0 %941, %v655
    %v943 = vpop.permute.xlu0 %942
    %944 = vset.pattern.permute.xlu0 0
    %945 = vperm.xlu0 %944, %v656
    %v946 = vpop.permute.xlu0 %945
    %947 = vset.pattern.permute.xlu0 0
    %948 = vperm.xlu0 %947, %v657
    %v949 = vpop.permute.xlu0 %948
    %950 = vset.pattern.permute.xlu0 0
    %951 = vperm.xlu0 %950, %v658
    %v952 = vpop.permute.xlu0 %951
    %953 = vset.pattern.permute.xlu0 0
    %954 = vperm.xlu0 %953, %v659
    %v955 = vpop.permute.xlu0 %954
    %956 = vset.pattern.permute.xlu0 0
    %957 = vperm.xlu0 %956, %v660
    %v958 = vpop.permute.xlu0 %957
    %959 = vset.pattern.permute.xlu0 0
    %960 = vperm.xlu0 %959, %v661
    %v961 = vpop.permute.xlu0 %960
    %962 = vset.pattern.permute.xlu0 0
    %963 = vperm.xlu0 %962, %v662
    %v964 = vpop.permute.xlu0 %963
    %965 = vset.pattern.permute.xlu0 0
    %966 = vperm.xlu0 %965, %v663
    %v967 = vpop.permute.xlu0 %966
    %968 = vset.pattern.permute.xlu0 0
    %969 = vperm.xlu0 %968, %v664
    %v970 = vpop.permute.xlu0 %969
    %971 = vset.pattern.permute.xlu0 0
    %972 = vperm.xlu0 %971, %v665
    %v973 = vpop.permute.xlu0 %972
    %974 = vset.pattern.permute.xlu0 0
    %975 = vperm.xlu0 %974, %v666
    %v976 = vpop.permute.xlu0 %975
    %977 = vset.pattern.permute.xlu0 0
    %978 = vperm.xlu0 %977, %v667
    %v979 = vpop.permute.xlu0 %978
    %980 = vset.pattern.permute.xlu0 0
    %981 = vperm.xlu0 %980, %v668
    %v982 = vpop.permute.xlu0 %981
    %983 = vset.pattern.permute.xlu0 0
    %984 = vperm.xlu0 %983, %v669
    %v985 = vpop.permute.xlu0 %984
    %vm986 = vcmp.eq.s32.totalorder %v936, %v940
    %vm987 = vcmp.eq.s32.totalorder %v937, %v940
    %vm988 = vcmp.eq.s32.totalorder %v936, %v943
    %vm989 = vcmp.eq.s32.totalorder %v937, %v943
    %vm990 = vcmp.eq.s32.totalorder %v936, %v946
    %vm991 = vcmp.eq.s32.totalorder %v937, %v946
    %vm992 = vcmp.eq.s32.totalorder %v936, %v949
    %vm993 = vcmp.eq.s32.totalorder %v937, %v949
    %vm994 = vcmp.eq.s32.totalorder %v936, %v952
    %vm995 = vcmp.eq.s32.totalorder %v937, %v952
    %vm996 = vcmp.eq.s32.totalorder %v936, %v955
    %vm997 = vcmp.eq.s32.totalorder %v937, %v955
    %vm998 = vcmp.eq.s32.totalorder %v936, %v958
    %vm999 = vcmp.eq.s32.totalorder %v937, %v958
    %vm1000 = vcmp.eq.s32.totalorder %v936, %v961
    %vm1001 = vcmp.eq.s32.totalorder %v937, %v961
    %vm1002 = vcmp.eq.s32.totalorder %v936, %v964
    %vm1003 = vcmp.eq.s32.totalorder %v937, %v964
    %vm1004 = vcmp.eq.s32.totalorder %v936, %v967
    %vm1005 = vcmp.eq.s32.totalorder %v937, %v967
    %vm1006 = vcmp.eq.s32.totalorder %v936, %v970
    %vm1007 = vcmp.eq.s32.totalorder %v937, %v970
    %vm1008 = vcmp.eq.s32.totalorder %v936, %v973
    %vm1009 = vcmp.eq.s32.totalorder %v937, %v973
    %vm1010 = vcmp.eq.s32.totalorder %v936, %v976
    %vm1011 = vcmp.eq.s32.totalorder %v937, %v976
    %vm1012 = vcmp.eq.s32.totalorder %v936, %v979
    %vm1013 = vcmp.eq.s32.totalorder %v937, %v979
    %vm1014 = vcmp.eq.s32.totalorder %v936, %v982
    %vm1015 = vcmp.eq.s32.totalorder %v937, %v982
    %vm1016 = vcmp.eq.s32.totalorder %v936, %v985
    %vm1017 = vcmp.eq.s32.totalorder %v937, %v985
    %vm1018 = vmand %vm904, %vm986
    %vm1019 = vmand %vm905, %vm987
    %vm1020 = vmand %vm906, %vm988
    %vm1021 = vmand %vm907, %vm989
    %vm1022 = vmand %vm908, %vm990
    %vm1023 = vmand %vm909, %vm991
    %vm1024 = vmand %vm910, %vm992
    %vm1025 = vmand %vm911, %vm993
    %vm1026 = vmand %vm912, %vm994
    %vm1027 = vmand %vm913, %vm995
    %vm1028 = vmand %vm914, %vm996
    %vm1029 = vmand %vm915, %vm997
    %vm1030 = vmand %vm916, %vm998
    %vm1031 = vmand %vm917, %vm999
    %vm1032 = vmand %vm918, %vm1000
    %vm1033 = vmand %vm919, %vm1001
    %vm1034 = vmand %vm920, %vm1002
    %vm1035 = vmand %vm921, %vm1003
    %vm1036 = vmand %vm922, %vm1004
    %vm1037 = vmand %vm923, %vm1005
    %vm1038 = vmand %vm924, %vm1006
    %vm1039 = vmand %vm925, %vm1007
    %vm1040 = vmand %vm926, %vm1008
    %vm1041 = vmand %vm927, %vm1009
    %vm1042 = vmand %vm928, %vm1010
    %vm1043 = vmand %vm929, %vm1011
    %vm1044 = vmand %vm930, %vm1012
    %vm1045 = vmand %vm931, %vm1013
    %vm1046 = vmand %vm932, %vm1014
    %vm1047 = vmand %vm933, %vm1015
    %vm1048 = vmand %vm934, %vm1016
    %vm1049 = vmand %vm935, %vm1017
    %vm1050 = vcmp.ne.s32.totalorder %v675, %v696
    %vm1051 = vcmp.ne.s32.totalorder %v676, %v696
    %vm1052 = vcmp.ne.s32.totalorder %v675, %v697
    %vm1053 = vcmp.ne.s32.totalorder %v676, %v697
    %vm1054 = vcmp.ne.s32.totalorder %v675, %v698
    %vm1055 = vcmp.ne.s32.totalorder %v676, %v698
    %vm1056 = vcmp.ne.s32.totalorder %v675, %v699
    %vm1057 = vcmp.ne.s32.totalorder %v676, %v699
    %vm1058 = vcmp.ne.s32.totalorder %v675, %v700
    %vm1059 = vcmp.ne.s32.totalorder %v676, %v700
    %vm1060 = vcmp.ne.s32.totalorder %v675, %v701
    %vm1061 = vcmp.ne.s32.totalorder %v676, %v701
    %vm1062 = vcmp.ne.s32.totalorder %v675, %v702
    %vm1063 = vcmp.ne.s32.totalorder %v676, %v702
    %vm1064 = vcmp.ne.s32.totalorder %v675, %v703
    %vm1065 = vcmp.ne.s32.totalorder %v676, %v703
    %vm1066 = vcmp.ne.s32.totalorder %v675, %v704
    %vm1067 = vcmp.ne.s32.totalorder %v676, %v704
    %vm1068 = vcmp.ne.s32.totalorder %v675, %v705
    %vm1069 = vcmp.ne.s32.totalorder %v676, %v705
    %vm1070 = vcmp.ne.s32.totalorder %v675, %v706
    %vm1071 = vcmp.ne.s32.totalorder %v676, %v706
    %vm1072 = vcmp.ne.s32.totalorder %v675, %v707
    %vm1073 = vcmp.ne.s32.totalorder %v676, %v707
    %vm1074 = vcmp.ne.s32.totalorder %v675, %v708
    %vm1075 = vcmp.ne.s32.totalorder %v676, %v708
    %vm1076 = vcmp.ne.s32.totalorder %v675, %v709
    %vm1077 = vcmp.ne.s32.totalorder %v676, %v709
    %vm1078 = vcmp.ne.s32.totalorder %v675, %v710
    %vm1079 = vcmp.ne.s32.totalorder %v676, %v710
    %vm1080 = vcmp.ne.s32.totalorder %v675, %v711
    %vm1081 = vcmp.ne.s32.totalorder %v676, %v711
    %vm1082 = vmand %vm1018, %vm1050
    %vm1083 = vmand %vm1019, %vm1051
    %vm1084 = vmand %vm1020, %vm1052
    %vm1085 = vmand %vm1021, %vm1053
    %vm1086 = vmand %vm1022, %vm1054
    %vm1087 = vmand %vm1023, %vm1055
    %vm1088 = vmand %vm1024, %vm1056
    %vm1089 = vmand %vm1025, %vm1057
    %vm1090 = vmand %vm1026, %vm1058
    %vm1091 = vmand %vm1027, %vm1059
    %vm1092 = vmand %vm1028, %vm1060
    %vm1093 = vmand %vm1029, %vm1061
    %vm1094 = vmand %vm1030, %vm1062
    %vm1095 = vmand %vm1031, %vm1063
    %vm1096 = vmand %vm1032, %vm1064
    %vm1097 = vmand %vm1033, %vm1065
    %vm1098 = vmand %vm1034, %vm1066
    %vm1099 = vmand %vm1035, %vm1067
    %vm1100 = vmand %vm1036, %vm1068
    %vm1101 = vmand %vm1037, %vm1069
    %vm1102 = vmand %vm1038, %vm1070
    %vm1103 = vmand %vm1039, %vm1071
    %vm1104 = vmand %vm1040, %vm1072
    %vm1105 = vmand %vm1041, %vm1073
    %vm1106 = vmand %vm1042, %vm1074
    %vm1107 = vmand %vm1043, %vm1075
    %vm1108 = vmand %vm1044, %vm1076
    %vm1109 = vmand %vm1045, %vm1077
    %vm1110 = vmand %vm1046, %vm1078
    %vm1111 = vmand %vm1047, %vm1079
    %vm1112 = vmand %vm1048, %vm1080
    %vm1113 = vmand %vm1049, %vm1081
    %v1114 = vsel %vm1082, %v621, 4294967295
    %v1115 = vsel %vm1083, %v622, 4294967295
    %v1116 = vsel %vm1084, %v623, 4294967295
    %v1117 = vsel %vm1085, %v624, 4294967295
    %v1118 = vsel %vm1086, %v625, 4294967295
    %v1119 = vsel %vm1087, %v626, 4294967295
    %v1120 = vsel %vm1088, %v627, 4294967295
    %v1121 = vsel %vm1089, %v628, 4294967295
    %v1122 = vsel %vm1090, %v629, 4294967295
    %v1123 = vsel %vm1091, %v630, 4294967295
    %v1124 = vsel %vm1092, %v631, 4294967295
    %v1125 = vsel %vm1093, %v632, 4294967295
    %v1126 = vsel %vm1094, %v633, 4294967295
    %v1127 = vsel %vm1095, %v634, 4294967295
    %v1128 = vsel %vm1096, %v635, 4294967295
    %v1129 = vsel %vm1097, %v636, 4294967295
    %v1130 = vsel %vm1098, %v637, 4294967295
    %v1131 = vsel %vm1099, %v638, 4294967295
    %v1132 = vsel %vm1100, %v639, 4294967295
    %v1133 = vsel %vm1101, %v640, 4294967295
    %v1134 = vsel %vm1102, %v641, 4294967295
    %v1135 = vsel %vm1103, %v642, 4294967295
    %v1136 = vsel %vm1104, %v643, 4294967295
    %v1137 = vsel %vm1105, %v644, 4294967295
    %v1138 = vsel %vm1106, %v645, 4294967295
    %v1139 = vsel %vm1107, %v646, 4294967295
    %v1140 = vsel %vm1108, %v647, 4294967295
    %v1141 = vsel %vm1109, %v648, 4294967295
    %v1142 = vsel %vm1110, %v649, 4294967295
    %v1143 = vsel %vm1111, %v650, 4294967295
    %v1144 = vsel %vm1112, %v651, 4294967295
    %v1145 = vsel %vm1113, %v652, 4294967295
    %v1146 = vld [vmem:[#allocation2] sm:$0xff]
    %v1147 = vld [vmem:[#allocation2 + $0x8] sm:$0xff]
    %v1148 = vld [vmem:[#allocation2 + $0x10] sm:$0xff]
    %v1149 = vld [vmem:[#allocation2 + $0x18] sm:$0xff]
    %vm1150 = vcmp.eq.s32.totalorder %v1114, 0
    %vm1151 = vcmp.eq.s32.totalorder %v1115, 0
    %vm1152 = vcmp.eq.s32.totalorder %v1116, 0
    %vm1153 = vcmp.eq.s32.totalorder %v1117, 0
    %vm1154 = vcmp.eq.s32.totalorder %v1118, 0
    %vm1155 = vcmp.eq.s32.totalorder %v1119, 0
    %vm1156 = vcmp.eq.s32.totalorder %v1120, 0
    %vm1157 = vcmp.eq.s32.totalorder %v1121, 0
    %vm1158 = vcmp.eq.s32.totalorder %v1122, 0
    %vm1159 = vcmp.eq.s32.totalorder %v1123, 0
    %vm1160 = vcmp.eq.s32.totalorder %v1124, 0
    %vm1161 = vcmp.eq.s32.totalorder %v1125, 0
    %vm1162 = vcmp.eq.s32.totalorder %v1126, 0
    %vm1163 = vcmp.eq.s32.totalorder %v1127, 0
    %vm1164 = vcmp.eq.s32.totalorder %v1128, 0
    %vm1165 = vcmp.eq.s32.totalorder %v1129, 0
    %vm1166 = vcmp.eq.s32.totalorder %v1130, 0
    %vm1167 = vcmp.eq.s32.totalorder %v1131, 0
    %vm1168 = vcmp.eq.s32.totalorder %v1132, 0
    %vm1169 = vcmp.eq.s32.totalorder %v1133, 0
    %vm1170 = vcmp.eq.s32.totalorder %v1134, 0
    %vm1171 = vcmp.eq.s32.totalorder %v1135, 0
    %vm1172 = vcmp.eq.s32.totalorder %v1136, 0
    %vm1173 = vcmp.eq.s32.totalorder %v1137, 0
    %vm1174 = vcmp.eq.s32.totalorder %v1138, 0
    %vm1175 = vcmp.eq.s32.totalorder %v1139, 0
    %vm1176 = vcmp.eq.s32.totalorder %v1140, 0
    %vm1177 = vcmp.eq.s32.totalorder %v1141, 0
    %vm1178 = vcmp.eq.s32.totalorder %v1142, 0
    %vm1179 = vcmp.eq.s32.totalorder %v1143, 0
    %vm1180 = vcmp.eq.s32.totalorder %v1144, 0
    %vm1181 = vcmp.eq.s32.totalorder %v1145, 0
    %v1182 = vsel %vm1150, 1, 0
    %v1183 = vsel %vm1151, 1, 0
    %v1184 = vsel %vm1152, 1, 0
    %v1185 = vsel %vm1153, 1, 0
    %v1186 = vsel %vm1154, 1, 0
    %v1187 = vsel %vm1155, 1, 0
    %v1188 = vsel %vm1156, 1, 0
    %v1189 = vsel %vm1157, 1, 0
    %v1190 = vsel %vm1158, 1, 0
    %v1191 = vsel %vm1159, 1, 0
    %v1192 = vsel %vm1160, 1, 0
    %v1193 = vsel %vm1161, 1, 0
    %v1194 = vsel %vm1162, 1, 0
    %v1195 = vsel %vm1163, 1, 0
    %v1196 = vsel %vm1164, 1, 0
    %v1197 = vsel %vm1165, 1, 0
    %v1198 = vsel %vm1166, 1, 0
    %v1199 = vsel %vm1167, 1, 0
    %v1200 = vsel %vm1168, 1, 0
    %v1201 = vsel %vm1169, 1, 0
    %v1202 = vsel %vm1170, 1, 0
    %v1203 = vsel %vm1171, 1, 0
    %v1204 = vsel %vm1172, 1, 0
    %v1205 = vsel %vm1173, 1, 0
    %v1206 = vsel %vm1174, 1, 0
    %v1207 = vsel %vm1175, 1, 0
    %v1208 = vsel %vm1176, 1, 0
    %v1209 = vsel %vm1177, 1, 0
    %v1210 = vsel %vm1178, 1, 0
    %v1211 = vsel %vm1179, 1, 0
    %v1212 = vsel %vm1180, 1, 0
    %v1213 = vsel %vm1181, 1, 0
    %v1214 = vcvt.s32.f32 %v1182
    %v1215 = vcvt.s32.f32 %v1183
    %v1216 = vcvt.s32.f32 %v1184
    %v1217 = vcvt.s32.f32 %v1185
    %v1218 = vcvt.s32.f32 %v1186
    %v1219 = vcvt.s32.f32 %v1187
    %v1220 = vcvt.s32.f32 %v1188
    %v1221 = vcvt.s32.f32 %v1189
    %v1222 = vcvt.s32.f32 %v1190
    %v1223 = vcvt.s32.f32 %v1191
    %v1224 = vcvt.s32.f32 %v1192
    %v1225 = vcvt.s32.f32 %v1193
    %v1226 = vcvt.s32.f32 %v1194
    %v1227 = vcvt.s32.f32 %v1195
    %v1228 = vcvt.s32.f32 %v1196
    %v1229 = vcvt.s32.f32 %v1197
    %v1230 = vcvt.s32.f32 %v1198
    %v1231 = vcvt.s32.f32 %v1199
    %v1232 = vcvt.s32.f32 %v1200
    %v1233 = vcvt.s32.f32 %v1201
    %v1234 = vcvt.s32.f32 %v1202
    %v1235 = vcvt.s32.f32 %v1203
    %v1236 = vcvt.s32.f32 %v1204
    %v1237 = vcvt.s32.f32 %v1205
    %v1238 = vcvt.s32.f32 %v1206
    %v1239 = vcvt.s32.f32 %v1207
    %v1240 = vcvt.s32.f32 %v1208
    %v1241 = vcvt.s32.f32 %v1209
    %v1242 = vcvt.s32.f32 %v1210
    %v1243 = vcvt.s32.f32 %v1211
    %v1244 = vcvt.s32.f32 %v1212
    %v1245 = vcvt.s32.f32 %v1213
    %v1246 = vpack.c.bf16 %v1216, %v1214
    %v1247 = vpack.c.bf16 %v1217, %v1215
    %v1248 = vpack.c.bf16 %v1220, %v1218
    %v1249 = vpack.c.bf16 %v1221, %v1219
    %v1250 = vpack.c.bf16 %v1224, %v1222
    %v1251 = vpack.c.bf16 %v1225, %v1223
    %v1252 = vpack.c.bf16 %v1228, %v1226
    %v1253 = vpack.c.bf16 %v1229, %v1227
    %v1254 = vpack.c.bf16 %v1232, %v1230
    %v1255 = vpack.c.bf16 %v1233, %v1231
    %v1256 = vpack.c.bf16 %v1236, %v1234
    %v1257 = vpack.c.bf16 %v1237, %v1235
    %v1258 = vpack.c.bf16 %v1240, %v1238
    %v1259 = vpack.c.bf16 %v1241, %v1239
    %v1260 = vpack.c.bf16 %v1244, %v1242
    %v1261 = vpack.c.bf16 %v1245, %v1243
    %v1262 = vld [vmem:[%s4] sm:$0xf]
    %v1263 = vld [vmem:[%s4 + $0x4] sm:$0xf]
    %v1266 = vunpack.c.l.b16 %v1262
    %v1267 = vunpack.c.l.b16 %v1263
    %v1268 = vpack.c.b16 %v1267, %v1266
    %1270 = vmatpush.bf16.msra.mxu0 %v1260
    %1271 = vmatpush.bf16.msra.mxu0 %v1258
    %1272 = vmatpush.bf16.msra.mxu0 %v1256
    %1273 = vmatpush.bf16.msra.mxu0 %v1254
    %1274 = vmatpush.bf16.msra.mxu0 %v1252
    %1275 = vmatpush.bf16.msra.mxu0 %v1250
    %1276 = vmatpush.bf16.msra.mxu0 %v1248
    %1277 = vmatpush.bf16.msra.mxu0 %v1246
    %1278 = vmatmul.bf16.gmra.mxu0 %v1268
    %v1279 = vpop.f32.mrf.mxu0
    %v1280 = vadd.f32 0.0, %v1279
    %v1281 = vpop.f32.mrf.mxu0
    %v1282 = vadd.f32 0.0, %v1281
    %1283 = vdwg.mxu0
    %1284 = vmatpush.bf16.msra.mxu0 %v1261
    %1285 = vmatpush.bf16.msra.mxu0 %v1259
    %1286 = vmatpush.bf16.msra.mxu0 %v1257
    %1287 = vmatpush.bf16.msra.mxu0 %v1255
    %1288 = vmatpush.bf16.msra.mxu0 %v1253
    %1289 = vmatpush.bf16.msra.mxu0 %v1251
    %1290 = vmatpush.bf16.msra.mxu0 %v1249
    %1291 = vmatpush.bf16.msra.mxu0 %v1247
    %1292 = vmatmul.bf16.gmra.mxu0 %v1268
    %v1293 = vpop.f32.mrf.mxu0
    %v1294 = vadd.f32 0.0, %v1293
    %v1295 = vpop.f32.mrf.mxu0
    %v1296 = vadd.f32 0.0, %v1295
    %1297 = vdwg.mxu0
    %v1298 = vadd.f32 %v1146, %v1280
    %v1299 = vadd.f32 %v1147, %v1294
    %v1300 = vadd.f32 %v1148, %v1282
    %v1301 = vadd.f32 %v1149, %v1296
    %vm1302 = vcmp.eq.s32.totalorder %v1114, 1
    %vm1303 = vcmp.eq.s32.totalorder %v1115, 1
    %vm1304 = vcmp.eq.s32.totalorder %v1116, 1
    %vm1305 = vcmp.eq.s32.totalorder %v1117, 1
    %vm1306 = vcmp.eq.s32.totalorder %v1118, 1
    %vm1307 = vcmp.eq.s32.totalorder %v1119, 1
    %vm1308 = vcmp.eq.s32.totalorder %v1120, 1
    %vm1309 = vcmp.eq.s32.totalorder %v1121, 1
    %vm1310 = vcmp.eq.s32.totalorder %v1122, 1
    %vm1311 = vcmp.eq.s32.totalorder %v1123, 1
    %vm1312 = vcmp.eq.s32.totalorder %v1124, 1
    %vm1313 = vcmp.eq.s32.totalorder %v1125, 1
    %vm1314 = vcmp.eq.s32.totalorder %v1126, 1
    %vm1315 = vcmp.eq.s32.totalorder %v1127, 1
    %vm1316 = vcmp.eq.s32.totalorder %v1128, 1
    %vm1317 = vcmp.eq.s32.totalorder %v1129, 1
    %vm1318 = vcmp.eq.s32.totalorder %v1130, 1
    %vm1319 = vcmp.eq.s32.totalorder %v1131, 1
    %vm1320 = vcmp.eq.s32.totalorder %v1132, 1
    %vm1321 = vcmp.eq.s32.totalorder %v1133, 1
    %vm1322 = vcmp.eq.s32.totalorder %v1134, 1
    %vm1323 = vcmp.eq.s32.totalorder %v1135, 1
    %vm1324 = vcmp.eq.s32.totalorder %v1136, 1
    %vm1325 = vcmp.eq.s32.totalorder %v1137, 1
    %vm1326 = vcmp.eq.s32.totalorder %v1138, 1
    %vm1327 = vcmp.eq.s32.totalorder %v1139, 1
    %vm1328 = vcmp.eq.s32.totalorder %v1140, 1
    %vm1329 = vcmp.eq.s32.totalorder %v1141, 1
    %vm1330 = vcmp.eq.s32.totalorder %v1142, 1
    %vm1331 = vcmp.eq.s32.totalorder %v1143, 1
    %vm1332 = vcmp.eq.s32.totalorder %v1144, 1
    %vm1333 = vcmp.eq.s32.totalorder %v1145, 1
    %v1334 = vsel %vm1302, 1, 0
    %v1335 = vsel %vm1303, 1, 0
    %v1336 = vsel %vm1304, 1, 0
    %v1337 = vsel %vm1305, 1, 0
    %v1338 = vsel %vm1306, 1, 0
    %v1339 = vsel %vm1307, 1, 0
    %v1340 = vsel %vm1308, 1, 0
    %v1341 = vsel %vm1309, 1, 0
    %v1342 = vsel %vm1310, 1, 0
    %v1343 = vsel %vm1311, 1, 0
    %v1344 = vsel %vm1312, 1, 0
    %v1345 = vsel %vm1313, 1, 0
    %v1346 = vsel %vm1314, 1, 0
    %v1347 = vsel %vm1315, 1, 0
    %v1348 = vsel %vm1316, 1, 0
    %v1349 = vsel %vm1317, 1, 0
    %v1350 = vsel %vm1318, 1, 0
    %v1351 = vsel %vm1319, 1, 0
    %v1352 = vsel %vm1320, 1, 0
    %v1353 = vsel %vm1321, 1, 0
    %v1354 = vsel %vm1322, 1, 0
    %v1355 = vsel %vm1323, 1, 0
    %v1356 = vsel %vm1324, 1, 0
    %v1357 = vsel %vm1325, 1, 0
    %v1358 = vsel %vm1326, 1, 0
    %v1359 = vsel %vm1327, 1, 0
    %v1360 = vsel %vm1328, 1, 0
    %v1361 = vsel %vm1329, 1, 0
    %v1362 = vsel %vm1330, 1, 0
    %v1363 = vsel %vm1331, 1, 0
    %v1364 = vsel %vm1332, 1, 0
    %v1365 = vsel %vm1333, 1, 0
    %v1366 = vcvt.s32.f32 %v1334
    %v1367 = vcvt.s32.f32 %v1335
    %v1368 = vcvt.s32.f32 %v1336
    %v1369 = vcvt.s32.f32 %v1337
    %v1370 = vcvt.s32.f32 %v1338
    %v1371 = vcvt.s32.f32 %v1339
    %v1372 = vcvt.s32.f32 %v1340
    %v1373 = vcvt.s32.f32 %v1341
    %v1374 = vcvt.s32.f32 %v1342
    %v1375 = vcvt.s32.f32 %v1343
    %v1376 = vcvt.s32.f32 %v1344
    %v1377 = vcvt.s32.f32 %v1345
    %v1378 = vcvt.s32.f32 %v1346
    %v1379 = vcvt.s32.f32 %v1347
    %v1380 = vcvt.s32.f32 %v1348
    %v1381 = vcvt.s32.f32 %v1349
    %v1382 = vcvt.s32.f32 %v1350
    %v1383 = vcvt.s32.f32 %v1351
    %v1384 = vcvt.s32.f32 %v1352
    %v1385 = vcvt.s32.f32 %v1353
    %v1386 = vcvt.s32.f32 %v1354
    %v1387 = vcvt.s32.f32 %v1355
    %v1388 = vcvt.s32.f32 %v1356
    %v1389 = vcvt.s32.f32 %v1357
    %v1390 = vcvt.s32.f32 %v1358
    %v1391 = vcvt.s32.f32 %v1359
    %v1392 = vcvt.s32.f32 %v1360
    %v1393 = vcvt.s32.f32 %v1361
    %v1394 = vcvt.s32.f32 %v1362
    %v1395 = vcvt.s32.f32 %v1363
    %v1396 = vcvt.s32.f32 %v1364
    %v1397 = vcvt.s32.f32 %v1365
    %v1398 = vpack.c.bf16 %v1368, %v1366
    %v1399 = vpack.c.bf16 %v1369, %v1367
    %v1400 = vpack.c.bf16 %v1372, %v1370
    %v1401 = vpack.c.bf16 %v1373, %v1371
    %v1402 = vpack.c.bf16 %v1376, %v1374
    %v1403 = vpack.c.bf16 %v1377, %v1375
    %v1404 = vpack.c.bf16 %v1380, %v1378
    %v1405 = vpack.c.bf16 %v1381, %v1379
    %v1406 = vpack.c.bf16 %v1384, %v1382
    %v1407 = vpack.c.bf16 %v1385, %v1383
    %v1408 = vpack.c.bf16 %v1388, %v1386
    %v1409 = vpack.c.bf16 %v1389, %v1387
    %v1410 = vpack.c.bf16 %v1392, %v1390
    %v1411 = vpack.c.bf16 %v1393, %v1391
    %v1412 = vpack.c.bf16 %v1396, %v1394
    %v1413 = vpack.c.bf16 %v1397, %v1395
    %s1414 = scalar_lea.vmem %s4, 8
    %v1415 = vld [vmem:[%s1414] sm:$0xf]
    %v1416 = vld [vmem:[%s1414 + $0x4] sm:$0xf]
    %v1419 = vunpack.c.l.b16 %v1415
    %v1420 = vunpack.c.l.b16 %v1416
    %v1421 = vpack.c.b16 %v1420, %v1419
    %1423 = vmatpush.bf16.msra.mxu0 %v1412
    %1424 = vmatpush.bf16.msra.mxu0 %v1410
    %1425 = vmatpush.bf16.msra.mxu0 %v1408
    %1426 = vmatpush.bf16.msra.mxu0 %v1406
    %1427 = vmatpush.bf16.msra.mxu0 %v1404
    %1428 = vmatpush.bf16.msra.mxu0 %v1402
    %1429 = vmatpush.bf16.msra.mxu0 %v1400
    %1430 = vmatpush.bf16.msra.mxu0 %v1398
    %1431 = vmatmul.bf16.gmra.mxu0 %v1421
    %v1432 = vpop.f32.mrf.mxu0
    %v1433 = vadd.f32 0.0, %v1432
    %v1434 = vpop.f32.mrf.mxu0
    %v1435 = vadd.f32 0.0, %v1434
    %1436 = vdwg.mxu0
    %1437 = vmatpush.bf16.msra.mxu0 %v1413
    %1438 = vmatpush.bf16.msra.mxu0 %v1411
    %1439 = vmatpush.bf16.msra.mxu0 %v1409
    %1440 = vmatpush.bf16.msra.mxu0 %v1407
    %1441 = vmatpush.bf16.msra.mxu0 %v1405
    %1442 = vmatpush.bf16.msra.mxu0 %v1403
    %1443 = vmatpush.bf16.msra.mxu0 %v1401
    %1444 = vmatpush.bf16.msra.mxu0 %v1399
    %1445 = vmatmul.bf16.gmra.mxu0 %v1421
    %v1446 = vpop.f32.mrf.mxu0
    %v1447 = vadd.f32 0.0, %v1446
    %v1448 = vpop.f32.mrf.mxu0
    %v1449 = vadd.f32 0.0, %v1448
    %1450 = vdwg.mxu0
    %v1451 = vadd.f32 %v1298, %v1433
    %v1452 = vadd.f32 %v1299, %v1447
    %v1453 = vadd.f32 %v1300, %v1435
    %v1454 = vadd.f32 %v1301, %v1449
    %vm1455 = vcmp.eq.s32.totalorder %v1114, 2
    %vm1456 = vcmp.eq.s32.totalorder %v1115, 2
    %vm1457 = vcmp.eq.s32.totalorder %v1116, 2
    %vm1458 = vcmp.eq.s32.totalorder %v1117, 2
    %vm1459 = vcmp.eq.s32.totalorder %v1118, 2
    %vm1460 = vcmp.eq.s32.totalorder %v1119, 2
    %vm1461 = vcmp.eq.s32.totalorder %v1120, 2
    %vm1462 = vcmp.eq.s32.totalorder %v1121, 2
    %vm1463 = vcmp.eq.s32.totalorder %v1122, 2
    %vm1464 = vcmp.eq.s32.totalorder %v1123, 2
    %vm1465 = vcmp.eq.s32.totalorder %v1124, 2
    %vm1466 = vcmp.eq.s32.totalorder %v1125, 2
    %vm1467 = vcmp.eq.s32.totalorder %v1126, 2
    %vm1468 = vcmp.eq.s32.totalorder %v1127, 2
    %vm1469 = vcmp.eq.s32.totalorder %v1128, 2
    %vm1470 = vcmp.eq.s32.totalorder %v1129, 2
    %vm1471 = vcmp.eq.s32.totalorder %v1130, 2
    %vm1472 = vcmp.eq.s32.totalorder %v1131, 2
    %vm1473 = vcmp.eq.s32.totalorder %v1132, 2
    %vm1474 = vcmp.eq.s32.totalorder %v1133, 2
    %vm1475 = vcmp.eq.s32.totalorder %v1134, 2
    %vm1476 = vcmp.eq.s32.totalorder %v1135, 2
    %vm1477 = vcmp.eq.s32.totalorder %v1136, 2
    %vm1478 = vcmp.eq.s32.totalorder %v1137, 2
    %vm1479 = vcmp.eq.s32.totalorder %v1138, 2
    %vm1480 = vcmp.eq.s32.totalorder %v1139, 2
    %vm1481 = vcmp.eq.s32.totalorder %v1140, 2
    %vm1482 = vcmp.eq.s32.totalorder %v1141, 2
    %vm1483 = vcmp.eq.s32.totalorder %v1142, 2
    %vm1484 = vcmp.eq.s32.totalorder %v1143, 2
    %vm1485 = vcmp.eq.s32.totalorder %v1144, 2
    %vm1486 = vcmp.eq.s32.totalorder %v1145, 2
    %v1487 = vsel %vm1455, 1, 0
    %v1488 = vsel %vm1456, 1, 0
    %v1489 = vsel %vm1457, 1, 0
    %v1490 = vsel %vm1458, 1, 0
    %v1491 = vsel %vm1459, 1, 0
    %v1492 = vsel %vm1460, 1, 0
    %v1493 = vsel %vm1461, 1, 0
    %v1494 = vsel %vm1462, 1, 0
    %v1495 = vsel %vm1463, 1, 0
    %v1496 = vsel %vm1464, 1, 0
    %v1497 = vsel %vm1465, 1, 0
    %v1498 = vsel %vm1466, 1, 0
    %v1499 = vsel %vm1467, 1, 0
    %v1500 = vsel %vm1468, 1, 0
    %v1501 = vsel %vm1469, 1, 0
    %v1502 = vsel %vm1470, 1, 0
    %v1503 = vsel %vm1471, 1, 0
    %v1504 = vsel %vm1472, 1, 0
    %v1505 = vsel %vm1473, 1, 0
    %v1506 = vsel %vm1474, 1, 0
    %v1507 = vsel %vm1475, 1, 0
    %v1508 = vsel %vm1476, 1, 0
    %v1509 = vsel %vm1477, 1, 0
    %v1510 = vsel %vm1478, 1, 0
    %v1511 = vsel %vm1479, 1, 0
    %v1512 = vsel %vm1480, 1, 0
    %v1513 = vsel %vm1481, 1, 0
    %v1514 = vsel %vm1482, 1, 0
    %v1515 = vsel %vm1483, 1, 0
    %v1516 = vsel %vm1484, 1, 0
    %v1517 = vsel %vm1485, 1, 0
    %v1518 = vsel %vm1486, 1, 0
    %v1519 = vcvt.s32.f32 %v1487
    %v1520 = vcvt.s32.f32 %v1488
    %v1521 = vcvt.s32.f32 %v1489
    %v1522 = vcvt.s32.f32 %v1490
    %v1523 = vcvt.s32.f32 %v1491
    %v1524 = vcvt.s32.f32 %v1492
    %v1525 = vcvt.s32.f32 %v1493
    %v1526 = vcvt.s32.f32 %v1494
    %v1527 = vcvt.s32.f32 %v1495
    %v1528 = vcvt.s32.f32 %v1496
    %v1529 = vcvt.s32.f32 %v1497
    %v1530 = vcvt.s32.f32 %v1498
    %v1531 = vcvt.s32.f32 %v1499
    %v1532 = vcvt.s32.f32 %v1500
    %v1533 = vcvt.s32.f32 %v1501
    %v1534 = vcvt.s32.f32 %v1502
    %v1535 = vcvt.s32.f32 %v1503
    %v1536 = vcvt.s32.f32 %v1504
    %v1537 = vcvt.s32.f32 %v1505
    %v1538 = vcvt.s32.f32 %v1506
    %v1539 = vcvt.s32.f32 %v1507
    %v1540 = vcvt.s32.f32 %v1508
    %v1541 = vcvt.s32.f32 %v1509
    %v1542 = vcvt.s32.f32 %v1510
    %v1543 = vcvt.s32.f32 %v1511
    %v1544 = vcvt.s32.f32 %v1512
    %v1545 = vcvt.s32.f32 %v1513
    %v1546 = vcvt.s32.f32 %v1514
    %v1547 = vcvt.s32.f32 %v1515
    %v1548 = vcvt.s32.f32 %v1516
    %v1549 = vcvt.s32.f32 %v1517
    %v1550 = vcvt.s32.f32 %v1518
    %v1551 = vpack.c.bf16 %v1521, %v1519
    %v1552 = vpack.c.bf16 %v1522, %v1520
    %v1553 = vpack.c.bf16 %v1525, %v1523
    %v1554 = vpack.c.bf16 %v1526, %v1524
    %v1555 = vpack.c.bf16 %v1529, %v1527
    %v1556 = vpack.c.bf16 %v1530, %v1528
    %v1557 = vpack.c.bf16 %v1533, %v1531
    %v1558 = vpack.c.bf16 %v1534, %v1532
    %v1559 = vpack.c.bf16 %v1537, %v1535
    %v1560 = vpack.c.bf16 %v1538, %v1536
    %v1561 = vpack.c.bf16 %v1541, %v1539
    %v1562 = vpack.c.bf16 %v1542, %v1540
    %v1563 = vpack.c.bf16 %v1545, %v1543
    %v1564 = vpack.c.bf16 %v1546, %v1544
    %v1565 = vpack.c.bf16 %v1549, %v1547
    %v1566 = vpack.c.bf16 %v1550, %v1548
    %s1567 = scalar_lea.vmem %s4, 16
    %v1568 = vld [vmem:[%s1567] sm:$0xf]
    %v1569 = vld [vmem:[%s1567 + $0x4] sm:$0xf]
    %v1572 = vunpack.c.l.b16 %v1568
    %v1573 = vunpack.c.l.b16 %v1569
    %v1574 = vpack.c.b16 %v1573, %v1572
    %1576 = vmatpush.bf16.msra.mxu0 %v1565
    %1577 = vmatpush.bf16.msra.mxu0 %v1563
    %1578 = vmatpush.bf16.msra.mxu0 %v1561
    %1579 = vmatpush.bf16.msra.mxu0 %v1559
    %1580 = vmatpush.bf16.msra.mxu0 %v1557
    %1581 = vmatpush.bf16.msra.mxu0 %v1555
    %1582 = vmatpush.bf16.msra.mxu0 %v1553
    %1583 = vmatpush.bf16.msra.mxu0 %v1551
    %1584 = vmatmul.bf16.gmra.mxu0 %v1574
    %v1585 = vpop.f32.mrf.mxu0
    %v1586 = vadd.f32 0.0, %v1585
    %v1587 = vpop.f32.mrf.mxu0
    %v1588 = vadd.f32 0.0, %v1587
    %1589 = vdwg.mxu0
    %1590 = vmatpush.bf16.msra.mxu0 %v1566
    %1591 = vmatpush.bf16.msra.mxu0 %v1564
    %1592 = vmatpush.bf16.msra.mxu0 %v1562
    %1593 = vmatpush.bf16.msra.mxu0 %v1560
    %1594 = vmatpush.bf16.msra.mxu0 %v1558
    %1595 = vmatpush.bf16.msra.mxu0 %v1556
    %1596 = vmatpush.bf16.msra.mxu0 %v1554
    %1597 = vmatpush.bf16.msra.mxu0 %v1552
    %1598 = vmatmul.bf16.gmra.mxu0 %v1574
    %v1599 = vpop.f32.mrf.mxu0
    %v1600 = vadd.f32 0.0, %v1599
    %v1601 = vpop.f32.mrf.mxu0
    %v1602 = vadd.f32 0.0, %v1601
    %1603 = vdwg.mxu0
    %v1604 = vadd.f32 %v1451, %v1586
    %v1605 = vadd.f32 %v1452, %v1600
    %v1606 = vadd.f32 %v1453, %v1588
    %v1607 = vadd.f32 %v1454, %v1602
    %vm1608 = vcmp.eq.s32.totalorder %v1114, 3
    %vm1609 = vcmp.eq.s32.totalorder %v1115, 3
    %vm1610 = vcmp.eq.s32.totalorder %v1116, 3
    %vm1611 = vcmp.eq.s32.totalorder %v1117, 3
    %vm1612 = vcmp.eq.s32.totalorder %v1118, 3
    %vm1613 = vcmp.eq.s32.totalorder %v1119, 3
    %vm1614 = vcmp.eq.s32.totalorder %v1120, 3
    %vm1615 = vcmp.eq.s32.totalorder %v1121, 3
    %vm1616 = vcmp.eq.s32.totalorder %v1122, 3
    %vm1617 = vcmp.eq.s32.totalorder %v1123, 3
    %vm1618 = vcmp.eq.s32.totalorder %v1124, 3
    %vm1619 = vcmp.eq.s32.totalorder %v1125, 3
    %vm1620 = vcmp.eq.s32.totalorder %v1126, 3
    %vm1621 = vcmp.eq.s32.totalorder %v1127, 3
    %vm1622 = vcmp.eq.s32.totalorder %v1128, 3
    %vm1623 = vcmp.eq.s32.totalorder %v1129, 3
    %vm1624 = vcmp.eq.s32.totalorder %v1130, 3
    %vm1625 = vcmp.eq.s32.totalorder %v1131, 3
    %vm1626 = vcmp.eq.s32.totalorder %v1132, 3
    %vm1627 = vcmp.eq.s32.totalorder %v1133, 3
    %vm1628 = vcmp.eq.s32.totalorder %v1134, 3
    %vm1629 = vcmp.eq.s32.totalorder %v1135, 3
    %vm1630 = vcmp.eq.s32.totalorder %v1136, 3
    %vm1631 = vcmp.eq.s32.totalorder %v1137, 3
    %vm1632 = vcmp.eq.s32.totalorder %v1138, 3
    %vm1633 = vcmp.eq.s32.totalorder %v1139, 3
    %vm1634 = vcmp.eq.s32.totalorder %v1140, 3
    %vm1635 = vcmp.eq.s32.totalorder %v1141, 3
    %vm1636 = vcmp.eq.s32.totalorder %v1142, 3
    %vm1637 = vcmp.eq.s32.totalorder %v1143, 3
    %vm1638 = vcmp.eq.s32.totalorder %v1144, 3
    %vm1639 = vcmp.eq.s32.totalorder %v1145, 3
    %v1640 = vsel %vm1608, 1, 0
    %v1641 = vsel %vm1609, 1, 0
    %v1642 = vsel %vm1610, 1, 0
    %v1643 = vsel %vm1611, 1, 0
    %v1644 = vsel %vm1612, 1, 0
    %v1645 = vsel %vm1613, 1, 0
    %v1646 = vsel %vm1614, 1, 0
    %v1647 = vsel %vm1615, 1, 0
    %v1648 = vsel %vm1616, 1, 0
    %v1649 = vsel %vm1617, 1, 0
    %v1650 = vsel %vm1618, 1, 0
    %v1651 = vsel %vm1619, 1, 0
    %v1652 = vsel %vm1620, 1, 0
    %v1653 = vsel %vm1621, 1, 0
    %v1654 = vsel %vm1622, 1, 0
    %v1655 = vsel %vm1623, 1, 0
    %v1656 = vsel %vm1624, 1, 0
    %v1657 = vsel %vm1625, 1, 0
    %v1658 = vsel %vm1626, 1, 0
    %v1659 = vsel %vm1627, 1, 0
    %v1660 = vsel %vm1628, 1, 0
    %v1661 = vsel %vm1629, 1, 0
    %v1662 = vsel %vm1630, 1, 0
    %v1663 = vsel %vm1631, 1, 0
    %v1664 = vsel %vm1632, 1, 0
    %v1665 = vsel %vm1633, 1, 0
    %v1666 = vsel %vm1634, 1, 0
    %v1667 = vsel %vm1635, 1, 0
    %v1668 = vsel %vm1636, 1, 0
    %v1669 = vsel %vm1637, 1, 0
    %v1670 = vsel %vm1638, 1, 0
    %v1671 = vsel %vm1639, 1, 0
    %v1672 = vcvt.s32.f32 %v1640
    %v1673 = vcvt.s32.f32 %v1641
    %v1674 = vcvt.s32.f32 %v1642
    %v1675 = vcvt.s32.f32 %v1643
    %v1676 = vcvt.s32.f32 %v1644
    %v1677 = vcvt.s32.f32 %v1645
    %v1678 = vcvt.s32.f32 %v1646
    %v1679 = vcvt.s32.f32 %v1647
    %v1680 = vcvt.s32.f32 %v1648
    %v1681 = vcvt.s32.f32 %v1649
    %v1682 = vcvt.s32.f32 %v1650
    %v1683 = vcvt.s32.f32 %v1651
    %v1684 = vcvt.s32.f32 %v1652
    %v1685 = vcvt.s32.f32 %v1653
    %v1686 = vcvt.s32.f32 %v1654
    %v1687 = vcvt.s32.f32 %v1655
    %v1688 = vcvt.s32.f32 %v1656
    %v1689 = vcvt.s32.f32 %v1657
    %v1690 = vcvt.s32.f32 %v1658
    %v1691 = vcvt.s32.f32 %v1659
    %v1692 = vcvt.s32.f32 %v1660
    %v1693 = vcvt.s32.f32 %v1661
    %v1694 = vcvt.s32.f32 %v1662
    %v1695 = vcvt.s32.f32 %v1663
    %v1696 = vcvt.s32.f32 %v1664
    %v1697 = vcvt.s32.f32 %v1665
    %v1698 = vcvt.s32.f32 %v1666
    %v1699 = vcvt.s32.f32 %v1667
    %v1700 = vcvt.s32.f32 %v1668
    %v1701 = vcvt.s32.f32 %v1669
    %v1702 = vcvt.s32.f32 %v1670
    %v1703 = vcvt.s32.f32 %v1671
    %v1704 = vpack.c.bf16 %v1674, %v1672
    %v1705 = vpack.c.bf16 %v1675, %v1673
    %v1706 = vpack.c.bf16 %v1678, %v1676
    %v1707 = vpack.c.bf16 %v1679, %v1677
    %v1708 = vpack.c.bf16 %v1682, %v1680
    %v1709 = vpack.c.bf16 %v1683, %v1681
    %v1710 = vpack.c.bf16 %v1686, %v1684
    %v1711 = vpack.c.bf16 %v1687, %v1685
    %v1712 = vpack.c.bf16 %v1690, %v1688
    %v1713 = vpack.c.bf16 %v1691, %v1689
    %v1714 = vpack.c.bf16 %v1694, %v1692
    %v1715 = vpack.c.bf16 %v1695, %v1693
    %v1716 = vpack.c.bf16 %v1698, %v1696
    %v1717 = vpack.c.bf16 %v1699, %v1697
    %v1718 = vpack.c.bf16 %v1702, %v1700
    %v1719 = vpack.c.bf16 %v1703, %v1701
    %s1720 = scalar_lea.vmem %s4, 24
    %v1721 = vld [vmem:[%s1720] sm:$0xf]
    %v1722 = vld [vmem:[%s1720 + $0x4] sm:$0xf]
    %v1725 = vunpack.c.l.b16 %v1721
    %v1726 = vunpack.c.l.b16 %v1722
    %v1727 = vpack.c.b16 %v1726, %v1725
    %1729 = vmatpush.bf16.msra.mxu0 %v1718
    %1730 = vmatpush.bf16.msra.mxu0 %v1716
    %1731 = vmatpush.bf16.msra.mxu0 %v1714
    %1732 = vmatpush.bf16.msra.mxu0 %v1712
    %1733 = vmatpush.bf16.msra.mxu0 %v1710
    %1734 = vmatpush.bf16.msra.mxu0 %v1708
    %1735 = vmatpush.bf16.msra.mxu0 %v1706
    %1736 = vmatpush.bf16.msra.mxu0 %v1704
    %1737 = vmatmul.bf16.gmra.mxu0 %v1727
    %v1738 = vpop.f32.mrf.mxu0
    %v1739 = vadd.f32 0.0, %v1738
    %v1740 = vpop.f32.mrf.mxu0
    %v1741 = vadd.f32 0.0, %v1740
    %1742 = vdwg.mxu0
    %1743 = vmatpush.bf16.msra.mxu0 %v1719
    %1744 = vmatpush.bf16.msra.mxu0 %v1717
    %1745 = vmatpush.bf16.msra.mxu0 %v1715
    %1746 = vmatpush.bf16.msra.mxu0 %v1713
    %1747 = vmatpush.bf16.msra.mxu0 %v1711
    %1748 = vmatpush.bf16.msra.mxu0 %v1709
    %1749 = vmatpush.bf16.msra.mxu0 %v1707
    %1750 = vmatpush.bf16.msra.mxu0 %v1705
    %1751 = vmatmul.bf16.gmra.mxu0 %v1727
    %v1752 = vpop.f32.mrf.mxu0
    %v1753 = vadd.f32 0.0, %v1752
    %v1754 = vpop.f32.mrf.mxu0
    %v1755 = vadd.f32 0.0, %v1754
    %1756 = vdwg.mxu0
    %v1757 = vadd.f32 %v1604, %v1739
    %v1758 = vadd.f32 %v1605, %v1753
    %v1759 = vadd.f32 %v1606, %v1741
    %v1760 = vadd.f32 %v1607, %v1755
    %vm1761 = vcmp.eq.s32.totalorder %v1114, 4
    %vm1762 = vcmp.eq.s32.totalorder %v1115, 4
    %vm1763 = vcmp.eq.s32.totalorder %v1116, 4
    %vm1764 = vcmp.eq.s32.totalorder %v1117, 4
    %vm1765 = vcmp.eq.s32.totalorder %v1118, 4
    %vm1766 = vcmp.eq.s32.totalorder %v1119, 4
    %vm1767 = vcmp.eq.s32.totalorder %v1120, 4
    %vm1768 = vcmp.eq.s32.totalorder %v1121, 4
    %vm1769 = vcmp.eq.s32.totalorder %v1122, 4
    %vm1770 = vcmp.eq.s32.totalorder %v1123, 4
    %vm1771 = vcmp.eq.s32.totalorder %v1124, 4
    %vm1772 = vcmp.eq.s32.totalorder %v1125, 4
    %vm1773 = vcmp.eq.s32.totalorder %v1126, 4
    %vm1774 = vcmp.eq.s32.totalorder %v1127, 4
    %vm1775 = vcmp.eq.s32.totalorder %v1128, 4
    %vm1776 = vcmp.eq.s32.totalorder %v1129, 4
    %vm1777 = vcmp.eq.s32.totalorder %v1130, 4
    %vm1778 = vcmp.eq.s32.totalorder %v1131, 4
    %vm1779 = vcmp.eq.s32.totalorder %v1132, 4
    %vm1780 = vcmp.eq.s32.totalorder %v1133, 4
    %vm1781 = vcmp.eq.s32.totalorder %v1134, 4
    %vm1782 = vcmp.eq.s32.totalorder %v1135, 4
    %vm1783 = vcmp.eq.s32.totalorder %v1136, 4
    %vm1784 = vcmp.eq.s32.totalorder %v1137, 4
    %vm1785 = vcmp.eq.s32.totalorder %v1138, 4
    %vm1786 = vcmp.eq.s32.totalorder %v1139, 4
    %vm1787 = vcmp.eq.s32.totalorder %v1140, 4
    %vm1788 = vcmp.eq.s32.totalorder %v1141, 4
    %vm1789 = vcmp.eq.s32.totalorder %v1142, 4
    %vm1790 = vcmp.eq.s32.totalorder %v1143, 4
    %vm1791 = vcmp.eq.s32.totalorder %v1144, 4
    %vm1792 = vcmp.eq.s32.totalorder %v1145, 4
    %v1793 = vsel %vm1761, 1, 0
    %v1794 = vsel %vm1762, 1, 0
    %v1795 = vsel %vm1763, 1, 0
    %v1796 = vsel %vm1764, 1, 0
    %v1797 = vsel %vm1765, 1, 0
    %v1798 = vsel %vm1766, 1, 0
    %v1799 = vsel %vm1767, 1, 0
    %v1800 = vsel %vm1768, 1, 0
    %v1801 = vsel %vm1769, 1, 0
    %v1802 = vsel %vm1770, 1, 0
    %v1803 = vsel %vm1771, 1, 0
    %v1804 = vsel %vm1772, 1, 0
    %v1805 = vsel %vm1773, 1, 0
    %v1806 = vsel %vm1774, 1, 0
    %v1807 = vsel %vm1775, 1, 0
    %v1808 = vsel %vm1776, 1, 0
    %v1809 = vsel %vm1777, 1, 0
    %v1810 = vsel %vm1778, 1, 0
    %v1811 = vsel %vm1779, 1, 0
    %v1812 = vsel %vm1780, 1, 0
    %v1813 = vsel %vm1781, 1, 0
    %v1814 = vsel %vm1782, 1, 0
    %v1815 = vsel %vm1783, 1, 0
    %v1816 = vsel %vm1784, 1, 0
    %v1817 = vsel %vm1785, 1, 0
    %v1818 = vsel %vm1786, 1, 0
    %v1819 = vsel %vm1787, 1, 0
    %v1820 = vsel %vm1788, 1, 0
    %v1821 = vsel %vm1789, 1, 0
    %v1822 = vsel %vm1790, 1, 0
    %v1823 = vsel %vm1791, 1, 0
    %v1824 = vsel %vm1792, 1, 0
    %v1825 = vcvt.s32.f32 %v1793
    %v1826 = vcvt.s32.f32 %v1794
    %v1827 = vcvt.s32.f32 %v1795
    %v1828 = vcvt.s32.f32 %v1796
    %v1829 = vcvt.s32.f32 %v1797
    %v1830 = vcvt.s32.f32 %v1798
    %v1831 = vcvt.s32.f32 %v1799
    %v1832 = vcvt.s32.f32 %v1800
    %v1833 = vcvt.s32.f32 %v1801
    %v1834 = vcvt.s32.f32 %v1802
    %v1835 = vcvt.s32.f32 %v1803
    %v1836 = vcvt.s32.f32 %v1804
    %v1837 = vcvt.s32.f32 %v1805
    %v1838 = vcvt.s32.f32 %v1806
    %v1839 = vcvt.s32.f32 %v1807
    %v1840 = vcvt.s32.f32 %v1808
    %v1841 = vcvt.s32.f32 %v1809
    %v1842 = vcvt.s32.f32 %v1810
    %v1843 = vcvt.s32.f32 %v1811
    %v1844 = vcvt.s32.f32 %v1812
    %v1845 = vcvt.s32.f32 %v1813
    %v1846 = vcvt.s32.f32 %v1814
    %v1847 = vcvt.s32.f32 %v1815
    %v1848 = vcvt.s32.f32 %v1816
    %v1849 = vcvt.s32.f32 %v1817
    %v1850 = vcvt.s32.f32 %v1818
    %v1851 = vcvt.s32.f32 %v1819
    %v1852 = vcvt.s32.f32 %v1820
    %v1853 = vcvt.s32.f32 %v1821
    %v1854 = vcvt.s32.f32 %v1822
    %v1855 = vcvt.s32.f32 %v1823
    %v1856 = vcvt.s32.f32 %v1824
    %v1857 = vpack.c.bf16 %v1827, %v1825
    %v1858 = vpack.c.bf16 %v1828, %v1826
    %v1859 = vpack.c.bf16 %v1831, %v1829
    %v1860 = vpack.c.bf16 %v1832, %v1830
    %v1861 = vpack.c.bf16 %v1835, %v1833
    %v1862 = vpack.c.bf16 %v1836, %v1834
    %v1863 = vpack.c.bf16 %v1839, %v1837
    %v1864 = vpack.c.bf16 %v1840, %v1838
    %v1865 = vpack.c.bf16 %v1843, %v1841
    %v1866 = vpack.c.bf16 %v1844, %v1842
    %v1867 = vpack.c.bf16 %v1847, %v1845
    %v1868 = vpack.c.bf16 %v1848, %v1846
    %v1869 = vpack.c.bf16 %v1851, %v1849
    %v1870 = vpack.c.bf16 %v1852, %v1850
    %v1871 = vpack.c.bf16 %v1855, %v1853
    %v1872 = vpack.c.bf16 %v1856, %v1854
    %s1873 = scalar_lea.vmem %s4, 32
    %v1874 = vld [vmem:[%s1873] sm:$0xf]
    %v1875 = vld [vmem:[%s1873 + $0x4] sm:$0xf]
    %v1878 = vunpack.c.l.b16 %v1874
    %v1879 = vunpack.c.l.b16 %v1875
    %v1880 = vpack.c.b16 %v1879, %v1878
    %1882 = vmatpush.bf16.msra.mxu0 %v1871
    %1883 = vmatpush.bf16.msra.mxu0 %v1869
    %1884 = vmatpush.bf16.msra.mxu0 %v1867
    %1885 = vmatpush.bf16.msra.mxu0 %v1865
    %1886 = vmatpush.bf16.msra.mxu0 %v1863
    %1887 = vmatpush.bf16.msra.mxu0 %v1861
    %1888 = vmatpush.bf16.msra.mxu0 %v1859
    %1889 = vmatpush.bf16.msra.mxu0 %v1857
    %1890 = vmatmul.bf16.gmra.mxu0 %v1880
    %v1891 = vpop.f32.mrf.mxu0
    %v1892 = vadd.f32 0.0, %v1891
    %v1893 = vpop.f32.mrf.mxu0
    %v1894 = vadd.f32 0.0, %v1893
    %1895 = vdwg.mxu0
    %1896 = vmatpush.bf16.msra.mxu0 %v1872
    %1897 = vmatpush.bf16.msra.mxu0 %v1870
    %1898 = vmatpush.bf16.msra.mxu0 %v1868
    %1899 = vmatpush.bf16.msra.mxu0 %v1866
    %1900 = vmatpush.bf16.msra.mxu0 %v1864
    %1901 = vmatpush.bf16.msra.mxu0 %v1862
    %1902 = vmatpush.bf16.msra.mxu0 %v1860
    %1903 = vmatpush.bf16.msra.mxu0 %v1858
    %1904 = vmatmul.bf16.gmra.mxu0 %v1880
    %v1905 = vpop.f32.mrf.mxu0
    %v1906 = vadd.f32 0.0, %v1905
    %v1907 = vpop.f32.mrf.mxu0
    %v1908 = vadd.f32 0.0, %v1907
    %1909 = vdwg.mxu0
    %v1910 = vadd.f32 %v1757, %v1892
    %v1911 = vadd.f32 %v1758, %v1906
    %v1912 = vadd.f32 %v1759, %v1894
    %v1913 = vadd.f32 %v1760, %v1908
    %vm1914 = vcmp.eq.s32.totalorder %v1114, 5
    %vm1915 = vcmp.eq.s32.totalorder %v1115, 5
    %vm1916 = vcmp.eq.s32.totalorder %v1116, 5
    %vm1917 = vcmp.eq.s32.totalorder %v1117, 5
    %vm1918 = vcmp.eq.s32.totalorder %v1118, 5
    %vm1919 = vcmp.eq.s32.totalorder %v1119, 5
    %vm1920 = vcmp.eq.s32.totalorder %v1120, 5
    %vm1921 = vcmp.eq.s32.totalorder %v1121, 5
    %vm1922 = vcmp.eq.s32.totalorder %v1122, 5
    %vm1923 = vcmp.eq.s32.totalorder %v1123, 5
    %vm1924 = vcmp.eq.s32.totalorder %v1124, 5
    %vm1925 = vcmp.eq.s32.totalorder %v1125, 5
    %vm1926 = vcmp.eq.s32.totalorder %v1126, 5
    %vm1927 = vcmp.eq.s32.totalorder %v1127, 5
    %vm1928 = vcmp.eq.s32.totalorder %v1128, 5
    %vm1929 = vcmp.eq.s32.totalorder %v1129, 5
    %vm1930 = vcmp.eq.s32.totalorder %v1130, 5
    %vm1931 = vcmp.eq.s32.totalorder %v1131, 5
    %vm1932 = vcmp.eq.s32.totalorder %v1132, 5
    %vm1933 = vcmp.eq.s32.totalorder %v1133, 5
    %vm1934 = vcmp.eq.s32.totalorder %v1134, 5
    %vm1935 = vcmp.eq.s32.totalorder %v1135, 5
    %vm1936 = vcmp.eq.s32.totalorder %v1136, 5
    %vm1937 = vcmp.eq.s32.totalorder %v1137, 5
    %vm1938 = vcmp.eq.s32.totalorder %v1138, 5
    %vm1939 = vcmp.eq.s32.totalorder %v1139, 5
    %vm1940 = vcmp.eq.s32.totalorder %v1140, 5
    %vm1941 = vcmp.eq.s32.totalorder %v1141, 5
    %vm1942 = vcmp.eq.s32.totalorder %v1142, 5
    %vm1943 = vcmp.eq.s32.totalorder %v1143, 5
    %vm1944 = vcmp.eq.s32.totalorder %v1144, 5
    %vm1945 = vcmp.eq.s32.totalorder %v1145, 5
    %v1946 = vsel %vm1914, 1, 0
    %v1947 = vsel %vm1915, 1, 0
    %v1948 = vsel %vm1916, 1, 0
    %v1949 = vsel %vm1917, 1, 0
    %v1950 = vsel %vm1918, 1, 0
    %v1951 = vsel %vm1919, 1, 0
    %v1952 = vsel %vm1920, 1, 0
    %v1953 = vsel %vm1921, 1, 0
    %v1954 = vsel %vm1922, 1, 0
    %v1955 = vsel %vm1923, 1, 0
    %v1956 = vsel %vm1924, 1, 0
    %v1957 = vsel %vm1925, 1, 0
    %v1958 = vsel %vm1926, 1, 0
    %v1959 = vsel %vm1927, 1, 0
    %v1960 = vsel %vm1928, 1, 0
    %v1961 = vsel %vm1929, 1, 0
    %v1962 = vsel %vm1930, 1, 0
    %v1963 = vsel %vm1931, 1, 0
    %v1964 = vsel %vm1932, 1, 0
    %v1965 = vsel %vm1933, 1, 0
    %v1966 = vsel %vm1934, 1, 0
    %v1967 = vsel %vm1935, 1, 0
    %v1968 = vsel %vm1936, 1, 0
    %v1969 = vsel %vm1937, 1, 0
    %v1970 = vsel %vm1938, 1, 0
    %v1971 = vsel %vm1939, 1, 0
    %v1972 = vsel %vm1940, 1, 0
    %v1973 = vsel %vm1941, 1, 0
    %v1974 = vsel %vm1942, 1, 0
    %v1975 = vsel %vm1943, 1, 0
    %v1976 = vsel %vm1944, 1, 0
    %v1977 = vsel %vm1945, 1, 0
    %v1978 = vcvt.s32.f32 %v1946
    %v1979 = vcvt.s32.f32 %v1947
    %v1980 = vcvt.s32.f32 %v1948
    %v1981 = vcvt.s32.f32 %v1949
    %v1982 = vcvt.s32.f32 %v1950
    %v1983 = vcvt.s32.f32 %v1951
    %v1984 = vcvt.s32.f32 %v1952
    %v1985 = vcvt.s32.f32 %v1953
    %v1986 = vcvt.s32.f32 %v1954
    %v1987 = vcvt.s32.f32 %v1955
    %v1988 = vcvt.s32.f32 %v1956
    %v1989 = vcvt.s32.f32 %v1957
    %v1990 = vcvt.s32.f32 %v1958
    %v1991 = vcvt.s32.f32 %v1959
    %v1992 = vcvt.s32.f32 %v1960
    %v1993 = vcvt.s32.f32 %v1961
    %v1994 = vcvt.s32.f32 %v1962
    %v1995 = vcvt.s32.f32 %v1963
    %v1996 = vcvt.s32.f32 %v1964
    %v1997 = vcvt.s32.f32 %v1965
    %v1998 = vcvt.s32.f32 %v1966
    %v1999 = vcvt.s32.f32 %v1967
    %v2000 = vcvt.s32.f32 %v1968
    %v2001 = vcvt.s32.f32 %v1969
    %v2002 = vcvt.s32.f32 %v1970
    %v2003 = vcvt.s32.f32 %v1971
    %v2004 = vcvt.s32.f32 %v1972
    %v2005 = vcvt.s32.f32 %v1973
    %v2006 = vcvt.s32.f32 %v1974
    %v2007 = vcvt.s32.f32 %v1975
    %v2008 = vcvt.s32.f32 %v1976
    %v2009 = vcvt.s32.f32 %v1977
    %v2010 = vpack.c.bf16 %v1980, %v1978
    %v2011 = vpack.c.bf16 %v1981, %v1979
    %v2012 = vpack.c.bf16 %v1984, %v1982
    %v2013 = vpack.c.bf16 %v1985, %v1983
    %v2014 = vpack.c.bf16 %v1988, %v1986
    %v2015 = vpack.c.bf16 %v1989, %v1987
    %v2016 = vpack.c.bf16 %v1992, %v1990
    %v2017 = vpack.c.bf16 %v1993, %v1991
    %v2018 = vpack.c.bf16 %v1996, %v1994
    %v2019 = vpack.c.bf16 %v1997, %v1995
    %v2020 = vpack.c.bf16 %v2000, %v1998
    %v2021 = vpack.c.bf16 %v2001, %v1999
    %v2022 = vpack.c.bf16 %v2004, %v2002
    %v2023 = vpack.c.bf16 %v2005, %v2003
    %v2024 = vpack.c.bf16 %v2008, %v2006
    %v2025 = vpack.c.bf16 %v2009, %v2007
    %s2026 = scalar_lea.vmem %s4, 40
    %v2027 = vld [vmem:[%s2026] sm:$0xf]
    %v2028 = vld [vmem:[%s2026 + $0x4] sm:$0xf]
    %v2031 = vunpack.c.l.b16 %v2027
    %v2032 = vunpack.c.l.b16 %v2028
    %v2033 = vpack.c.b16 %v2032, %v2031
    %2035 = vmatpush.bf16.msra.mxu0 %v2024
    %2036 = vmatpush.bf16.msra.mxu0 %v2022
    %2037 = vmatpush.bf16.msra.mxu0 %v2020
    %2038 = vmatpush.bf16.msra.mxu0 %v2018
    %2039 = vmatpush.bf16.msra.mxu0 %v2016
    %2040 = vmatpush.bf16.msra.mxu0 %v2014
    %2041 = vmatpush.bf16.msra.mxu0 %v2012
    %2042 = vmatpush.bf16.msra.mxu0 %v2010
    %2043 = vmatmul.bf16.gmra.mxu0 %v2033
    %v2044 = vpop.f32.mrf.mxu0
    %v2045 = vadd.f32 0.0, %v2044
    %v2046 = vpop.f32.mrf.mxu0
    %v2047 = vadd.f32 0.0, %v2046
    %2048 = vdwg.mxu0
    %2049 = vmatpush.bf16.msra.mxu0 %v2025
    %2050 = vmatpush.bf16.msra.mxu0 %v2023
    %2051 = vmatpush.bf16.msra.mxu0 %v2021
    %2052 = vmatpush.bf16.msra.mxu0 %v2019
    %2053 = vmatpush.bf16.msra.mxu0 %v2017
    %2054 = vmatpush.bf16.msra.mxu0 %v2015
    %2055 = vmatpush.bf16.msra.mxu0 %v2013
    %2056 = vmatpush.bf16.msra.mxu0 %v2011
    %2057 = vmatmul.bf16.gmra.mxu0 %v2033
    %v2058 = vpop.f32.mrf.mxu0
    %v2059 = vadd.f32 0.0, %v2058
    %v2060 = vpop.f32.mrf.mxu0
    %v2061 = vadd.f32 0.0, %v2060
    %2062 = vdwg.mxu0
    %v2063 = vadd.f32 %v1910, %v2045
    %v2064 = vadd.f32 %v1911, %v2059
    %v2065 = vadd.f32 %v1912, %v2047
    %v2066 = vadd.f32 %v1913, %v2061
    %vm2067 = vcmp.eq.s32.totalorder %v1114, 6
    %vm2068 = vcmp.eq.s32.totalorder %v1115, 6
    %vm2069 = vcmp.eq.s32.totalorder %v1116, 6
    %vm2070 = vcmp.eq.s32.totalorder %v1117, 6
    %vm2071 = vcmp.eq.s32.totalorder %v1118, 6
    %vm2072 = vcmp.eq.s32.totalorder %v1119, 6
    %vm2073 = vcmp.eq.s32.totalorder %v1120, 6
    %vm2074 = vcmp.eq.s32.totalorder %v1121, 6
    %vm2075 = vcmp.eq.s32.totalorder %v1122, 6
    %vm2076 = vcmp.eq.s32.totalorder %v1123, 6
    %vm2077 = vcmp.eq.s32.totalorder %v1124, 6
    %vm2078 = vcmp.eq.s32.totalorder %v1125, 6
    %vm2079 = vcmp.eq.s32.totalorder %v1126, 6
    %vm2080 = vcmp.eq.s32.totalorder %v1127, 6
    %vm2081 = vcmp.eq.s32.totalorder %v1128, 6
    %vm2082 = vcmp.eq.s32.totalorder %v1129, 6
    %vm2083 = vcmp.eq.s32.totalorder %v1130, 6
    %vm2084 = vcmp.eq.s32.totalorder %v1131, 6
    %vm2085 = vcmp.eq.s32.totalorder %v1132, 6
    %vm2086 = vcmp.eq.s32.totalorder %v1133, 6
    %vm2087 = vcmp.eq.s32.totalorder %v1134, 6
    %vm2088 = vcmp.eq.s32.totalorder %v1135, 6
    %vm2089 = vcmp.eq.s32.totalorder %v1136, 6
    %vm2090 = vcmp.eq.s32.totalorder %v1137, 6
    %vm2091 = vcmp.eq.s32.totalorder %v1138, 6
    %vm2092 = vcmp.eq.s32.totalorder %v1139, 6
    %vm2093 = vcmp.eq.s32.totalorder %v1140, 6
    %vm2094 = vcmp.eq.s32.totalorder %v1141, 6
    %vm2095 = vcmp.eq.s32.totalorder %v1142, 6
    %vm2096 = vcmp.eq.s32.totalorder %v1143, 6
    %vm2097 = vcmp.eq.s32.totalorder %v1144, 6
    %vm2098 = vcmp.eq.s32.totalorder %v1145, 6
    %v2099 = vsel %vm2067, 1, 0
    %v2100 = vsel %vm2068, 1, 0
    %v2101 = vsel %vm2069, 1, 0
    %v2102 = vsel %vm2070, 1, 0
    %v2103 = vsel %vm2071, 1, 0
    %v2104 = vsel %vm2072, 1, 0
    %v2105 = vsel %vm2073, 1, 0
    %v2106 = vsel %vm2074, 1, 0
    %v2107 = vsel %vm2075, 1, 0
    %v2108 = vsel %vm2076, 1, 0
    %v2109 = vsel %vm2077, 1, 0
    %v2110 = vsel %vm2078, 1, 0
    %v2111 = vsel %vm2079, 1, 0
    %v2112 = vsel %vm2080, 1, 0
    %v2113 = vsel %vm2081, 1, 0
    %v2114 = vsel %vm2082, 1, 0
    %v2115 = vsel %vm2083, 1, 0
    %v2116 = vsel %vm2084, 1, 0
    %v2117 = vsel %vm2085, 1, 0
    %v2118 = vsel %vm2086, 1, 0
    %v2119 = vsel %vm2087, 1, 0
    %v2120 = vsel %vm2088, 1, 0
    %v2121 = vsel %vm2089, 1, 0
    %v2122 = vsel %vm2090, 1, 0
    %v2123 = vsel %vm2091, 1, 0
    %v2124 = vsel %vm2092, 1, 0
    %v2125 = vsel %vm2093, 1, 0
    %v2126 = vsel %vm2094, 1, 0
    %v2127 = vsel %vm2095, 1, 0
    %v2128 = vsel %vm2096, 1, 0
    %v2129 = vsel %vm2097, 1, 0
    %v2130 = vsel %vm2098, 1, 0
    %v2131 = vcvt.s32.f32 %v2099
    %v2132 = vcvt.s32.f32 %v2100
    %v2133 = vcvt.s32.f32 %v2101
    %v2134 = vcvt.s32.f32 %v2102
    %v2135 = vcvt.s32.f32 %v2103
    %v2136 = vcvt.s32.f32 %v2104
    %v2137 = vcvt.s32.f32 %v2105
    %v2138 = vcvt.s32.f32 %v2106
    %v2139 = vcvt.s32.f32 %v2107
    %v2140 = vcvt.s32.f32 %v2108
    %v2141 = vcvt.s32.f32 %v2109
    %v2142 = vcvt.s32.f32 %v2110
    %v2143 = vcvt.s32.f32 %v2111
    %v2144 = vcvt.s32.f32 %v2112
    %v2145 = vcvt.s32.f32 %v2113
    %v2146 = vcvt.s32.f32 %v2114
    %v2147 = vcvt.s32.f32 %v2115
    %v2148 = vcvt.s32.f32 %v2116
    %v2149 = vcvt.s32.f32 %v2117
    %v2150 = vcvt.s32.f32 %v2118
    %v2151 = vcvt.s32.f32 %v2119
    %v2152 = vcvt.s32.f32 %v2120
    %v2153 = vcvt.s32.f32 %v2121
    %v2154 = vcvt.s32.f32 %v2122
    %v2155 = vcvt.s32.f32 %v2123
    %v2156 = vcvt.s32.f32 %v2124
    %v2157 = vcvt.s32.f32 %v2125
    %v2158 = vcvt.s32.f32 %v2126
    %v2159 = vcvt.s32.f32 %v2127
    %v2160 = vcvt.s32.f32 %v2128
    %v2161 = vcvt.s32.f32 %v2129
    %v2162 = vcvt.s32.f32 %v2130
    %v2163 = vpack.c.bf16 %v2133, %v2131
    %v2164 = vpack.c.bf16 %v2134, %v2132
    %v2165 = vpack.c.bf16 %v2137, %v2135
    %v2166 = vpack.c.bf16 %v2138, %v2136
    %v2167 = vpack.c.bf16 %v2141, %v2139
    %v2168 = vpack.c.bf16 %v2142, %v2140
    %v2169 = vpack.c.bf16 %v2145, %v2143
    %v2170 = vpack.c.bf16 %v2146, %v2144
    %v2171 = vpack.c.bf16 %v2149, %v2147
    %v2172 = vpack.c.bf16 %v2150, %v2148
    %v2173 = vpack.c.bf16 %v2153, %v2151
    %v2174 = vpack.c.bf16 %v2154, %v2152
    %v2175 = vpack.c.bf16 %v2157, %v2155
    %v2176 = vpack.c.bf16 %v2158, %v2156
    %v2177 = vpack.c.bf16 %v2161, %v2159
    %v2178 = vpack.c.bf16 %v2162, %v2160
    %s2179 = scalar_lea.vmem %s4, 48
    %v2180 = vld [vmem:[%s2179] sm:$0xf]
    %v2181 = vld [vmem:[%s2179 + $0x4] sm:$0xf]
    %v2184 = vunpack.c.l.b16 %v2180
    %v2185 = vunpack.c.l.b16 %v2181
    %v2186 = vpack.c.b16 %v2185, %v2184
    %2188 = vmatpush.bf16.msra.mxu0 %v2177
    %2189 = vmatpush.bf16.msra.mxu0 %v2175
    %2190 = vmatpush.bf16.msra.mxu0 %v2173
    %2191 = vmatpush.bf16.msra.mxu0 %v2171
    %2192 = vmatpush.bf16.msra.mxu0 %v2169
    %2193 = vmatpush.bf16.msra.mxu0 %v2167
    %2194 = vmatpush.bf16.msra.mxu0 %v2165
    %2195 = vmatpush.bf16.msra.mxu0 %v2163
    %2196 = vmatmul.bf16.gmra.mxu0 %v2186
    %v2197 = vpop.f32.mrf.mxu0
    %v2198 = vadd.f32 0.0, %v2197
    %v2199 = vpop.f32.mrf.mxu0
    %v2200 = vadd.f32 0.0, %v2199
    %2201 = vdwg.mxu0
    %2202 = vmatpush.bf16.msra.mxu0 %v2178
    %2203 = vmatpush.bf16.msra.mxu0 %v2176
    %2204 = vmatpush.bf16.msra.mxu0 %v2174
    %2205 = vmatpush.bf16.msra.mxu0 %v2172
    %2206 = vmatpush.bf16.msra.mxu0 %v2170
    %2207 = vmatpush.bf16.msra.mxu0 %v2168
    %2208 = vmatpush.bf16.msra.mxu0 %v2166
    %2209 = vmatpush.bf16.msra.mxu0 %v2164
    %2210 = vmatmul.bf16.gmra.mxu0 %v2186
    %v2211 = vpop.f32.mrf.mxu0
    %v2212 = vadd.f32 0.0, %v2211
    %v2213 = vpop.f32.mrf.mxu0
    %v2214 = vadd.f32 0.0, %v2213
    %2215 = vdwg.mxu0
    %v2216 = vadd.f32 %v2063, %v2198
    %v2217 = vadd.f32 %v2064, %v2212
    %v2218 = vadd.f32 %v2065, %v2200
    %v2219 = vadd.f32 %v2066, %v2214
    %vm2220 = vcmp.eq.s32.totalorder %v1114, 7
    %vm2221 = vcmp.eq.s32.totalorder %v1115, 7
    %vm2222 = vcmp.eq.s32.totalorder %v1116, 7
    %vm2223 = vcmp.eq.s32.totalorder %v1117, 7
    %vm2224 = vcmp.eq.s32.totalorder %v1118, 7
    %vm2225 = vcmp.eq.s32.totalorder %v1119, 7
    %vm2226 = vcmp.eq.s32.totalorder %v1120, 7
    %vm2227 = vcmp.eq.s32.totalorder %v1121, 7
    %vm2228 = vcmp.eq.s32.totalorder %v1122, 7
    %vm2229 = vcmp.eq.s32.totalorder %v1123, 7
    %vm2230 = vcmp.eq.s32.totalorder %v1124, 7
    %vm2231 = vcmp.eq.s32.totalorder %v1125, 7
    %vm2232 = vcmp.eq.s32.totalorder %v1126, 7
    %vm2233 = vcmp.eq.s32.totalorder %v1127, 7
    %vm2234 = vcmp.eq.s32.totalorder %v1128, 7
    %vm2235 = vcmp.eq.s32.totalorder %v1129, 7
    %vm2236 = vcmp.eq.s32.totalorder %v1130, 7
    %vm2237 = vcmp.eq.s32.totalorder %v1131, 7
    %vm2238 = vcmp.eq.s32.totalorder %v1132, 7
    %vm2239 = vcmp.eq.s32.totalorder %v1133, 7
    %vm2240 = vcmp.eq.s32.totalorder %v1134, 7
    %vm2241 = vcmp.eq.s32.totalorder %v1135, 7
    %vm2242 = vcmp.eq.s32.totalorder %v1136, 7
    %vm2243 = vcmp.eq.s32.totalorder %v1137, 7
    %vm2244 = vcmp.eq.s32.totalorder %v1138, 7
    %vm2245 = vcmp.eq.s32.totalorder %v1139, 7
    %vm2246 = vcmp.eq.s32.totalorder %v1140, 7
    %vm2247 = vcmp.eq.s32.totalorder %v1141, 7
    %vm2248 = vcmp.eq.s32.totalorder %v1142, 7
    %vm2249 = vcmp.eq.s32.totalorder %v1143, 7
    %vm2250 = vcmp.eq.s32.totalorder %v1144, 7
    %vm2251 = vcmp.eq.s32.totalorder %v1145, 7
    %v2252 = vsel %vm2220, 1, 0
    %v2253 = vsel %vm2221, 1, 0
    %v2254 = vsel %vm2222, 1, 0
    %v2255 = vsel %vm2223, 1, 0
    %v2256 = vsel %vm2224, 1, 0
    %v2257 = vsel %vm2225, 1, 0
    %v2258 = vsel %vm2226, 1, 0
    %v2259 = vsel %vm2227, 1, 0
    %v2260 = vsel %vm2228, 1, 0
    %v2261 = vsel %vm2229, 1, 0
    %v2262 = vsel %vm2230, 1, 0
    %v2263 = vsel %vm2231, 1, 0
    %v2264 = vsel %vm2232, 1, 0
    %v2265 = vsel %vm2233, 1, 0
    %v2266 = vsel %vm2234, 1, 0
    %v2267 = vsel %vm2235, 1, 0
    %v2268 = vsel %vm2236, 1, 0
    %v2269 = vsel %vm2237, 1, 0
    %v2270 = vsel %vm2238, 1, 0
    %v2271 = vsel %vm2239, 1, 0
    %v2272 = vsel %vm2240, 1, 0
    %v2273 = vsel %vm2241, 1, 0
    %v2274 = vsel %vm2242, 1, 0
    %v2275 = vsel %vm2243, 1, 0
    %v2276 = vsel %vm2244, 1, 0
    %v2277 = vsel %vm2245, 1, 0
    %v2278 = vsel %vm2246, 1, 0
    %v2279 = vsel %vm2247, 1, 0
    %v2280 = vsel %vm2248, 1, 0
    %v2281 = vsel %vm2249, 1, 0
    %v2282 = vsel %vm2250, 1, 0
    %v2283 = vsel %vm2251, 1, 0
    %v2284 = vcvt.s32.f32 %v2252
    %v2285 = vcvt.s32.f32 %v2253
    %v2286 = vcvt.s32.f32 %v2254
    %v2287 = vcvt.s32.f32 %v2255
    %v2288 = vcvt.s32.f32 %v2256
    %v2289 = vcvt.s32.f32 %v2257
    %v2290 = vcvt.s32.f32 %v2258
    %v2291 = vcvt.s32.f32 %v2259
    %v2292 = vcvt.s32.f32 %v2260
    %v2293 = vcvt.s32.f32 %v2261
    %v2294 = vcvt.s32.f32 %v2262
    %v2295 = vcvt.s32.f32 %v2263
    %v2296 = vcvt.s32.f32 %v2264
    %v2297 = vcvt.s32.f32 %v2265
    %v2298 = vcvt.s32.f32 %v2266
    %v2299 = vcvt.s32.f32 %v2267
    %v2300 = vcvt.s32.f32 %v2268
    %v2301 = vcvt.s32.f32 %v2269
    %v2302 = vcvt.s32.f32 %v2270
    %v2303 = vcvt.s32.f32 %v2271
    %v2304 = vcvt.s32.f32 %v2272
    %v2305 = vcvt.s32.f32 %v2273
    %v2306 = vcvt.s32.f32 %v2274
    %v2307 = vcvt.s32.f32 %v2275
    %v2308 = vcvt.s32.f32 %v2276
    %v2309 = vcvt.s32.f32 %v2277
    %v2310 = vcvt.s32.f32 %v2278
    %v2311 = vcvt.s32.f32 %v2279
    %v2312 = vcvt.s32.f32 %v2280
    %v2313 = vcvt.s32.f32 %v2281
    %v2314 = vcvt.s32.f32 %v2282
    %v2315 = vcvt.s32.f32 %v2283
    %v2316 = vpack.c.bf16 %v2286, %v2284
    %v2317 = vpack.c.bf16 %v2287, %v2285
    %v2318 = vpack.c.bf16 %v2290, %v2288
    %v2319 = vpack.c.bf16 %v2291, %v2289
    %v2320 = vpack.c.bf16 %v2294, %v2292
    %v2321 = vpack.c.bf16 %v2295, %v2293
    %v2322 = vpack.c.bf16 %v2298, %v2296
    %v2323 = vpack.c.bf16 %v2299, %v2297
    %v2324 = vpack.c.bf16 %v2302, %v2300
    %v2325 = vpack.c.bf16 %v2303, %v2301
    %v2326 = vpack.c.bf16 %v2306, %v2304
    %v2327 = vpack.c.bf16 %v2307, %v2305
    %v2328 = vpack.c.bf16 %v2310, %v2308
    %v2329 = vpack.c.bf16 %v2311, %v2309
    %v2330 = vpack.c.bf16 %v2314, %v2312
    %v2331 = vpack.c.bf16 %v2315, %v2313
    %s2332 = scalar_lea.vmem %s4, 56
    %v2333 = vld [vmem:[%s2332] sm:$0xf]
    %v2334 = vld [vmem:[%s2332 + $0x4] sm:$0xf]
    %v2337 = vunpack.c.l.b16 %v2333
    %v2338 = vunpack.c.l.b16 %v2334
    %v2339 = vpack.c.b16 %v2338, %v2337
    %2341 = vmatpush.bf16.msra.mxu0 %v2330
    %2342 = vmatpush.bf16.msra.mxu0 %v2328
    %2343 = vmatpush.bf16.msra.mxu0 %v2326
    %2344 = vmatpush.bf16.msra.mxu0 %v2324
    %2345 = vmatpush.bf16.msra.mxu0 %v2322
    %2346 = vmatpush.bf16.msra.mxu0 %v2320
    %2347 = vmatpush.bf16.msra.mxu0 %v2318
    %2348 = vmatpush.bf16.msra.mxu0 %v2316
    %2349 = vmatmul.bf16.gmra.mxu0 %v2339
    %v2350 = vpop.f32.mrf.mxu0
    %v2351 = vadd.f32 0.0, %v2350
    %v2352 = vpop.f32.mrf.mxu0
    %v2353 = vadd.f32 0.0, %v2352
    %2354 = vdwg.mxu0
    %2355 = vmatpush.bf16.msra.mxu0 %v2331
    %2356 = vmatpush.bf16.msra.mxu0 %v2329
    %2357 = vmatpush.bf16.msra.mxu0 %v2327
    %2358 = vmatpush.bf16.msra.mxu0 %v2325
    %2359 = vmatpush.bf16.msra.mxu0 %v2323
    %2360 = vmatpush.bf16.msra.mxu0 %v2321
    %2361 = vmatpush.bf16.msra.mxu0 %v2319
    %2362 = vmatpush.bf16.msra.mxu0 %v2317
    %2363 = vmatmul.bf16.gmra.mxu0 %v2339
    %v2364 = vpop.f32.mrf.mxu0
    %v2365 = vadd.f32 0.0, %v2364
    %v2366 = vpop.f32.mrf.mxu0
    %v2367 = vadd.f32 0.0, %v2366
    %2368 = vdwg.mxu0
    %v2369 = vadd.f32 %v2216, %v2351
    %v2370 = vadd.f32 %v2217, %v2365
    %v2371 = vadd.f32 %v2218, %v2353
    %v2372 = vadd.f32 %v2219, %v2367
    %vm2373 = vcmp.eq.s32.totalorder %v1114, 8
    %vm2374 = vcmp.eq.s32.totalorder %v1115, 8
    %vm2375 = vcmp.eq.s32.totalorder %v1116, 8
    %vm2376 = vcmp.eq.s32.totalorder %v1117, 8
    %vm2377 = vcmp.eq.s32.totalorder %v1118, 8
    %vm2378 = vcmp.eq.s32.totalorder %v1119, 8
    %vm2379 = vcmp.eq.s32.totalorder %v1120, 8
    %vm2380 = vcmp.eq.s32.totalorder %v1121, 8
    %vm2381 = vcmp.eq.s32.totalorder %v1122, 8
    %vm2382 = vcmp.eq.s32.totalorder %v1123, 8
    %vm2383 = vcmp.eq.s32.totalorder %v1124, 8
    %vm2384 = vcmp.eq.s32.totalorder %v1125, 8
    %vm2385 = vcmp.eq.s32.totalorder %v1126, 8
    %vm2386 = vcmp.eq.s32.totalorder %v1127, 8
    %vm2387 = vcmp.eq.s32.totalorder %v1128, 8
    %vm2388 = vcmp.eq.s32.totalorder %v1129, 8
    %vm2389 = vcmp.eq.s32.totalorder %v1130, 8
    %vm2390 = vcmp.eq.s32.totalorder %v1131, 8
    %vm2391 = vcmp.eq.s32.totalorder %v1132, 8
    %vm2392 = vcmp.eq.s32.totalorder %v1133, 8
    %vm2393 = vcmp.eq.s32.totalorder %v1134, 8
    %vm2394 = vcmp.eq.s32.totalorder %v1135, 8
    %vm2395 = vcmp.eq.s32.totalorder %v1136, 8
    %vm2396 = vcmp.eq.s32.totalorder %v1137, 8
    %vm2397 = vcmp.eq.s32.totalorder %v1138, 8
    %vm2398 = vcmp.eq.s32.totalorder %v1139, 8
    %vm2399 = vcmp.eq.s32.totalorder %v1140, 8
    %vm2400 = vcmp.eq.s32.totalorder %v1141, 8
    %vm2401 = vcmp.eq.s32.totalorder %v1142, 8
    %vm2402 = vcmp.eq.s32.totalorder %v1143, 8
    %vm2403 = vcmp.eq.s32.totalorder %v1144, 8
    %vm2404 = vcmp.eq.s32.totalorder %v1145, 8
    %v2405 = vsel %vm2373, 1, 0
    %v2406 = vsel %vm2374, 1, 0
    %v2407 = vsel %vm2375, 1, 0
    %v2408 = vsel %vm2376, 1, 0
    %v2409 = vsel %vm2377, 1, 0
    %v2410 = vsel %vm2378, 1, 0
    %v2411 = vsel %vm2379, 1, 0
    %v2412 = vsel %vm2380, 1, 0
    %v2413 = vsel %vm2381, 1, 0
    %v2414 = vsel %vm2382, 1, 0
    %v2415 = vsel %vm2383, 1, 0
    %v2416 = vsel %vm2384, 1, 0
    %v2417 = vsel %vm2385, 1, 0
    %v2418 = vsel %vm2386, 1, 0
    %v2419 = vsel %vm2387, 1, 0
    %v2420 = vsel %vm2388, 1, 0
    %v2421 = vsel %vm2389, 1, 0
    %v2422 = vsel %vm2390, 1, 0
    %v2423 = vsel %vm2391, 1, 0
    %v2424 = vsel %vm2392, 1, 0
    %v2425 = vsel %vm2393, 1, 0
    %v2426 = vsel %vm2394, 1, 0
    %v2427 = vsel %vm2395, 1, 0
    %v2428 = vsel %vm2396, 1, 0
    %v2429 = vsel %vm2397, 1, 0
    %v2430 = vsel %vm2398, 1, 0
    %v2431 = vsel %vm2399, 1, 0
    %v2432 = vsel %vm2400, 1, 0
    %v2433 = vsel %vm2401, 1, 0
    %v2434 = vsel %vm2402, 1, 0
    %v2435 = vsel %vm2403, 1, 0
    %v2436 = vsel %vm2404, 1, 0
    %v2437 = vcvt.s32.f32 %v2405
    %v2438 = vcvt.s32.f32 %v2406
    %v2439 = vcvt.s32.f32 %v2407
    %v2440 = vcvt.s32.f32 %v2408
    %v2441 = vcvt.s32.f32 %v2409
    %v2442 = vcvt.s32.f32 %v2410
    %v2443 = vcvt.s32.f32 %v2411
    %v2444 = vcvt.s32.f32 %v2412
    %v2445 = vcvt.s32.f32 %v2413
    %v2446 = vcvt.s32.f32 %v2414
    %v2447 = vcvt.s32.f32 %v2415
    %v2448 = vcvt.s32.f32 %v2416
    %v2449 = vcvt.s32.f32 %v2417
    %v2450 = vcvt.s32.f32 %v2418
    %v2451 = vcvt.s32.f32 %v2419
    %v2452 = vcvt.s32.f32 %v2420
    %v2453 = vcvt.s32.f32 %v2421
    %v2454 = vcvt.s32.f32 %v2422
    %v2455 = vcvt.s32.f32 %v2423
    %v2456 = vcvt.s32.f32 %v2424
    %v2457 = vcvt.s32.f32 %v2425
    %v2458 = vcvt.s32.f32 %v2426
    %v2459 = vcvt.s32.f32 %v2427
    %v2460 = vcvt.s32.f32 %v2428
    %v2461 = vcvt.s32.f32 %v2429
    %v2462 = vcvt.s32.f32 %v2430
    %v2463 = vcvt.s32.f32 %v2431
    %v2464 = vcvt.s32.f32 %v2432
    %v2465 = vcvt.s32.f32 %v2433
    %v2466 = vcvt.s32.f32 %v2434
    %v2467 = vcvt.s32.f32 %v2435
    %v2468 = vcvt.s32.f32 %v2436
    %v2469 = vpack.c.bf16 %v2439, %v2437
    %v2470 = vpack.c.bf16 %v2440, %v2438
    %v2471 = vpack.c.bf16 %v2443, %v2441
    %v2472 = vpack.c.bf16 %v2444, %v2442
    %v2473 = vpack.c.bf16 %v2447, %v2445
    %v2474 = vpack.c.bf16 %v2448, %v2446
    %v2475 = vpack.c.bf16 %v2451, %v2449
    %v2476 = vpack.c.bf16 %v2452, %v2450
    %v2477 = vpack.c.bf16 %v2455, %v2453
    %v2478 = vpack.c.bf16 %v2456, %v2454
    %v2479 = vpack.c.bf16 %v2459, %v2457
    %v2480 = vpack.c.bf16 %v2460, %v2458
    %v2481 = vpack.c.bf16 %v2463, %v2461
    %v2482 = vpack.c.bf16 %v2464, %v2462
    %v2483 = vpack.c.bf16 %v2467, %v2465
    %v2484 = vpack.c.bf16 %v2468, %v2466
    %s2485 = scalar_lea.vmem %s4, 64
    %v2486 = vld [vmem:[%s2485] sm:$0xf]
    %v2487 = vld [vmem:[%s2485 + $0x4] sm:$0xf]
    %v2490 = vunpack.c.l.b16 %v2486
    %v2491 = vunpack.c.l.b16 %v2487
    %v2492 = vpack.c.b16 %v2491, %v2490
    %2494 = vmatpush.bf16.msra.mxu0 %v2483
    %2495 = vmatpush.bf16.msra.mxu0 %v2481
    %2496 = vmatpush.bf16.msra.mxu0 %v2479
    %2497 = vmatpush.bf16.msra.mxu0 %v2477
    %2498 = vmatpush.bf16.msra.mxu0 %v2475
    %2499 = vmatpush.bf16.msra.mxu0 %v2473
    %2500 = vmatpush.bf16.msra.mxu0 %v2471
    %2501 = vmatpush.bf16.msra.mxu0 %v2469
    %2502 = vmatmul.bf16.gmra.mxu0 %v2492
    %v2503 = vpop.f32.mrf.mxu0
    %v2504 = vadd.f32 0.0, %v2503
    %v2505 = vpop.f32.mrf.mxu0
    %v2506 = vadd.f32 0.0, %v2505
    %2507 = vdwg.mxu0
    %2508 = vmatpush.bf16.msra.mxu0 %v2484
    %2509 = vmatpush.bf16.msra.mxu0 %v2482
    %2510 = vmatpush.bf16.msra.mxu0 %v2480
    %2511 = vmatpush.bf16.msra.mxu0 %v2478
    %2512 = vmatpush.bf16.msra.mxu0 %v2476
    %2513 = vmatpush.bf16.msra.mxu0 %v2474
    %2514 = vmatpush.bf16.msra.mxu0 %v2472
    %2515 = vmatpush.bf16.msra.mxu0 %v2470
    %2516 = vmatmul.bf16.gmra.mxu0 %v2492
    %v2517 = vpop.f32.mrf.mxu0
    %v2518 = vadd.f32 0.0, %v2517
    %v2519 = vpop.f32.mrf.mxu0
    %v2520 = vadd.f32 0.0, %v2519
    %2521 = vdwg.mxu0
    %v2522 = vadd.f32 %v2369, %v2504
    %v2523 = vadd.f32 %v2370, %v2518
    %v2524 = vadd.f32 %v2371, %v2506
    %v2525 = vadd.f32 %v2372, %v2520
    %vm2526 = vcmp.eq.s32.totalorder %v1114, 9
    %vm2527 = vcmp.eq.s32.totalorder %v1115, 9
    %vm2528 = vcmp.eq.s32.totalorder %v1116, 9
    %vm2529 = vcmp.eq.s32.totalorder %v1117, 9
    %vm2530 = vcmp.eq.s32.totalorder %v1118, 9
    %vm2531 = vcmp.eq.s32.totalorder %v1119, 9
    %vm2532 = vcmp.eq.s32.totalorder %v1120, 9
    %vm2533 = vcmp.eq.s32.totalorder %v1121, 9
    %vm2534 = vcmp.eq.s32.totalorder %v1122, 9
    %vm2535 = vcmp.eq.s32.totalorder %v1123, 9
    %vm2536 = vcmp.eq.s32.totalorder %v1124, 9
    %vm2537 = vcmp.eq.s32.totalorder %v1125, 9
    %vm2538 = vcmp.eq.s32.totalorder %v1126, 9
    %vm2539 = vcmp.eq.s32.totalorder %v1127, 9
    %vm2540 = vcmp.eq.s32.totalorder %v1128, 9
    %vm2541 = vcmp.eq.s32.totalorder %v1129, 9
    %vm2542 = vcmp.eq.s32.totalorder %v1130, 9
    %vm2543 = vcmp.eq.s32.totalorder %v1131, 9
    %vm2544 = vcmp.eq.s32.totalorder %v1132, 9
    %vm2545 = vcmp.eq.s32.totalorder %v1133, 9
    %vm2546 = vcmp.eq.s32.totalorder %v1134, 9
    %vm2547 = vcmp.eq.s32.totalorder %v1135, 9
    %vm2548 = vcmp.eq.s32.totalorder %v1136, 9
    %vm2549 = vcmp.eq.s32.totalorder %v1137, 9
    %vm2550 = vcmp.eq.s32.totalorder %v1138, 9
    %vm2551 = vcmp.eq.s32.totalorder %v1139, 9
    %vm2552 = vcmp.eq.s32.totalorder %v1140, 9
    %vm2553 = vcmp.eq.s32.totalorder %v1141, 9
    %vm2554 = vcmp.eq.s32.totalorder %v1142, 9
    %vm2555 = vcmp.eq.s32.totalorder %v1143, 9
    %vm2556 = vcmp.eq.s32.totalorder %v1144, 9
    %vm2557 = vcmp.eq.s32.totalorder %v1145, 9
    %v2558 = vsel %vm2526, 1, 0
    %v2559 = vsel %vm2527, 1, 0
    %v2560 = vsel %vm2528, 1, 0
    %v2561 = vsel %vm2529, 1, 0
    %v2562 = vsel %vm2530, 1, 0
    %v2563 = vsel %vm2531, 1, 0
    %v2564 = vsel %vm2532, 1, 0
    %v2565 = vsel %vm2533, 1, 0
    %v2566 = vsel %vm2534, 1, 0
    %v2567 = vsel %vm2535, 1, 0
    %v2568 = vsel %vm2536, 1, 0
    %v2569 = vsel %vm2537, 1, 0
    %v2570 = vsel %vm2538, 1, 0
    %v2571 = vsel %vm2539, 1, 0
    %v2572 = vsel %vm2540, 1, 0
    %v2573 = vsel %vm2541, 1, 0
    %v2574 = vsel %vm2542, 1, 0
    %v2575 = vsel %vm2543, 1, 0
    %v2576 = vsel %vm2544, 1, 0
    %v2577 = vsel %vm2545, 1, 0
    %v2578 = vsel %vm2546, 1, 0
    %v2579 = vsel %vm2547, 1, 0
    %v2580 = vsel %vm2548, 1, 0
    %v2581 = vsel %vm2549, 1, 0
    %v2582 = vsel %vm2550, 1, 0
    %v2583 = vsel %vm2551, 1, 0
    %v2584 = vsel %vm2552, 1, 0
    %v2585 = vsel %vm2553, 1, 0
    %v2586 = vsel %vm2554, 1, 0
    %v2587 = vsel %vm2555, 1, 0
    %v2588 = vsel %vm2556, 1, 0
    %v2589 = vsel %vm2557, 1, 0
    %v2590 = vcvt.s32.f32 %v2558
    %v2591 = vcvt.s32.f32 %v2559
    %v2592 = vcvt.s32.f32 %v2560
    %v2593 = vcvt.s32.f32 %v2561
    %v2594 = vcvt.s32.f32 %v2562
    %v2595 = vcvt.s32.f32 %v2563
    %v2596 = vcvt.s32.f32 %v2564
    %v2597 = vcvt.s32.f32 %v2565
    %v2598 = vcvt.s32.f32 %v2566
    %v2599 = vcvt.s32.f32 %v2567
    %v2600 = vcvt.s32.f32 %v2568
    %v2601 = vcvt.s32.f32 %v2569
    %v2602 = vcvt.s32.f32 %v2570
    %v2603 = vcvt.s32.f32 %v2571
    %v2604 = vcvt.s32.f32 %v2572
    %v2605 = vcvt.s32.f32 %v2573
    %v2606 = vcvt.s32.f32 %v2574
    %v2607 = vcvt.s32.f32 %v2575
    %v2608 = vcvt.s32.f32 %v2576
    %v2609 = vcvt.s32.f32 %v2577
    %v2610 = vcvt.s32.f32 %v2578
    %v2611 = vcvt.s32.f32 %v2579
    %v2612 = vcvt.s32.f32 %v2580
    %v2613 = vcvt.s32.f32 %v2581
    %v2614 = vcvt.s32.f32 %v2582
    %v2615 = vcvt.s32.f32 %v2583
    %v2616 = vcvt.s32.f32 %v2584
    %v2617 = vcvt.s32.f32 %v2585
    %v2618 = vcvt.s32.f32 %v2586
    %v2619 = vcvt.s32.f32 %v2587
    %v2620 = vcvt.s32.f32 %v2588
    %v2621 = vcvt.s32.f32 %v2589
    %v2622 = vpack.c.bf16 %v2592, %v2590
    %v2623 = vpack.c.bf16 %v2593, %v2591
    %v2624 = vpack.c.bf16 %v2596, %v2594
    %v2625 = vpack.c.bf16 %v2597, %v2595
    %v2626 = vpack.c.bf16 %v2600, %v2598
    %v2627 = vpack.c.bf16 %v2601, %v2599
    %v2628 = vpack.c.bf16 %v2604, %v2602
    %v2629 = vpack.c.bf16 %v2605, %v2603
    %v2630 = vpack.c.bf16 %v2608, %v2606
    %v2631 = vpack.c.bf16 %v2609, %v2607
    %v2632 = vpack.c.bf16 %v2612, %v2610
    %v2633 = vpack.c.bf16 %v2613, %v2611
    %v2634 = vpack.c.bf16 %v2616, %v2614
    %v2635 = vpack.c.bf16 %v2617, %v2615
    %v2636 = vpack.c.bf16 %v2620, %v2618
    %v2637 = vpack.c.bf16 %v2621, %v2619
    %s2638 = scalar_lea.vmem %s4, 72
    %v2639 = vld [vmem:[%s2638] sm:$0xf]
    %v2640 = vld [vmem:[%s2638 + $0x4] sm:$0xf]
    %v2643 = vunpack.c.l.b16 %v2639
    %v2644 = vunpack.c.l.b16 %v2640
    %v2645 = vpack.c.b16 %v2644, %v2643
    %2647 = vmatpush.bf16.msra.mxu0 %v2636
    %2648 = vmatpush.bf16.msra.mxu0 %v2634
    %2649 = vmatpush.bf16.msra.mxu0 %v2632
    %2650 = vmatpush.bf16.msra.mxu0 %v2630
    %2651 = vmatpush.bf16.msra.mxu0 %v2628
    %2652 = vmatpush.bf16.msra.mxu0 %v2626
    %2653 = vmatpush.bf16.msra.mxu0 %v2624
    %2654 = vmatpush.bf16.msra.mxu0 %v2622
    %2655 = vmatmul.bf16.gmra.mxu0 %v2645
    %v2656 = vpop.f32.mrf.mxu0
    %v2657 = vadd.f32 0.0, %v2656
    %v2658 = vpop.f32.mrf.mxu0
    %v2659 = vadd.f32 0.0, %v2658
    %2660 = vdwg.mxu0
    %2661 = vmatpush.bf16.msra.mxu0 %v2637
    %2662 = vmatpush.bf16.msra.mxu0 %v2635
    %2663 = vmatpush.bf16.msra.mxu0 %v2633
    %2664 = vmatpush.bf16.msra.mxu0 %v2631
    %2665 = vmatpush.bf16.msra.mxu0 %v2629
    %2666 = vmatpush.bf16.msra.mxu0 %v2627
    %2667 = vmatpush.bf16.msra.mxu0 %v2625
    %2668 = vmatpush.bf16.msra.mxu0 %v2623
    %2669 = vmatmul.bf16.gmra.mxu0 %v2645
    %v2670 = vpop.f32.mrf.mxu0
    %v2671 = vadd.f32 0.0, %v2670
    %v2672 = vpop.f32.mrf.mxu0
    %v2673 = vadd.f32 0.0, %v2672
    %2674 = vdwg.mxu0
    %v2675 = vadd.f32 %v2522, %v2657
    %v2676 = vadd.f32 %v2523, %v2671
    %v2677 = vadd.f32 %v2524, %v2659
    %v2678 = vadd.f32 %v2525, %v2673
    %vm2679 = vcmp.eq.s32.totalorder %v1114, 10
    %vm2680 = vcmp.eq.s32.totalorder %v1115, 10
    %vm2681 = vcmp.eq.s32.totalorder %v1116, 10
    %vm2682 = vcmp.eq.s32.totalorder %v1117, 10
    %vm2683 = vcmp.eq.s32.totalorder %v1118, 10
    %vm2684 = vcmp.eq.s32.totalorder %v1119, 10
    %vm2685 = vcmp.eq.s32.totalorder %v1120, 10
    %vm2686 = vcmp.eq.s32.totalorder %v1121, 10
    %vm2687 = vcmp.eq.s32.totalorder %v1122, 10
    %vm2688 = vcmp.eq.s32.totalorder %v1123, 10
    %vm2689 = vcmp.eq.s32.totalorder %v1124, 10
    %vm2690 = vcmp.eq.s32.totalorder %v1125, 10
    %vm2691 = vcmp.eq.s32.totalorder %v1126, 10
    %vm2692 = vcmp.eq.s32.totalorder %v1127, 10
    %vm2693 = vcmp.eq.s32.totalorder %v1128, 10
    %vm2694 = vcmp.eq.s32.totalorder %v1129, 10
    %vm2695 = vcmp.eq.s32.totalorder %v1130, 10
    %vm2696 = vcmp.eq.s32.totalorder %v1131, 10
    %vm2697 = vcmp.eq.s32.totalorder %v1132, 10
    %vm2698 = vcmp.eq.s32.totalorder %v1133, 10
    %vm2699 = vcmp.eq.s32.totalorder %v1134, 10
    %vm2700 = vcmp.eq.s32.totalorder %v1135, 10
    %vm2701 = vcmp.eq.s32.totalorder %v1136, 10
    %vm2702 = vcmp.eq.s32.totalorder %v1137, 10
    %vm2703 = vcmp.eq.s32.totalorder %v1138, 10
    %vm2704 = vcmp.eq.s32.totalorder %v1139, 10
    %vm2705 = vcmp.eq.s32.totalorder %v1140, 10
    %vm2706 = vcmp.eq.s32.totalorder %v1141, 10
    %vm2707 = vcmp.eq.s32.totalorder %v1142, 10
    %vm2708 = vcmp.eq.s32.totalorder %v1143, 10
    %vm2709 = vcmp.eq.s32.totalorder %v1144, 10
    %vm2710 = vcmp.eq.s32.totalorder %v1145, 10
    %v2711 = vsel %vm2679, 1, 0
    %v2712 = vsel %vm2680, 1, 0
    %v2713 = vsel %vm2681, 1, 0
    %v2714 = vsel %vm2682, 1, 0
    %v2715 = vsel %vm2683, 1, 0
    %v2716 = vsel %vm2684, 1, 0
    %v2717 = vsel %vm2685, 1, 0
    %v2718 = vsel %vm2686, 1, 0
    %v2719 = vsel %vm2687, 1, 0
    %v2720 = vsel %vm2688, 1, 0
    %v2721 = vsel %vm2689, 1, 0
    %v2722 = vsel %vm2690, 1, 0
    %v2723 = vsel %vm2691, 1, 0
    %v2724 = vsel %vm2692, 1, 0
    %v2725 = vsel %vm2693, 1, 0
    %v2726 = vsel %vm2694, 1, 0
    %v2727 = vsel %vm2695, 1, 0
    %v2728 = vsel %vm2696, 1, 0
    %v2729 = vsel %vm2697, 1, 0
    %v2730 = vsel %vm2698, 1, 0
    %v2731 = vsel %vm2699, 1, 0
    %v2732 = vsel %vm2700, 1, 0
    %v2733 = vsel %vm2701, 1, 0
    %v2734 = vsel %vm2702, 1, 0
    %v2735 = vsel %vm2703, 1, 0
    %v2736 = vsel %vm2704, 1, 0
    %v2737 = vsel %vm2705, 1, 0
    %v2738 = vsel %vm2706, 1, 0
    %v2739 = vsel %vm2707, 1, 0
    %v2740 = vsel %vm2708, 1, 0
    %v2741 = vsel %vm2709, 1, 0
    %v2742 = vsel %vm2710, 1, 0
    %v2743 = vcvt.s32.f32 %v2711
    %v2744 = vcvt.s32.f32 %v2712
    %v2745 = vcvt.s32.f32 %v2713
    %v2746 = vcvt.s32.f32 %v2714
    %v2747 = vcvt.s32.f32 %v2715
    %v2748 = vcvt.s32.f32 %v2716
    %v2749 = vcvt.s32.f32 %v2717
    %v2750 = vcvt.s32.f32 %v2718
    %v2751 = vcvt.s32.f32 %v2719
    %v2752 = vcvt.s32.f32 %v2720
    %v2753 = vcvt.s32.f32 %v2721
    %v2754 = vcvt.s32.f32 %v2722
    %v2755 = vcvt.s32.f32 %v2723
    %v2756 = vcvt.s32.f32 %v2724
    %v2757 = vcvt.s32.f32 %v2725
    %v2758 = vcvt.s32.f32 %v2726
    %v2759 = vcvt.s32.f32 %v2727
    %v2760 = vcvt.s32.f32 %v2728
    %v2761 = vcvt.s32.f32 %v2729
    %v2762 = vcvt.s32.f32 %v2730
    %v2763 = vcvt.s32.f32 %v2731
    %v2764 = vcvt.s32.f32 %v2732
    %v2765 = vcvt.s32.f32 %v2733
    %v2766 = vcvt.s32.f32 %v2734
    %v2767 = vcvt.s32.f32 %v2735
    %v2768 = vcvt.s32.f32 %v2736
    %v2769 = vcvt.s32.f32 %v2737
    %v2770 = vcvt.s32.f32 %v2738
    %v2771 = vcvt.s32.f32 %v2739
    %v2772 = vcvt.s32.f32 %v2740
    %v2773 = vcvt.s32.f32 %v2741
    %v2774 = vcvt.s32.f32 %v2742
    %v2775 = vpack.c.bf16 %v2745, %v2743
    %v2776 = vpack.c.bf16 %v2746, %v2744
    %v2777 = vpack.c.bf16 %v2749, %v2747
    %v2778 = vpack.c.bf16 %v2750, %v2748
    %v2779 = vpack.c.bf16 %v2753, %v2751
    %v2780 = vpack.c.bf16 %v2754, %v2752
    %v2781 = vpack.c.bf16 %v2757, %v2755
    %v2782 = vpack.c.bf16 %v2758, %v2756
    %v2783 = vpack.c.bf16 %v2761, %v2759
    %v2784 = vpack.c.bf16 %v2762, %v2760
    %v2785 = vpack.c.bf16 %v2765, %v2763
    %v2786 = vpack.c.bf16 %v2766, %v2764
    %v2787 = vpack.c.bf16 %v2769, %v2767
    %v2788 = vpack.c.bf16 %v2770, %v2768
    %v2789 = vpack.c.bf16 %v2773, %v2771
    %v2790 = vpack.c.bf16 %v2774, %v2772
    %s2791 = scalar_lea.vmem %s4, 80
    %v2792 = vld [vmem:[%s2791] sm:$0xf]
    %v2793 = vld [vmem:[%s2791 + $0x4] sm:$0xf]
    %v2796 = vunpack.c.l.b16 %v2792
    %v2797 = vunpack.c.l.b16 %v2793
    %v2798 = vpack.c.b16 %v2797, %v2796
    %2800 = vmatpush.bf16.msra.mxu0 %v2789
    %2801 = vmatpush.bf16.msra.mxu0 %v2787
    %2802 = vmatpush.bf16.msra.mxu0 %v2785
    %2803 = vmatpush.bf16.msra.mxu0 %v2783
    %2804 = vmatpush.bf16.msra.mxu0 %v2781
    %2805 = vmatpush.bf16.msra.mxu0 %v2779
    %2806 = vmatpush.bf16.msra.mxu0 %v2777
    %2807 = vmatpush.bf16.msra.mxu0 %v2775
    %2808 = vmatmul.bf16.gmra.mxu0 %v2798
    %v2809 = vpop.f32.mrf.mxu0
    %v2810 = vadd.f32 0.0, %v2809
    %v2811 = vpop.f32.mrf.mxu0
    %v2812 = vadd.f32 0.0, %v2811
    %2813 = vdwg.mxu0
    %2814 = vmatpush.bf16.msra.mxu0 %v2790
    %2815 = vmatpush.bf16.msra.mxu0 %v2788
    %2816 = vmatpush.bf16.msra.mxu0 %v2786
    %2817 = vmatpush.bf16.msra.mxu0 %v2784
    %2818 = vmatpush.bf16.msra.mxu0 %v2782
    %2819 = vmatpush.bf16.msra.mxu0 %v2780
    %2820 = vmatpush.bf16.msra.mxu0 %v2778
    %2821 = vmatpush.bf16.msra.mxu0 %v2776
    %2822 = vmatmul.bf16.gmra.mxu0 %v2798
    %v2823 = vpop.f32.mrf.mxu0
    %v2824 = vadd.f32 0.0, %v2823
    %v2825 = vpop.f32.mrf.mxu0
    %v2826 = vadd.f32 0.0, %v2825
    %2827 = vdwg.mxu0
    %v2828 = vadd.f32 %v2675, %v2810
    %v2829 = vadd.f32 %v2676, %v2824
    %v2830 = vadd.f32 %v2677, %v2812
    %v2831 = vadd.f32 %v2678, %v2826
    %vm2832 = vcmp.eq.s32.totalorder %v1114, 11
    %vm2833 = vcmp.eq.s32.totalorder %v1115, 11
    %vm2834 = vcmp.eq.s32.totalorder %v1116, 11
    %vm2835 = vcmp.eq.s32.totalorder %v1117, 11
    %vm2836 = vcmp.eq.s32.totalorder %v1118, 11
    %vm2837 = vcmp.eq.s32.totalorder %v1119, 11
    %vm2838 = vcmp.eq.s32.totalorder %v1120, 11
    %vm2839 = vcmp.eq.s32.totalorder %v1121, 11
    %vm2840 = vcmp.eq.s32.totalorder %v1122, 11
    %vm2841 = vcmp.eq.s32.totalorder %v1123, 11
    %vm2842 = vcmp.eq.s32.totalorder %v1124, 11
    %vm2843 = vcmp.eq.s32.totalorder %v1125, 11
    %vm2844 = vcmp.eq.s32.totalorder %v1126, 11
    %vm2845 = vcmp.eq.s32.totalorder %v1127, 11
    %vm2846 = vcmp.eq.s32.totalorder %v1128, 11
    %vm2847 = vcmp.eq.s32.totalorder %v1129, 11
    %vm2848 = vcmp.eq.s32.totalorder %v1130, 11
    %vm2849 = vcmp.eq.s32.totalorder %v1131, 11
    %vm2850 = vcmp.eq.s32.totalorder %v1132, 11
    %vm2851 = vcmp.eq.s32.totalorder %v1133, 11
    %vm2852 = vcmp.eq.s32.totalorder %v1134, 11
    %vm2853 = vcmp.eq.s32.totalorder %v1135, 11
    %vm2854 = vcmp.eq.s32.totalorder %v1136, 11
    %vm2855 = vcmp.eq.s32.totalorder %v1137, 11
    %vm2856 = vcmp.eq.s32.totalorder %v1138, 11
    %vm2857 = vcmp.eq.s32.totalorder %v1139, 11
    %vm2858 = vcmp.eq.s32.totalorder %v1140, 11
    %vm2859 = vcmp.eq.s32.totalorder %v1141, 11
    %vm2860 = vcmp.eq.s32.totalorder %v1142, 11
    %vm2861 = vcmp.eq.s32.totalorder %v1143, 11
    %vm2862 = vcmp.eq.s32.totalorder %v1144, 11
    %vm2863 = vcmp.eq.s32.totalorder %v1145, 11
    %v2864 = vsel %vm2832, 1, 0
    %v2865 = vsel %vm2833, 1, 0
    %v2866 = vsel %vm2834, 1, 0
    %v2867 = vsel %vm2835, 1, 0
    %v2868 = vsel %vm2836, 1, 0
    %v2869 = vsel %vm2837, 1, 0
    %v2870 = vsel %vm2838, 1, 0
    %v2871 = vsel %vm2839, 1, 0
    %v2872 = vsel %vm2840, 1, 0
    %v2873 = vsel %vm2841, 1, 0
    %v2874 = vsel %vm2842, 1, 0
    %v2875 = vsel %vm2843, 1, 0
    %v2876 = vsel %vm2844, 1, 0
    %v2877 = vsel %vm2845, 1, 0
    %v2878 = vsel %vm2846, 1, 0
    %v2879 = vsel %vm2847, 1, 0
    %v2880 = vsel %vm2848, 1, 0
    %v2881 = vsel %vm2849, 1, 0
    %v2882 = vsel %vm2850, 1, 0
    %v2883 = vsel %vm2851, 1, 0
    %v2884 = vsel %vm2852, 1, 0
    %v2885 = vsel %vm2853, 1, 0
    %v2886 = vsel %vm2854, 1, 0
    %v2887 = vsel %vm2855, 1, 0
    %v2888 = vsel %vm2856, 1, 0
    %v2889 = vsel %vm2857, 1, 0
    %v2890 = vsel %vm2858, 1, 0
    %v2891 = vsel %vm2859, 1, 0
    %v2892 = vsel %vm2860, 1, 0
    %v2893 = vsel %vm2861, 1, 0
    %v2894 = vsel %vm2862, 1, 0
    %v2895 = vsel %vm2863, 1, 0
    %v2896 = vcvt.s32.f32 %v2864
    %v2897 = vcvt.s32.f32 %v2865
    %v2898 = vcvt.s32.f32 %v2866
    %v2899 = vcvt.s32.f32 %v2867
    %v2900 = vcvt.s32.f32 %v2868
    %v2901 = vcvt.s32.f32 %v2869
    %v2902 = vcvt.s32.f32 %v2870
    %v2903 = vcvt.s32.f32 %v2871
    %v2904 = vcvt.s32.f32 %v2872
    %v2905 = vcvt.s32.f32 %v2873
    %v2906 = vcvt.s32.f32 %v2874
    %v2907 = vcvt.s32.f32 %v2875
    %v2908 = vcvt.s32.f32 %v2876
    %v2909 = vcvt.s32.f32 %v2877
    %v2910 = vcvt.s32.f32 %v2878
    %v2911 = vcvt.s32.f32 %v2879
    %v2912 = vcvt.s32.f32 %v2880
    %v2913 = vcvt.s32.f32 %v2881
    %v2914 = vcvt.s32.f32 %v2882
    %v2915 = vcvt.s32.f32 %v2883
    %v2916 = vcvt.s32.f32 %v2884
    %v2917 = vcvt.s32.f32 %v2885
    %v2918 = vcvt.s32.f32 %v2886
    %v2919 = vcvt.s32.f32 %v2887
    %v2920 = vcvt.s32.f32 %v2888
    %v2921 = vcvt.s32.f32 %v2889
    %v2922 = vcvt.s32.f32 %v2890
    %v2923 = vcvt.s32.f32 %v2891
    %v2924 = vcvt.s32.f32 %v2892
    %v2925 = vcvt.s32.f32 %v2893
    %v2926 = vcvt.s32.f32 %v2894
    %v2927 = vcvt.s32.f32 %v2895
    %v2928 = vpack.c.bf16 %v2898, %v2896
    %v2929 = vpack.c.bf16 %v2899, %v2897
    %v2930 = vpack.c.bf16 %v2902, %v2900
    %v2931 = vpack.c.bf16 %v2903, %v2901
    %v2932 = vpack.c.bf16 %v2906, %v2904
    %v2933 = vpack.c.bf16 %v2907, %v2905
    %v2934 = vpack.c.bf16 %v2910, %v2908
    %v2935 = vpack.c.bf16 %v2911, %v2909
    %v2936 = vpack.c.bf16 %v2914, %v2912
    %v2937 = vpack.c.bf16 %v2915, %v2913
    %v2938 = vpack.c.bf16 %v2918, %v2916
    %v2939 = vpack.c.bf16 %v2919, %v2917
    %v2940 = vpack.c.bf16 %v2922, %v2920
    %v2941 = vpack.c.bf16 %v2923, %v2921
    %v2942 = vpack.c.bf16 %v2926, %v2924
    %v2943 = vpack.c.bf16 %v2927, %v2925
    %s2944 = scalar_lea.vmem %s4, 88
    %v2945 = vld [vmem:[%s2944] sm:$0xf]
    %v2946 = vld [vmem:[%s2944 + $0x4] sm:$0xf]
    %v2949 = vunpack.c.l.b16 %v2945
    %v2950 = vunpack.c.l.b16 %v2946
    %v2951 = vpack.c.b16 %v2950, %v2949
    %2953 = vmatpush.bf16.msra.mxu0 %v2942
    %2954 = vmatpush.bf16.msra.mxu0 %v2940
    %2955 = vmatpush.bf16.msra.mxu0 %v2938
    %2956 = vmatpush.bf16.msra.mxu0 %v2936
    %2957 = vmatpush.bf16.msra.mxu0 %v2934
    %2958 = vmatpush.bf16.msra.mxu0 %v2932
    %2959 = vmatpush.bf16.msra.mxu0 %v2930
    %2960 = vmatpush.bf16.msra.mxu0 %v2928
    %2961 = vmatmul.bf16.gmra.mxu0 %v2951
    %v2962 = vpop.f32.mrf.mxu0
    %v2963 = vadd.f32 0.0, %v2962
    %v2964 = vpop.f32.mrf.mxu0
    %v2965 = vadd.f32 0.0, %v2964
    %2966 = vdwg.mxu0
    %2967 = vmatpush.bf16.msra.mxu0 %v2943
    %2968 = vmatpush.bf16.msra.mxu0 %v2941
    %2969 = vmatpush.bf16.msra.mxu0 %v2939
    %2970 = vmatpush.bf16.msra.mxu0 %v2937
    %2971 = vmatpush.bf16.msra.mxu0 %v2935
    %2972 = vmatpush.bf16.msra.mxu0 %v2933
    %2973 = vmatpush.bf16.msra.mxu0 %v2931
    %2974 = vmatpush.bf16.msra.mxu0 %v2929
    %2975 = vmatmul.bf16.gmra.mxu0 %v2951
    %v2976 = vpop.f32.mrf.mxu0
    %v2977 = vadd.f32 0.0, %v2976
    %v2978 = vpop.f32.mrf.mxu0
    %v2979 = vadd.f32 0.0, %v2978
    %2980 = vdwg.mxu0
    %v2981 = vadd.f32 %v2828, %v2963
    %v2982 = vadd.f32 %v2829, %v2977
    %v2983 = vadd.f32 %v2830, %v2965
    %v2984 = vadd.f32 %v2831, %v2979
    %vm2985 = vcmp.eq.s32.totalorder %v1114, 12
    %vm2986 = vcmp.eq.s32.totalorder %v1115, 12
    %vm2987 = vcmp.eq.s32.totalorder %v1116, 12
    %vm2988 = vcmp.eq.s32.totalorder %v1117, 12
    %vm2989 = vcmp.eq.s32.totalorder %v1118, 12
    %vm2990 = vcmp.eq.s32.totalorder %v1119, 12
    %vm2991 = vcmp.eq.s32.totalorder %v1120, 12
    %vm2992 = vcmp.eq.s32.totalorder %v1121, 12
    %vm2993 = vcmp.eq.s32.totalorder %v1122, 12
    %vm2994 = vcmp.eq.s32.totalorder %v1123, 12
    %vm2995 = vcmp.eq.s32.totalorder %v1124, 12
    %vm2996 = vcmp.eq.s32.totalorder %v1125, 12
    %vm2997 = vcmp.eq.s32.totalorder %v1126, 12
    %vm2998 = vcmp.eq.s32.totalorder %v1127, 12
    %vm2999 = vcmp.eq.s32.totalorder %v1128, 12
    %vm3000 = vcmp.eq.s32.totalorder %v1129, 12
    %vm3001 = vcmp.eq.s32.totalorder %v1130, 12
    %vm3002 = vcmp.eq.s32.totalorder %v1131, 12
    %vm3003 = vcmp.eq.s32.totalorder %v1132, 12
    %vm3004 = vcmp.eq.s32.totalorder %v1133, 12
    %vm3005 = vcmp.eq.s32.totalorder %v1134, 12
    %vm3006 = vcmp.eq.s32.totalorder %v1135, 12
    %vm3007 = vcmp.eq.s32.totalorder %v1136, 12
    %vm3008 = vcmp.eq.s32.totalorder %v1137, 12
    %vm3009 = vcmp.eq.s32.totalorder %v1138, 12
    %vm3010 = vcmp.eq.s32.totalorder %v1139, 12
    %vm3011 = vcmp.eq.s32.totalorder %v1140, 12
    %vm3012 = vcmp.eq.s32.totalorder %v1141, 12
    %vm3013 = vcmp.eq.s32.totalorder %v1142, 12
    %vm3014 = vcmp.eq.s32.totalorder %v1143, 12
    %vm3015 = vcmp.eq.s32.totalorder %v1144, 12
    %vm3016 = vcmp.eq.s32.totalorder %v1145, 12
    %v3017 = vsel %vm2985, 1, 0
    %v3018 = vsel %vm2986, 1, 0
    %v3019 = vsel %vm2987, 1, 0
    %v3020 = vsel %vm2988, 1, 0
    %v3021 = vsel %vm2989, 1, 0
    %v3022 = vsel %vm2990, 1, 0
    %v3023 = vsel %vm2991, 1, 0
    %v3024 = vsel %vm2992, 1, 0
    %v3025 = vsel %vm2993, 1, 0
    %v3026 = vsel %vm2994, 1, 0
    %v3027 = vsel %vm2995, 1, 0
    %v3028 = vsel %vm2996, 1, 0
    %v3029 = vsel %vm2997, 1, 0
    %v3030 = vsel %vm2998, 1, 0
    %v3031 = vsel %vm2999, 1, 0
    %v3032 = vsel %vm3000, 1, 0
    %v3033 = vsel %vm3001, 1, 0
    %v3034 = vsel %vm3002, 1, 0
    %v3035 = vsel %vm3003, 1, 0
    %v3036 = vsel %vm3004, 1, 0
    %v3037 = vsel %vm3005, 1, 0
    %v3038 = vsel %vm3006, 1, 0
    %v3039 = vsel %vm3007, 1, 0
    %v3040 = vsel %vm3008, 1, 0
    %v3041 = vsel %vm3009, 1, 0
    %v3042 = vsel %vm3010, 1, 0
    %v3043 = vsel %vm3011, 1, 0
    %v3044 = vsel %vm3012, 1, 0
    %v3045 = vsel %vm3013, 1, 0
    %v3046 = vsel %vm3014, 1, 0
    %v3047 = vsel %vm3015, 1, 0
    %v3048 = vsel %vm3016, 1, 0
    %v3049 = vcvt.s32.f32 %v3017
    %v3050 = vcvt.s32.f32 %v3018
    %v3051 = vcvt.s32.f32 %v3019
    %v3052 = vcvt.s32.f32 %v3020
    %v3053 = vcvt.s32.f32 %v3021
    %v3054 = vcvt.s32.f32 %v3022
    %v3055 = vcvt.s32.f32 %v3023
    %v3056 = vcvt.s32.f32 %v3024
    %v3057 = vcvt.s32.f32 %v3025
    %v3058 = vcvt.s32.f32 %v3026
    %v3059 = vcvt.s32.f32 %v3027
    %v3060 = vcvt.s32.f32 %v3028
    %v3061 = vcvt.s32.f32 %v3029
    %v3062 = vcvt.s32.f32 %v3030
    %v3063 = vcvt.s32.f32 %v3031
    %v3064 = vcvt.s32.f32 %v3032
    %v3065 = vcvt.s32.f32 %v3033
    %v3066 = vcvt.s32.f32 %v3034
    %v3067 = vcvt.s32.f32 %v3035
    %v3068 = vcvt.s32.f32 %v3036
    %v3069 = vcvt.s32.f32 %v3037
    %v3070 = vcvt.s32.f32 %v3038
    %v3071 = vcvt.s32.f32 %v3039
    %v3072 = vcvt.s32.f32 %v3040
    %v3073 = vcvt.s32.f32 %v3041
    %v3074 = vcvt.s32.f32 %v3042
    %v3075 = vcvt.s32.f32 %v3043
    %v3076 = vcvt.s32.f32 %v3044
    %v3077 = vcvt.s32.f32 %v3045
    %v3078 = vcvt.s32.f32 %v3046
    %v3079 = vcvt.s32.f32 %v3047
    %v3080 = vcvt.s32.f32 %v3048
    %v3081 = vpack.c.bf16 %v3051, %v3049
    %v3082 = vpack.c.bf16 %v3052, %v3050
    %v3083 = vpack.c.bf16 %v3055, %v3053
    %v3084 = vpack.c.bf16 %v3056, %v3054
    %v3085 = vpack.c.bf16 %v3059, %v3057
    %v3086 = vpack.c.bf16 %v3060, %v3058
    %v3087 = vpack.c.bf16 %v3063, %v3061
    %v3088 = vpack.c.bf16 %v3064, %v3062
    %v3089 = vpack.c.bf16 %v3067, %v3065
    %v3090 = vpack.c.bf16 %v3068, %v3066
    %v3091 = vpack.c.bf16 %v3071, %v3069
    %v3092 = vpack.c.bf16 %v3072, %v3070
    %v3093 = vpack.c.bf16 %v3075, %v3073
    %v3094 = vpack.c.bf16 %v3076, %v3074
    %v3095 = vpack.c.bf16 %v3079, %v3077
    %v3096 = vpack.c.bf16 %v3080, %v3078
    %s3097 = scalar_lea.vmem %s4, 96
    %v3098 = vld [vmem:[%s3097] sm:$0xf]
    %v3099 = vld [vmem:[%s3097 + $0x4] sm:$0xf]
    %v3102 = vunpack.c.l.b16 %v3098
    %v3103 = vunpack.c.l.b16 %v3099
    %v3104 = vpack.c.b16 %v3103, %v3102
    %3106 = vmatpush.bf16.msra.mxu0 %v3095
    %3107 = vmatpush.bf16.msra.mxu0 %v3093
    %3108 = vmatpush.bf16.msra.mxu0 %v3091
    %3109 = vmatpush.bf16.msra.mxu0 %v3089
    %3110 = vmatpush.bf16.msra.mxu0 %v3087
    %3111 = vmatpush.bf16.msra.mxu0 %v3085
    %3112 = vmatpush.bf16.msra.mxu0 %v3083
    %3113 = vmatpush.bf16.msra.mxu0 %v3081
    %3114 = vmatmul.bf16.gmra.mxu0 %v3104
    %v3115 = vpop.f32.mrf.mxu0
    %v3116 = vadd.f32 0.0, %v3115
    %v3117 = vpop.f32.mrf.mxu0
    %v3118 = vadd.f32 0.0, %v3117
    %3119 = vdwg.mxu0
    %3120 = vmatpush.bf16.msra.mxu0 %v3096
    %3121 = vmatpush.bf16.msra.mxu0 %v3094
    %3122 = vmatpush.bf16.msra.mxu0 %v3092
    %3123 = vmatpush.bf16.msra.mxu0 %v3090
    %3124 = vmatpush.bf16.msra.mxu0 %v3088
    %3125 = vmatpush.bf16.msra.mxu0 %v3086
    %3126 = vmatpush.bf16.msra.mxu0 %v3084
    %3127 = vmatpush.bf16.msra.mxu0 %v3082
    %3128 = vmatmul.bf16.gmra.mxu0 %v3104
    %v3129 = vpop.f32.mrf.mxu0
    %v3130 = vadd.f32 0.0, %v3129
    %v3131 = vpop.f32.mrf.mxu0
    %v3132 = vadd.f32 0.0, %v3131
    %3133 = vdwg.mxu0
    %v3134 = vadd.f32 %v2981, %v3116
    %v3135 = vadd.f32 %v2982, %v3130
    %v3136 = vadd.f32 %v2983, %v3118
    %v3137 = vadd.f32 %v2984, %v3132
    %vm3138 = vcmp.eq.s32.totalorder %v1114, 13
    %vm3139 = vcmp.eq.s32.totalorder %v1115, 13
    %vm3140 = vcmp.eq.s32.totalorder %v1116, 13
    %vm3141 = vcmp.eq.s32.totalorder %v1117, 13
    %vm3142 = vcmp.eq.s32.totalorder %v1118, 13
    %vm3143 = vcmp.eq.s32.totalorder %v1119, 13
    %vm3144 = vcmp.eq.s32.totalorder %v1120, 13
    %vm3145 = vcmp.eq.s32.totalorder %v1121, 13
    %vm3146 = vcmp.eq.s32.totalorder %v1122, 13
    %vm3147 = vcmp.eq.s32.totalorder %v1123, 13
    %vm3148 = vcmp.eq.s32.totalorder %v1124, 13
    %vm3149 = vcmp.eq.s32.totalorder %v1125, 13
    %vm3150 = vcmp.eq.s32.totalorder %v1126, 13
    %vm3151 = vcmp.eq.s32.totalorder %v1127, 13
    %vm3152 = vcmp.eq.s32.totalorder %v1128, 13
    %vm3153 = vcmp.eq.s32.totalorder %v1129, 13
    %vm3154 = vcmp.eq.s32.totalorder %v1130, 13
    %vm3155 = vcmp.eq.s32.totalorder %v1131, 13
    %vm3156 = vcmp.eq.s32.totalorder %v1132, 13
    %vm3157 = vcmp.eq.s32.totalorder %v1133, 13
    %vm3158 = vcmp.eq.s32.totalorder %v1134, 13
    %vm3159 = vcmp.eq.s32.totalorder %v1135, 13
    %vm3160 = vcmp.eq.s32.totalorder %v1136, 13
    %vm3161 = vcmp.eq.s32.totalorder %v1137, 13
    %vm3162 = vcmp.eq.s32.totalorder %v1138, 13
    %vm3163 = vcmp.eq.s32.totalorder %v1139, 13
    %vm3164 = vcmp.eq.s32.totalorder %v1140, 13
    %vm3165 = vcmp.eq.s32.totalorder %v1141, 13
    %vm3166 = vcmp.eq.s32.totalorder %v1142, 13
    %vm3167 = vcmp.eq.s32.totalorder %v1143, 13
    %vm3168 = vcmp.eq.s32.totalorder %v1144, 13
    %vm3169 = vcmp.eq.s32.totalorder %v1145, 13
    %v3170 = vsel %vm3138, 1, 0
    %v3171 = vsel %vm3139, 1, 0
    %v3172 = vsel %vm3140, 1, 0
    %v3173 = vsel %vm3141, 1, 0
    %v3174 = vsel %vm3142, 1, 0
    %v3175 = vsel %vm3143, 1, 0
    %v3176 = vsel %vm3144, 1, 0
    %v3177 = vsel %vm3145, 1, 0
    %v3178 = vsel %vm3146, 1, 0
    %v3179 = vsel %vm3147, 1, 0
    %v3180 = vsel %vm3148, 1, 0
    %v3181 = vsel %vm3149, 1, 0
    %v3182 = vsel %vm3150, 1, 0
    %v3183 = vsel %vm3151, 1, 0
    %v3184 = vsel %vm3152, 1, 0
    %v3185 = vsel %vm3153, 1, 0
    %v3186 = vsel %vm3154, 1, 0
    %v3187 = vsel %vm3155, 1, 0
    %v3188 = vsel %vm3156, 1, 0
    %v3189 = vsel %vm3157, 1, 0
    %v3190 = vsel %vm3158, 1, 0
    %v3191 = vsel %vm3159, 1, 0
    %v3192 = vsel %vm3160, 1, 0
    %v3193 = vsel %vm3161, 1, 0
    %v3194 = vsel %vm3162, 1, 0
    %v3195 = vsel %vm3163, 1, 0
    %v3196 = vsel %vm3164, 1, 0
    %v3197 = vsel %vm3165, 1, 0
    %v3198 = vsel %vm3166, 1, 0
    %v3199 = vsel %vm3167, 1, 0
    %v3200 = vsel %vm3168, 1, 0
    %v3201 = vsel %vm3169, 1, 0
    %v3202 = vcvt.s32.f32 %v3170
    %v3203 = vcvt.s32.f32 %v3171
    %v3204 = vcvt.s32.f32 %v3172
    %v3205 = vcvt.s32.f32 %v3173
    %v3206 = vcvt.s32.f32 %v3174
    %v3207 = vcvt.s32.f32 %v3175
    %v3208 = vcvt.s32.f32 %v3176
    %v3209 = vcvt.s32.f32 %v3177
    %v3210 = vcvt.s32.f32 %v3178
    %v3211 = vcvt.s32.f32 %v3179
    %v3212 = vcvt.s32.f32 %v3180
    %v3213 = vcvt.s32.f32 %v3181
    %v3214 = vcvt.s32.f32 %v3182
    %v3215 = vcvt.s32.f32 %v3183
    %v3216 = vcvt.s32.f32 %v3184
    %v3217 = vcvt.s32.f32 %v3185
    %v3218 = vcvt.s32.f32 %v3186
    %v3219 = vcvt.s32.f32 %v3187
    %v3220 = vcvt.s32.f32 %v3188
    %v3221 = vcvt.s32.f32 %v3189
    %v3222 = vcvt.s32.f32 %v3190
    %v3223 = vcvt.s32.f32 %v3191
    %v3224 = vcvt.s32.f32 %v3192
    %v3225 = vcvt.s32.f32 %v3193
    %v3226 = vcvt.s32.f32 %v3194
    %v3227 = vcvt.s32.f32 %v3195
    %v3228 = vcvt.s32.f32 %v3196
    %v3229 = vcvt.s32.f32 %v3197
    %v3230 = vcvt.s32.f32 %v3198
    %v3231 = vcvt.s32.f32 %v3199
    %v3232 = vcvt.s32.f32 %v3200
    %v3233 = vcvt.s32.f32 %v3201
    %v3234 = vpack.c.bf16 %v3204, %v3202
    %v3235 = vpack.c.bf16 %v3205, %v3203
    %v3236 = vpack.c.bf16 %v3208, %v3206
    %v3237 = vpack.c.bf16 %v3209, %v3207
    %v3238 = vpack.c.bf16 %v3212, %v3210
    %v3239 = vpack.c.bf16 %v3213, %v3211
    %v3240 = vpack.c.bf16 %v3216, %v3214
    %v3241 = vpack.c.bf16 %v3217, %v3215
    %v3242 = vpack.c.bf16 %v3220, %v3218
    %v3243 = vpack.c.bf16 %v3221, %v3219
    %v3244 = vpack.c.bf16 %v3224, %v3222
    %v3245 = vpack.c.bf16 %v3225, %v3223
    %v3246 = vpack.c.bf16 %v3228, %v3226
    %v3247 = vpack.c.bf16 %v3229, %v3227
    %v3248 = vpack.c.bf16 %v3232, %v3230
    %v3249 = vpack.c.bf16 %v3233, %v3231
    %s3250 = scalar_lea.vmem %s4, 104
    %v3251 = vld [vmem:[%s3250] sm:$0xf]
    %v3252 = vld [vmem:[%s3250 + $0x4] sm:$0xf]
    %v3255 = vunpack.c.l.b16 %v3251
    %v3256 = vunpack.c.l.b16 %v3252
    %v3257 = vpack.c.b16 %v3256, %v3255
    %3259 = vmatpush.bf16.msra.mxu0 %v3248
    %3260 = vmatpush.bf16.msra.mxu0 %v3246
    %3261 = vmatpush.bf16.msra.mxu0 %v3244
    %3262 = vmatpush.bf16.msra.mxu0 %v3242
    %3263 = vmatpush.bf16.msra.mxu0 %v3240
    %3264 = vmatpush.bf16.msra.mxu0 %v3238
    %3265 = vmatpush.bf16.msra.mxu0 %v3236
    %3266 = vmatpush.bf16.msra.mxu0 %v3234
    %3267 = vmatmul.bf16.gmra.mxu0 %v3257
    %v3268 = vpop.f32.mrf.mxu0
    %v3269 = vadd.f32 0.0, %v3268
    %v3270 = vpop.f32.mrf.mxu0
    %v3271 = vadd.f32 0.0, %v3270
    %3272 = vdwg.mxu0
    %3273 = vmatpush.bf16.msra.mxu0 %v3249
    %3274 = vmatpush.bf16.msra.mxu0 %v3247
    %3275 = vmatpush.bf16.msra.mxu0 %v3245
    %3276 = vmatpush.bf16.msra.mxu0 %v3243
    %3277 = vmatpush.bf16.msra.mxu0 %v3241
    %3278 = vmatpush.bf16.msra.mxu0 %v3239
    %3279 = vmatpush.bf16.msra.mxu0 %v3237
    %3280 = vmatpush.bf16.msra.mxu0 %v3235
    %3281 = vmatmul.bf16.gmra.mxu0 %v3257
    %v3282 = vpop.f32.mrf.mxu0
    %v3283 = vadd.f32 0.0, %v3282
    %v3284 = vpop.f32.mrf.mxu0
    %v3285 = vadd.f32 0.0, %v3284
    %3286 = vdwg.mxu0
    %v3287 = vadd.f32 %v3134, %v3269
    %v3288 = vadd.f32 %v3135, %v3283
    %v3289 = vadd.f32 %v3136, %v3271
    %v3290 = vadd.f32 %v3137, %v3285
    %vm3291 = vcmp.eq.s32.totalorder %v1114, 14
    %vm3292 = vcmp.eq.s32.totalorder %v1115, 14
    %vm3293 = vcmp.eq.s32.totalorder %v1116, 14
    %vm3294 = vcmp.eq.s32.totalorder %v1117, 14
    %vm3295 = vcmp.eq.s32.totalorder %v1118, 14
    %vm3296 = vcmp.eq.s32.totalorder %v1119, 14
    %vm3297 = vcmp.eq.s32.totalorder %v1120, 14
    %vm3298 = vcmp.eq.s32.totalorder %v1121, 14
    %vm3299 = vcmp.eq.s32.totalorder %v1122, 14
    %vm3300 = vcmp.eq.s32.totalorder %v1123, 14
    %vm3301 = vcmp.eq.s32.totalorder %v1124, 14
    %vm3302 = vcmp.eq.s32.totalorder %v1125, 14
    %vm3303 = vcmp.eq.s32.totalorder %v1126, 14
    %vm3304 = vcmp.eq.s32.totalorder %v1127, 14
    %vm3305 = vcmp.eq.s32.totalorder %v1128, 14
    %vm3306 = vcmp.eq.s32.totalorder %v1129, 14
    %vm3307 = vcmp.eq.s32.totalorder %v1130, 14
    %vm3308 = vcmp.eq.s32.totalorder %v1131, 14
    %vm3309 = vcmp.eq.s32.totalorder %v1132, 14
    %vm3310 = vcmp.eq.s32.totalorder %v1133, 14
    %vm3311 = vcmp.eq.s32.totalorder %v1134, 14
    %vm3312 = vcmp.eq.s32.totalorder %v1135, 14
    %vm3313 = vcmp.eq.s32.totalorder %v1136, 14
    %vm3314 = vcmp.eq.s32.totalorder %v1137, 14
    %vm3315 = vcmp.eq.s32.totalorder %v1138, 14
    %vm3316 = vcmp.eq.s32.totalorder %v1139, 14
    %vm3317 = vcmp.eq.s32.totalorder %v1140, 14
    %vm3318 = vcmp.eq.s32.totalorder %v1141, 14
    %vm3319 = vcmp.eq.s32.totalorder %v1142, 14
    %vm3320 = vcmp.eq.s32.totalorder %v1143, 14
    %vm3321 = vcmp.eq.s32.totalorder %v1144, 14
    %vm3322 = vcmp.eq.s32.totalorder %v1145, 14
    %v3323 = vsel %vm3291, 1, 0
    %v3324 = vsel %vm3292, 1, 0
    %v3325 = vsel %vm3293, 1, 0
    %v3326 = vsel %vm3294, 1, 0
    %v3327 = vsel %vm3295, 1, 0
    %v3328 = vsel %vm3296, 1, 0
    %v3329 = vsel %vm3297, 1, 0
    %v3330 = vsel %vm3298, 1, 0
    %v3331 = vsel %vm3299, 1, 0
    %v3332 = vsel %vm3300, 1, 0
    %v3333 = vsel %vm3301, 1, 0
    %v3334 = vsel %vm3302, 1, 0
    %v3335 = vsel %vm3303, 1, 0
    %v3336 = vsel %vm3304, 1, 0
    %v3337 = vsel %vm3305, 1, 0
    %v3338 = vsel %vm3306, 1, 0
    %v3339 = vsel %vm3307, 1, 0
    %v3340 = vsel %vm3308, 1, 0
    %v3341 = vsel %vm3309, 1, 0
    %v3342 = vsel %vm3310, 1, 0
    %v3343 = vsel %vm3311, 1, 0
    %v3344 = vsel %vm3312, 1, 0
    %v3345 = vsel %vm3313, 1, 0
    %v3346 = vsel %vm3314, 1, 0
    %v3347 = vsel %vm3315, 1, 0
    %v3348 = vsel %vm3316, 1, 0
    %v3349 = vsel %vm3317, 1, 0
    %v3350 = vsel %vm3318, 1, 0
    %v3351 = vsel %vm3319, 1, 0
    %v3352 = vsel %vm3320, 1, 0
    %v3353 = vsel %vm3321, 1, 0
    %v3354 = vsel %vm3322, 1, 0
    %v3355 = vcvt.s32.f32 %v3323
    %v3356 = vcvt.s32.f32 %v3324
    %v3357 = vcvt.s32.f32 %v3325
    %v3358 = vcvt.s32.f32 %v3326
    %v3359 = vcvt.s32.f32 %v3327
    %v3360 = vcvt.s32.f32 %v3328
    %v3361 = vcvt.s32.f32 %v3329
    %v3362 = vcvt.s32.f32 %v3330
    %v3363 = vcvt.s32.f32 %v3331
    %v3364 = vcvt.s32.f32 %v3332
    %v3365 = vcvt.s32.f32 %v3333
    %v3366 = vcvt.s32.f32 %v3334
    %v3367 = vcvt.s32.f32 %v3335
    %v3368 = vcvt.s32.f32 %v3336
    %v3369 = vcvt.s32.f32 %v3337
    %v3370 = vcvt.s32.f32 %v3338
    %v3371 = vcvt.s32.f32 %v3339
    %v3372 = vcvt.s32.f32 %v3340
    %v3373 = vcvt.s32.f32 %v3341
    %v3374 = vcvt.s32.f32 %v3342
    %v3375 = vcvt.s32.f32 %v3343
    %v3376 = vcvt.s32.f32 %v3344
    %v3377 = vcvt.s32.f32 %v3345
    %v3378 = vcvt.s32.f32 %v3346
    %v3379 = vcvt.s32.f32 %v3347
    %v3380 = vcvt.s32.f32 %v3348
    %v3381 = vcvt.s32.f32 %v3349
    %v3382 = vcvt.s32.f32 %v3350
    %v3383 = vcvt.s32.f32 %v3351
    %v3384 = vcvt.s32.f32 %v3352
    %v3385 = vcvt.s32.f32 %v3353
    %v3386 = vcvt.s32.f32 %v3354
    %v3387 = vpack.c.bf16 %v3357, %v3355
    %v3388 = vpack.c.bf16 %v3358, %v3356
    %v3389 = vpack.c.bf16 %v3361, %v3359
    %v3390 = vpack.c.bf16 %v3362, %v3360
    %v3391 = vpack.c.bf16 %v3365, %v3363
    %v3392 = vpack.c.bf16 %v3366, %v3364
    %v3393 = vpack.c.bf16 %v3369, %v3367
    %v3394 = vpack.c.bf16 %v3370, %v3368
    %v3395 = vpack.c.bf16 %v3373, %v3371
    %v3396 = vpack.c.bf16 %v3374, %v3372
    %v3397 = vpack.c.bf16 %v3377, %v3375
    %v3398 = vpack.c.bf16 %v3378, %v3376
    %v3399 = vpack.c.bf16 %v3381, %v3379
    %v3400 = vpack.c.bf16 %v3382, %v3380
    %v3401 = vpack.c.bf16 %v3385, %v3383
    %v3402 = vpack.c.bf16 %v3386, %v3384
    %s3403 = scalar_lea.vmem %s4, 112
    %v3404 = vld [vmem:[%s3403] sm:$0xf]
    %v3405 = vld [vmem:[%s3403 + $0x4] sm:$0xf]
    %v3408 = vunpack.c.l.b16 %v3404
    %v3409 = vunpack.c.l.b16 %v3405
    %v3410 = vpack.c.b16 %v3409, %v3408
    %3412 = vmatpush.bf16.msra.mxu0 %v3401
    %3413 = vmatpush.bf16.msra.mxu0 %v3399
    %3414 = vmatpush.bf16.msra.mxu0 %v3397
    %3415 = vmatpush.bf16.msra.mxu0 %v3395
    %3416 = vmatpush.bf16.msra.mxu0 %v3393
    %3417 = vmatpush.bf16.msra.mxu0 %v3391
    %3418 = vmatpush.bf16.msra.mxu0 %v3389
    %3419 = vmatpush.bf16.msra.mxu0 %v3387
    %3420 = vmatmul.bf16.gmra.mxu0 %v3410
    %v3421 = vpop.f32.mrf.mxu0
    %v3422 = vadd.f32 0.0, %v3421
    %v3423 = vpop.f32.mrf.mxu0
    %v3424 = vadd.f32 0.0, %v3423
    %3425 = vdwg.mxu0
    %3426 = vmatpush.bf16.msra.mxu0 %v3402
    %3427 = vmatpush.bf16.msra.mxu0 %v3400
    %3428 = vmatpush.bf16.msra.mxu0 %v3398
    %3429 = vmatpush.bf16.msra.mxu0 %v3396
    %3430 = vmatpush.bf16.msra.mxu0 %v3394
    %3431 = vmatpush.bf16.msra.mxu0 %v3392
    %3432 = vmatpush.bf16.msra.mxu0 %v3390
    %3433 = vmatpush.bf16.msra.mxu0 %v3388
    %3434 = vmatmul.bf16.gmra.mxu0 %v3410
    %v3435 = vpop.f32.mrf.mxu0
    %v3436 = vadd.f32 0.0, %v3435
    %v3437 = vpop.f32.mrf.mxu0
    %v3438 = vadd.f32 0.0, %v3437
    %3439 = vdwg.mxu0
    %v3440 = vadd.f32 %v3287, %v3422
    %v3441 = vadd.f32 %v3288, %v3436
    %v3442 = vadd.f32 %v3289, %v3424
    %v3443 = vadd.f32 %v3290, %v3438
    %vm3444 = vcmp.eq.s32.totalorder %v1114, 15
    %vm3445 = vcmp.eq.s32.totalorder %v1115, 15
    %vm3446 = vcmp.eq.s32.totalorder %v1116, 15
    %vm3447 = vcmp.eq.s32.totalorder %v1117, 15
    %vm3448 = vcmp.eq.s32.totalorder %v1118, 15
    %vm3449 = vcmp.eq.s32.totalorder %v1119, 15
    %vm3450 = vcmp.eq.s32.totalorder %v1120, 15
    %vm3451 = vcmp.eq.s32.totalorder %v1121, 15
    %vm3452 = vcmp.eq.s32.totalorder %v1122, 15
    %vm3453 = vcmp.eq.s32.totalorder %v1123, 15
    %vm3454 = vcmp.eq.s32.totalorder %v1124, 15
    %vm3455 = vcmp.eq.s32.totalorder %v1125, 15
    %vm3456 = vcmp.eq.s32.totalorder %v1126, 15
    %vm3457 = vcmp.eq.s32.totalorder %v1127, 15
    %vm3458 = vcmp.eq.s32.totalorder %v1128, 15
    %vm3459 = vcmp.eq.s32.totalorder %v1129, 15
    %vm3460 = vcmp.eq.s32.totalorder %v1130, 15
    %vm3461 = vcmp.eq.s32.totalorder %v1131, 15
    %vm3462 = vcmp.eq.s32.totalorder %v1132, 15
    %vm3463 = vcmp.eq.s32.totalorder %v1133, 15
    %vm3464 = vcmp.eq.s32.totalorder %v1134, 15
    %vm3465 = vcmp.eq.s32.totalorder %v1135, 15
    %vm3466 = vcmp.eq.s32.totalorder %v1136, 15
    %vm3467 = vcmp.eq.s32.totalorder %v1137, 15
    %vm3468 = vcmp.eq.s32.totalorder %v1138, 15
    %vm3469 = vcmp.eq.s32.totalorder %v1139, 15
    %vm3470 = vcmp.eq.s32.totalorder %v1140, 15
    %vm3471 = vcmp.eq.s32.totalorder %v1141, 15
    %vm3472 = vcmp.eq.s32.totalorder %v1142, 15
    %vm3473 = vcmp.eq.s32.totalorder %v1143, 15
    %vm3474 = vcmp.eq.s32.totalorder %v1144, 15
    %vm3475 = vcmp.eq.s32.totalorder %v1145, 15
    %v3476 = vsel %vm3444, 1, 0
    %v3477 = vsel %vm3445, 1, 0
    %v3478 = vsel %vm3446, 1, 0
    %v3479 = vsel %vm3447, 1, 0
    %v3480 = vsel %vm3448, 1, 0
    %v3481 = vsel %vm3449, 1, 0
    %v3482 = vsel %vm3450, 1, 0
    %v3483 = vsel %vm3451, 1, 0
    %v3484 = vsel %vm3452, 1, 0
    %v3485 = vsel %vm3453, 1, 0
    %v3486 = vsel %vm3454, 1, 0
    %v3487 = vsel %vm3455, 1, 0
    %v3488 = vsel %vm3456, 1, 0
    %v3489 = vsel %vm3457, 1, 0
    %v3490 = vsel %vm3458, 1, 0
    %v3491 = vsel %vm3459, 1, 0
    %v3492 = vsel %vm3460, 1, 0
    %v3493 = vsel %vm3461, 1, 0
    %v3494 = vsel %vm3462, 1, 0
    %v3495 = vsel %vm3463, 1, 0
    %v3496 = vsel %vm3464, 1, 0
    %v3497 = vsel %vm3465, 1, 0
    %v3498 = vsel %vm3466, 1, 0
    %v3499 = vsel %vm3467, 1, 0
    %v3500 = vsel %vm3468, 1, 0
    %v3501 = vsel %vm3469, 1, 0
    %v3502 = vsel %vm3470, 1, 0
    %v3503 = vsel %vm3471, 1, 0
    %v3504 = vsel %vm3472, 1, 0
    %v3505 = vsel %vm3473, 1, 0
    %v3506 = vsel %vm3474, 1, 0
    %v3507 = vsel %vm3475, 1, 0
    %v3508 = vcvt.s32.f32 %v3476
    %v3509 = vcvt.s32.f32 %v3477
    %v3510 = vcvt.s32.f32 %v3478
    %v3511 = vcvt.s32.f32 %v3479
    %v3512 = vcvt.s32.f32 %v3480
    %v3513 = vcvt.s32.f32 %v3481
    %v3514 = vcvt.s32.f32 %v3482
    %v3515 = vcvt.s32.f32 %v3483
    %v3516 = vcvt.s32.f32 %v3484
    %v3517 = vcvt.s32.f32 %v3485
    %v3518 = vcvt.s32.f32 %v3486
    %v3519 = vcvt.s32.f32 %v3487
    %v3520 = vcvt.s32.f32 %v3488
    %v3521 = vcvt.s32.f32 %v3489
    %v3522 = vcvt.s32.f32 %v3490
    %v3523 = vcvt.s32.f32 %v3491
    %v3524 = vcvt.s32.f32 %v3492
    %v3525 = vcvt.s32.f32 %v3493
    %v3526 = vcvt.s32.f32 %v3494
    %v3527 = vcvt.s32.f32 %v3495
    %v3528 = vcvt.s32.f32 %v3496
    %v3529 = vcvt.s32.f32 %v3497
    %v3530 = vcvt.s32.f32 %v3498
    %v3531 = vcvt.s32.f32 %v3499
    %v3532 = vcvt.s32.f32 %v3500
    %v3533 = vcvt.s32.f32 %v3501
    %v3534 = vcvt.s32.f32 %v3502
    %v3535 = vcvt.s32.f32 %v3503
    %v3536 = vcvt.s32.f32 %v3504
    %v3537 = vcvt.s32.f32 %v3505
    %v3538 = vcvt.s32.f32 %v3506
    %v3539 = vcvt.s32.f32 %v3507
    %v3540 = vpack.c.bf16 %v3510, %v3508
    %v3541 = vpack.c.bf16 %v3511, %v3509
    %v3542 = vpack.c.bf16 %v3514, %v3512
    %v3543 = vpack.c.bf16 %v3515, %v3513
    %v3544 = vpack.c.bf16 %v3518, %v3516
    %v3545 = vpack.c.bf16 %v3519, %v3517
    %v3546 = vpack.c.bf16 %v3522, %v3520
    %v3547 = vpack.c.bf16 %v3523, %v3521
    %v3548 = vpack.c.bf16 %v3526, %v3524
    %v3549 = vpack.c.bf16 %v3527, %v3525
    %v3550 = vpack.c.bf16 %v3530, %v3528
    %v3551 = vpack.c.bf16 %v3531, %v3529
    %v3552 = vpack.c.bf16 %v3534, %v3532
    %v3553 = vpack.c.bf16 %v3535, %v3533
    %v3554 = vpack.c.bf16 %v3538, %v3536
    %v3555 = vpack.c.bf16 %v3539, %v3537
    %s3556 = scalar_lea.vmem %s4, 120
    %v3557 = vld [vmem:[%s3556] sm:$0xf]
    %v3558 = vld [vmem:[%s3556 + $0x4] sm:$0xf]
    %v3561 = vunpack.c.l.b16 %v3557
    %v3562 = vunpack.c.l.b16 %v3558
    %v3563 = vpack.c.b16 %v3562, %v3561
    %3565 = vmatpush.bf16.msra.mxu0 %v3554
    %3566 = vmatpush.bf16.msra.mxu0 %v3552
    %3567 = vmatpush.bf16.msra.mxu0 %v3550
    %3568 = vmatpush.bf16.msra.mxu0 %v3548
    %3569 = vmatpush.bf16.msra.mxu0 %v3546
    %3570 = vmatpush.bf16.msra.mxu0 %v3544
    %3571 = vmatpush.bf16.msra.mxu0 %v3542
    %3572 = vmatpush.bf16.msra.mxu0 %v3540
    %3573 = vmatmul.bf16.gmra.mxu0 %v3563
    %v3574 = vpop.f32.mrf.mxu0
    %v3575 = vadd.f32 0.0, %v3574
    %v3576 = vpop.f32.mrf.mxu0
    %v3577 = vadd.f32 0.0, %v3576
    %3578 = vdwg.mxu0
    %3579 = vmatpush.bf16.msra.mxu0 %v3555
    %3580 = vmatpush.bf16.msra.mxu0 %v3553
    %3581 = vmatpush.bf16.msra.mxu0 %v3551
    %3582 = vmatpush.bf16.msra.mxu0 %v3549
    %3583 = vmatpush.bf16.msra.mxu0 %v3547
    %3584 = vmatpush.bf16.msra.mxu0 %v3545
    %3585 = vmatpush.bf16.msra.mxu0 %v3543
    %3586 = vmatpush.bf16.msra.mxu0 %v3541
    %3587 = vmatmul.bf16.gmra.mxu0 %v3563
    %v3588 = vpop.f32.mrf.mxu0
    %v3589 = vadd.f32 0.0, %v3588
    %v3590 = vpop.f32.mrf.mxu0
    %v3591 = vadd.f32 0.0, %v3590
    %3592 = vdwg.mxu0
    %v3593 = vadd.f32 %v3440, %v3575
    %v3594 = vadd.f32 %v3441, %v3589
    %v3595 = vadd.f32 %v3442, %v3577
    %v3596 = vadd.f32 %v3443, %v3591
    %3597 = vst [vmem:[#allocation2] sm:$0xff] %v3593
    %3598 = vst [vmem:[#allocation2 + $0x8] sm:$0xff] %v3594
    %3599 = vst [vmem:[#allocation2 + $0x10] sm:$0xff] %v3595
    %3600 = vst [vmem:[#allocation2 + $0x18] sm:$0xff] %v3596
    // Predicated region
    $region30: #{tpu_custom_call.1} parent=1 // pred_check
      %p3601 = pneg %p24
    $region31: #{tpu_custom_call.1} parent=1 // pred_check_branch
      %3603 = sbr.rel (%p3601) target = $region33
    $region32: #{tpu_custom_call.1} parent=1 // pred_region
      %v3604 = vld [vmem:[#allocation2] sm:$0xff]
      %v3605 = vld [vmem:[#allocation2 + $0x8] sm:$0xff]
      %v3606 = vld [vmem:[#allocation2 + $0x10] sm:$0xff]
      %v3607 = vld [vmem:[#allocation2 + $0x18] sm:$0xff]
      %v3608 = vld [vmem:[%s5] sm:$0xff]
      %v3609 = vld [vmem:[%s5 + $0x8] sm:$0xff]
      %3611 = vset.pattern.permute.xlu0 0
      %3612 = vperm.xlu0 %3611, %v3608
      %v3613 = vpop.permute.xlu0 %3612
      %3616 = vset.pattern.permute.xlu0 0
      %3617 = vperm.xlu0 %3616, %v3609
      %v3618 = vpop.permute.xlu0 %3617
      %v3620 = vadd.f32 %v3604, %v3613
      %v3621 = vadd.f32 %v3605, %v3613
      %v3622 = vadd.f32 %v3606, %v3618
      %v3623 = vadd.f32 %v3607, %v3618
      %v3624 = vmax.f32 %v3620, 0.0
      %v3625 = vmax.f32 %v3621, 0.0
      %v3626 = vmax.f32 %v3622, 0.0
      %v3627 = vmax.f32 %v3623, 0.0
      %3628 = vst [vmem:[#allocation3] sm:$0xff] %v3624
      %3629 = vst [vmem:[#allocation3 + $0x8] sm:$0xff] %v3625
      %3630 = vst [vmem:[#allocation3 + $0x10] sm:$0xff] %v3626
      %3631 = vst [vmem:[#allocation3 + $0x18] sm:$0xff] %v3627
    $region33: #{tpu_custom_call.1} parent=1 // pred_fallthru
      _
    // Predicated region
    $region34: #{tpu_custom_call.1} parent=1 // pred_check
      _
    $region35: #{tpu_custom_call.1} parent=1 // pred_check_branch
      %3633 = sbr.rel (0) target = $region37
    $region36: #{tpu_custom_call.1} parent=1 // pred_region
      %3635 = vsyncadd [#allocation4], 0
      %s3636 = sshll.u32 [#allocation3], 4
      %s3637 = int_to_ptr.vmem [resolvable:$true] %s3636
      %s3638 = sshll.u32 %s6, 4
      %s3639 = int_to_ptr.hbm [resolvable:$true] %s3638
      %3644 = dma.vmem_to_hbm [thread:$0]  %s3637, 512, %s3639, [#allocation4], 256, 256, 16
    $region37: #{tpu_custom_call.1} parent=1 // pred_fallthru
      _
    // Predicated region
    $region38: #{tpu_custom_call.1} parent=1 // pred_check
      _
    $region39: #{tpu_custom_call.1} parent=1 // pred_check_branch
      %3646 = sbr.rel (0) target = $region41
    $region40: #{tpu_custom_call.1} parent=1 // pred_region
      %3648 = dma.done [#allocation4], 512
    $region41: #{tpu_custom_call.1} parent=1 // pred_fallthru
      _
    %3649 = vsyncpa [#allocation4], 1

</llo_original>
